<compile_context>
chip_gen: v5e
topology: v5e:2x2
jax: 0.10.0
libtpu: 0.0.40
codegen_flags: <defaults>
</compile_context>

<pallas_src>
import math
import jax
import jax.numpy as jnp
from jax import lax
from jax.experimental import pallas as pl
from jax.experimental.pallas import tpu as pltpu


def _layer_norm(h, w, b, eps=1e-5):
    mu = jnp.mean(h, axis=-1, keepdims=True)
    var = jnp.mean((h - mu) ** 2, axis=-1, keepdims=True)
    return (h - mu) * lax.rsqrt(var + eps) * w + b


def _choose_b_tile(batch, seq_len, target_rows=1024):
    """Largest valid batch tile: divides batch, (== batch or % 8 == 0) so the
    output block's sublane dim is legal, fits the row budget, and prefers
    keeping >= 2 grid steps (2 TensorCores on v7x) when that doesn't cost more
    than half the tile."""
    cands = [t for t in range(1, batch + 1)
             if batch % t == 0 and (t == batch or t % 8 == 0)]
    fit = [t for t in cands if t * seq_len <= max(seq_len, target_rows)]
    if not fit:
        fit = [min(cands)]
    multi = [t for t in fit if batch // t >= 2]
    if multi and max(multi) * 2 >= max(fit):
        return max(multi)
    return max(fit)


def build_kernel(b_tile, seq_len, d_model, nhead, num_layers):
    head_dim = d_model // nhead
    M = b_tile * seq_len

    def encoder_layer(h, lref):
        (qkv_w, qkv_b, out_w, out_b, ln1_w, ln1_b,
         ff1_w, ff1_b, ff2_w, ff2_b, ln2_w, ln2_b) = lref
        ln1_wv, ln1_bv = ln1_w[...], ln1_b[...]
        ln2_wv, ln2_bv = ln2_w[...], ln2_b[...]

        # --- multi-head self-attention (post-norm, PyTorch semantics) ---
        # fused lane-dense QKV: one (M, D) x (D, 3D) bf16 matmul, fp32 accumulate.
        qkv = jnp.dot(h.astype(jnp.bfloat16), qkv_w[...],
                      preferred_element_type=jnp.float32) + qkv_b[...]
        qkv3 = qkv.reshape(b_tile, seq_len, 3 * d_model)

        head_outs = []
        for hh in range(nhead):                      # static unroll, nhead small
            q3 = qkv3[:, :, hh * head_dim:(hh + 1) * head_dim]
            k3 = qkv3[:, :, d_model + hh * head_dim:d_model + (hh + 1) * head_dim]
            v3 = qkv3[:, :, 2 * d_model + hh * head_dim:
                      2 * d_model + (hh + 1) * head_dim]
            # scale already folded into the Q columns of qkv_w / qkv_b
            s = jnp.einsum('bqd,bkd->bqk',
                           q3.astype(jnp.bfloat16), k3.astype(jnp.bfloat16),
                           preferred_element_type=jnp.float32)
            s = s - jnp.max(s, axis=-1, keepdims=True)
            e = jnp.exp(s)
            p = e * pl.reciprocal(jnp.sum(e, axis=-1, keepdims=True), approx=True)
            head_outs.append(
                jnp.einsum('bqk,bkd->bqd',
                           p.astype(jnp.bfloat16), v3.astype(jnp.bfloat16),
                           preferred_element_type=jnp.float32))
        # lane concat of heads -> single full-K output projection
        attn = jnp.concatenate(head_outs, axis=-1).reshape(M, d_model)
        attn = jnp.dot(attn.astype(jnp.bfloat16), out_w[...],
                       preferred_element_type=jnp.float32) + out_b[...]
        h = _layer_norm(h + attn, ln1_wv, ln1_bv)

        # --- feed-forward (relu) ---
        ff = jnp.maximum(
            jnp.dot(h.astype(jnp.bfloat16), ff1_w[...],
                    preferred_element_type=jnp.float32) + ff1_b[...], 0.0)
        ff = jnp.dot(ff.astype(jnp.bfloat16), ff2_w[...],
                     preferred_element_type=jnp.float32) + ff2_b[...]
        h = _layer_norm(h + ff, ln2_wv, ln2_bv)
        return h

    def kernel(*refs):
        x_ref, pool_ref = refs[0], refs[1]           # (B_TILE, S, F), (B_TILE, M)
        emb_w, emb_b, pe = refs[2], refs[3], refs[4]
        idx = 5
        layer_refs = []
        for _ in range(num_layers):
            layer_refs.append(refs[idx:idx + 12])
            idx += 12
        fc_w, fc_b = refs[idx], refs[idx + 1]
        out_ref = refs[idx + 2]                      # (B_TILE, C_PAD)

        feat = x_ref.shape[2]
        x2 = x_ref[...].reshape(M, feat).astype(jnp.bfloat16)
        h = jnp.dot(x2, emb_w[...], preferred_element_type=jnp.float32) + emb_b[...]
        # learnable sinusoidal positional encoding, broadcast over the tile
        h = (h.reshape(b_tile, seq_len, d_model) + pe[...][None]).reshape(M, d_model)

        for lref in layer_refs:
            h = encoder_layer(h, lref)

        # AdaptiveAvgPool1d(1) over seq == per-row mean; grid-invariant pool
        # matrix passed in, pooled via a tiny fp32 matmul (exact mean weights).
        pooled = jnp.dot(pool_ref[...], h, preferred_element_type=jnp.float32)

        # dropout is identity at inference; fc weights lane-padded to C_PAD
        logits = jnp.dot(pooled.astype(jnp.bfloat16), fc_w[...],
                         preferred_element_type=jnp.float32) + fc_b[...]
        out_ref[...] = logits.astype(out_ref.dtype)

    return kernel


def init_params(key, feature_dim, seq_len, d_model, nhead, num_layers, num_classes):
    """Raw fp32 params in PyTorch-equivalent (in, out) layout (for the reference)."""
    keys = iter(jax.random.split(key, 2 + 4 * num_layers))

    def lin(k, din, dout):
        w = jax.random.normal(k, (din, dout), jnp.float32) * 0.02
        b = jnp.zeros((1, dout), jnp.float32)
        return w, b

    emb_w, emb_b = lin(next(keys), feature_dim, d_model)

    pos = jnp.arange(seq_len, dtype=jnp.float32)[:, None]
    div = jnp.exp(jnp.arange(0, d_model, 2, dtype=jnp.float32)
                  * (-math.log(10000.0) / d_model))
    pe = jnp.zeros((seq_len, d_model), jnp.float32)
    pe = pe.at[:, 0::2].set(jnp.sin(pos * div))
    pe = pe.at[:, 1::2].set(jnp.cos(pos * div))

    flat = [emb_w, emb_b, pe]
    for _ in range(num_layers):
        inp_w, inp_b = lin(next(keys), d_model, 3 * d_model)
        outp_w, outp_b = lin(next(keys), d_model, d_model)
        ln1_w = jnp.ones((1, d_model), jnp.float32)
        ln1_b = jnp.zeros((1, d_model), jnp.float32)
        ff1_w, ff1_b = lin(next(keys), d_model, 4 * d_model)
        ff2_w, ff2_b = lin(next(keys), 4 * d_model, d_model)
        ln2_w = jnp.ones((1, d_model), jnp.float32)
        ln2_b = jnp.zeros((1, d_model), jnp.float32)
        flat += [inp_w, inp_b, outp_w, outp_b,
                 ln1_w, ln1_b, ff1_w, ff1_b, ff2_w, ff2_b, ln2_w, ln2_b]
    fc_w, fc_b = lin(next(keys), d_model, num_classes)
    flat += [fc_w, fc_b]
    return flat


def prepare_kernel_params(raw, d_model, nhead, num_layers, num_classes):
    """One-time re-layout: fused QKV weight with 1/sqrt(head_dim) folded into the
    Q columns, matmul weights cast to bf16, classifier lane-padded to 128.
    Biases / LN params / pos-enc stay fp32."""
    head_dim = d_model // nhead
    scale = 1.0 / math.sqrt(head_dim)
    c_pad = ((num_classes + 127) // 128) * 128

    emb_w, emb_b, pe = raw[0], raw[1], raw[2]
    flat = [emb_w.astype(jnp.bfloat16), emb_b, pe]
    idx = 3
    for _ in range(num_layers):
        (inp_w, inp_b, outp_w, outp_b, ln1_w, ln1_b,
         ff1_w, ff1_b, ff2_w, ff2_b, ln2_w, ln2_b) = raw[idx:idx + 12]
        idx += 12
        qkv_w = jnp.concatenate([inp_w[:, :d_model] * scale, inp_w[:, d_model:]],
                                axis=1).astype(jnp.bfloat16)
        qkv_b = jnp.concatenate([inp_b[:, :d_model] * scale, inp_b[:, d_model:]],
                                axis=1)
        flat += [qkv_w, qkv_b, outp_w.astype(jnp.bfloat16), outp_b,
                 ln1_w, ln1_b,
                 ff1_w.astype(jnp.bfloat16), ff1_b,
                 ff2_w.astype(jnp.bfloat16), ff2_b,
                 ln2_w, ln2_b]
    fc_w, fc_b = raw[idx], raw[idx + 1]
    fc_w_p = jnp.zeros((d_model, c_pad), jnp.float32).at[:, :num_classes].set(fc_w)
    fc_b_p = jnp.zeros((1, c_pad), jnp.float32).at[:, :num_classes].set(fc_b)
    flat += [fc_w_p.astype(jnp.bfloat16), fc_b_p]
    return flat


def transformer_classifier(x, kernel_params, *, d_model, nhead, num_layers,
                           num_classes, b_tile=None, target_rows=1024):
    B, S, F = x.shape
    c_pad = kernel_params[-1].shape[1]          # lane-padded class dim (>=128)
    if b_tile is None:
        b_tile = _choose_b_tile(B, S, target_rows)
    assert B % b_tile == 0 and (b_tile == B or b_tile % 8 == 0)
    M = b_tile * S
    kernel = build_kernel(b_tile, S, d_model, nhead, num_layers)

    # grid-invariant mean-pool matrix (hoisted out of the kernel); exact 1/S
    # weights kept fp32.
    pool_mat = ((jnp.arange(b_tile)[:, None] == (jnp.arange(M)[None, :] // S))
                .astype(jnp.float32) / S)

    def weight_spec(p):
        nd = p.ndim
        # grid-invariant: constant index_map + single-buffered (halves VMEM)
        return pl.BlockSpec(p.shape, lambda b, _nd=nd: (0,) * _nd,
                            pipeline_mode=pl.Buffered(1))

    in_specs = ([pl.BlockSpec((b_tile, S, F), lambda b: (b, 0, 0)),
                 weight_spec(pool_mat)]
                + [weight_spec(p) for p in kernel_params])
    out_spec = pl.BlockSpec((b_tile, c_pad), lambda b: (b, 0))

    # ---- VMEM budget / cost estimate ----
    weight_bytes = (sum(int(p.size) * p.dtype.itemsize for p in kernel_params)
                    + int(pool_mat.size) * 4)
    act_bytes = 4 * M * (3 * d_model + 4 * d_model + 6 * d_model) \
        + 4 * b_tile * nhead * S * S
    io_bytes = 2 * (b_tile * S * F * 4 + b_tile * c_pad * 4)
    footprint = 2 * weight_bytes + 4 * act_bytes + io_bytes  # slack for padding
    vmem_limit = int(min(64 * 2 ** 20, max(32 * 2 ** 20, footprint)))

    dim_ff = 4 * d_model
    head_dim = d_model // nhead
    flops_per_example = (2 * S * F * d_model
                         + num_layers * (2 * S * d_model * 3 * d_model       # QKV
                                         + 2 * nhead * S * S * head_dim * 2  # S+PV
                                         + 2 * S * d_model * d_model         # out
                                         + 2 * S * d_model * dim_ff * 2)     # FFN
                         + 2 * d_model * c_pad)
    cost = pl.CostEstimate(
        flops=int(B * flops_per_example),
        transcendentals=int(B * num_layers * nhead * S * S),
        bytes_accessed=int(x.size * x.dtype.itemsize + weight_bytes
                           + B * c_pad * 4),
    )

    out = pl.pallas_call(
        kernel,
        out_shape=jax.ShapeDtypeStruct((B, c_pad), jnp.float32),
        grid_spec=pltpu.PrefetchScalarGridSpec(
            num_scalar_prefetch=0,
            grid=(B // b_tile,),
            in_specs=in_specs,
            out_specs=out_spec,
        ),
        compiler_params=pltpu.CompilerParams(
            dimension_semantics=("parallel",),
            vmem_limit_bytes=vmem_limit,
        ),
        cost_estimate=cost,
    )(x, pool_mat, *kernel_params)
    return out[:, :num_classes]


def reference_forward(x, raw, *, d_model, nhead, num_layers, num_classes):
    """Pure-JAX fp32 reference with the original parameter layout."""
    head_dim = d_model // nhead
    scale = 1.0 / math.sqrt(head_dim)
    emb_w, emb_b, pe = raw[0], raw[1], raw[2]
    idx = 3
    h = x @ emb_w + emb_b
    h = h + pe[None]
    for _ in range(num_layers):
        (inp_w, inp_b, outp_w, outp_b, ln1_w, ln1_b,
         ff1_w, ff1_b, ff2_w, ff2_b, ln2_w, ln2_b) = raw[idx:idx + 12]
        idx += 12
        qkv = h @ inp_w + inp_b
        q, k, v = jnp.split(qkv, 3, axis=-1)
        outs = []
        for hh in range(nhead):
            sl = slice(hh * head_dim, (hh + 1) * head_dim)
            s = jnp.einsum('bqd,bkd->bqk', q[..., sl] * scale, k[..., sl])
            s = s - jnp.max(s, axis=-1, keepdims=True)
            p = jnp.exp(s)
            p = p / jnp.sum(p, axis=-1, keepdims=True)
            outs.append(jnp.einsum('bqk,bkd->bqd', p, v[..., sl]))
        attn = jnp.concatenate(outs, axis=-1) @ outp_w + outp_b
        h = _layer_norm(h + attn, ln1_w, ln1_b)
        ff = jnp.maximum(h @ ff1_w + ff1_b, 0.0) @ ff2_w + ff2_b
        h = _layer_norm(h + ff, ln2_w, ln2_b)
    fc_w, fc_b = raw[idx], raw[idx + 1]
    pooled = jnp.mean(h, axis=1)
    return pooled @ fc_w + fc_b


def cast_matmul_weights_to_bf16(raw, num_layers):
    """bf16-quantize the matmul weights (same quantization the kernel uses) so
    the fp32 reference isolates kernel correctness from weight quantization."""
    out = list(raw)

    def q(p):
        return p.astype(jnp.bfloat16).astype(jnp.float32)

    out[0] = q(out[0])                      # embedding weight
    idx = 3
    for _ in range(num_layers):
        out[idx] = q(out[idx])              # in-proj (QKV) weight
        out[idx + 2] = q(out[idx + 2])      # out-proj weight
        out[idx + 6] = q(out[idx + 6])      # ff1 weight
        out[idx + 8] = q(out[idx + 8])      # ff2 weight
        idx += 12
    out[idx] = q(out[idx])                  # classifier weight
    return out


if __name__ == "__main__":
    B, S, F = 2, 8, 16
    D_MODEL, NHEAD, NUM_LAYERS, NUM_CLASSES = 64, 4, 2, 2

    key = jax.random.PRNGKey(0)
    kx, kp = jax.random.split(key)
    x = jax.random.normal(kx, (B, S, F), jnp.float32)

    raw_params = init_params(kp, F, S, D_MODEL, NHEAD, NUM_LAYERS, NUM_CLASSES)
    kparams = prepare_kernel_params(raw_params, D_MODEL, NHEAD, NUM_LAYERS,
                                    NUM_CLASSES)

    logits = transformer_classifier(
        x, kparams, d_model=D_MODEL, nhead=NHEAD,
        num_layers=NUM_LAYERS, num_classes=NUM_CLASSES)
    logits = jax.block_until_ready(logits)

    # Reference uses the same bf16-quantized matmul weights (fp32 math); the
    # remaining kernel deltas are bf16 activation operands + approx reciprocal
    # in the softmax denominator, hence the 2e-2 tolerance.
    ref = reference_forward(
        x, cast_matmul_weights_to_bf16(raw_params, NUM_LAYERS),
        d_model=D_MODEL, nhead=NHEAD,
        num_layers=NUM_LAYERS, num_classes=NUM_CLASSES)
    assert logits.shape == (B, NUM_CLASSES)
    assert jnp.allclose(logits, ref, atol=2e-2, rtol=2e-2), (logits, ref)

    print("KERNEL_OK")
</pallas_src>

<mosaic_0001>
module attributes {stable_mosaic.version = 11 : i64} {
  func.func @kernel(%arg0: i32, %arg1: memref<2x8x16xf32, #tpu.memory_space<vmem>>, %arg2: memref<2x16xf32, #tpu.memory_space<vmem>>, %arg3: memref<16x64xbf16, #tpu.memory_space<vmem>>, %arg4: memref<1x64xf32, #tpu.memory_space<vmem>>, %arg5: memref<8x64xf32, #tpu.memory_space<vmem>>, %arg6: memref<64x192xbf16, #tpu.memory_space<vmem>>, %arg7: memref<1x192xf32, #tpu.memory_space<vmem>>, %arg8: memref<64x64xbf16, #tpu.memory_space<vmem>>, %arg9: memref<1x64xf32, #tpu.memory_space<vmem>>, %arg10: memref<1x64xf32, #tpu.memory_space<vmem>>, %arg11: memref<1x64xf32, #tpu.memory_space<vmem>>, %arg12: memref<64x256xbf16, #tpu.memory_space<vmem>>, %arg13: memref<1x256xf32, #tpu.memory_space<vmem>>, %arg14: memref<256x64xbf16, #tpu.memory_space<vmem>>, %arg15: memref<1x64xf32, #tpu.memory_space<vmem>>, %arg16: memref<1x64xf32, #tpu.memory_space<vmem>>, %arg17: memref<1x64xf32, #tpu.memory_space<vmem>>, %arg18: memref<64x192xbf16, #tpu.memory_space<vmem>>, %arg19: memref<1x192xf32, #tpu.memory_space<vmem>>, %arg20: memref<64x64xbf16, #tpu.memory_space<vmem>>, %arg21: memref<1x64xf32, #tpu.memory_space<vmem>>, %arg22: memref<1x64xf32, #tpu.memory_space<vmem>>, %arg23: memref<1x64xf32, #tpu.memory_space<vmem>>, %arg24: memref<64x256xbf16, #tpu.memory_space<vmem>>, %arg25: memref<1x256xf32, #tpu.memory_space<vmem>>, %arg26: memref<256x64xbf16, #tpu.memory_space<vmem>>, %arg27: memref<1x64xf32, #tpu.memory_space<vmem>>, %arg28: memref<1x64xf32, #tpu.memory_space<vmem>>, %arg29: memref<1x64xf32, #tpu.memory_space<vmem>>, %arg30: memref<64x128xbf16, #tpu.memory_space<vmem>>, %arg31: memref<1x128xf32, #tpu.memory_space<vmem>>, %arg32: memref<2x128xf32, #tpu.memory_space<vmem>>) attributes {dimension_semantics = [#tpu.dimension_semantics<parallel>], iteration_bounds = array<i64: 1>, scalar_prefetch = 0 : i64, scratch_operands = 0 : i64, tpu.core_type = #tpu.core_type<tc>, window_params = [{transform_indices = @transform_0, window_bounds = array<i64: 2, 8, 16>}, {pipeline_mode = #tpu.pipeline_mode<synchronous>, transform_indices = @transform_1, window_bounds = array<i64: 2, 16>}, {pipeline_mode = #tpu.pipeline_mode<synchronous>, transform_indices = @transform_2, window_bounds = array<i64: 16, 64>}, {pipeline_mode = #tpu.pipeline_mode<synchronous>, transform_indices = @transform_3, window_bounds = array<i64: 1, 64>}, {pipeline_mode = #tpu.pipeline_mode<synchronous>, transform_indices = @transform_4, window_bounds = array<i64: 8, 64>}, {pipeline_mode = #tpu.pipeline_mode<synchronous>, transform_indices = @transform_5, window_bounds = array<i64: 64, 192>}, {pipeline_mode = #tpu.pipeline_mode<synchronous>, transform_indices = @transform_6, window_bounds = array<i64: 1, 192>}, {pipeline_mode = #tpu.pipeline_mode<synchronous>, transform_indices = @transform_7, window_bounds = array<i64: 64, 64>}, {pipeline_mode = #tpu.pipeline_mode<synchronous>, transform_indices = @transform_8, window_bounds = array<i64: 1, 64>}, {pipeline_mode = #tpu.pipeline_mode<synchronous>, transform_indices = @transform_9, window_bounds = array<i64: 1, 64>}, {pipeline_mode = #tpu.pipeline_mode<synchronous>, transform_indices = @transform_10, window_bounds = array<i64: 1, 64>}, {pipeline_mode = #tpu.pipeline_mode<synchronous>, transform_indices = @transform_11, window_bounds = array<i64: 64, 256>}, {pipeline_mode = #tpu.pipeline_mode<synchronous>, transform_indices = @transform_12, window_bounds = array<i64: 1, 256>}, {pipeline_mode = #tpu.pipeline_mode<synchronous>, transform_indices = @transform_13, window_bounds = array<i64: 256, 64>}, {pipeline_mode = #tpu.pipeline_mode<synchronous>, transform_indices = @transform_14, window_bounds = array<i64: 1, 64>}, {pipeline_mode = #tpu.pipeline_mode<synchronous>, transform_indices = @transform_15, window_bounds = array<i64: 1, 64>}, {pipeline_mode = #tpu.pipeline_mode<synchronous>, transform_indices = @transform_16, window_bounds = array<i64: 1, 64>}, {pipeline_mode = #tpu.pipeline_mode<synchronous>, transform_indices = @transform_17, window_bounds = array<i64: 64, 192>}, {pipeline_mode = #tpu.pipeline_mode<synchronous>, transform_indices = @transform_18, window_bounds = array<i64: 1, 192>}, {pipeline_mode = #tpu.pipeline_mode<synchronous>, transform_indices = @transform_19, window_bounds = array<i64: 64, 64>}, {pipeline_mode = #tpu.pipeline_mode<synchronous>, transform_indices = @transform_20, window_bounds = array<i64: 1, 64>}, {pipeline_mode = #tpu.pipeline_mode<synchronous>, transform_indices = @transform_21, window_bounds = array<i64: 1, 64>}, {pipeline_mode = #tpu.pipeline_mode<synchronous>, transform_indices = @transform_22, window_bounds = array<i64: 1, 64>}, {pipeline_mode = #tpu.pipeline_mode<synchronous>, transform_indices = @transform_23, window_bounds = array<i64: 64, 256>}, {pipeline_mode = #tpu.pipeline_mode<synchronous>, transform_indices = @transform_24, window_bounds = array<i64: 1, 256>}, {pipeline_mode = #tpu.pipeline_mode<synchronous>, transform_indices = @transform_25, window_bounds = array<i64: 256, 64>}, {pipeline_mode = #tpu.pipeline_mode<synchronous>, transform_indices = @transform_26, window_bounds = array<i64: 1, 64>}, {pipeline_mode = #tpu.pipeline_mode<synchronous>, transform_indices = @transform_27, window_bounds = array<i64: 1, 64>}, {pipeline_mode = #tpu.pipeline_mode<synchronous>, transform_indices = @transform_28, window_bounds = array<i64: 1, 64>}, {pipeline_mode = #tpu.pipeline_mode<synchronous>, transform_indices = @transform_29, window_bounds = array<i64: 64, 128>}, {pipeline_mode = #tpu.pipeline_mode<synchronous>, transform_indices = @transform_30, window_bounds = array<i64: 1, 128>}, {transform_indices = @transform_31, window_bounds = array<i64: 2, 128>}]} {
    %c0 = arith.constant 0 : index
    %c0_0 = arith.constant 0 : index
    %c0_1 = arith.constant 0 : index
    %0 = vector.load %arg1[%c0, %c0_0, %c0_1] : memref<2x8x16xf32, #tpu.memory_space<vmem>>, vector<2x8x16xf32>
    %1 = vector.shape_cast %0 : vector<2x8x16xf32> to vector<16x16xf32>
    %2 = arith.truncf %1 : vector<16x16xf32> to vector<16x16xbf16>
    %c0_2 = arith.constant 0 : index
    %c0_3 = arith.constant 0 : index
    %3 = vector.load %arg3[%c0_2, %c0_3] : memref<16x64xbf16, #tpu.memory_space<vmem>>, vector<16x64xbf16>
    %cst = arith.constant dense<0.000000e+00> : vector<16x64xf32>
    %4 = tpu.matmul %2, %3, %cst {dimension_numbers = #tpu.dot_dimension_numbers<[1], [0], [0], [1], [0, 0, 1, 1], [], []>} : vector<16x16xbf16>, vector<16x64xbf16>, vector<16x64xf32> -> vector<16x64xf32>
    %c0_4 = arith.constant 0 : index
    %c0_5 = arith.constant 0 : index
    %5 = vector.load %arg4[%c0_4, %c0_5] : memref<1x64xf32, #tpu.memory_space<vmem>>, vector<1x64xf32>
    %6 = vector.broadcast %5 : vector<1x64xf32> to vector<16x64xf32>
    %7 = arith.addf %4, %6 : vector<16x64xf32>
    %8 = vector.shape_cast %7 : vector<16x64xf32> to vector<2x8x64xf32>
    %c0_6 = arith.constant 0 : index
    %c0_7 = arith.constant 0 : index
    %9 = vector.load %arg5[%c0_6, %c0_7] : memref<8x64xf32, #tpu.memory_space<vmem>>, vector<8x64xf32>
    %10 = vector.shape_cast %9 : vector<8x64xf32> to vector<1x8x64xf32>
    %11 = vector.broadcast %10 : vector<1x8x64xf32> to vector<2x8x64xf32>
    %12 = arith.addf %8, %11 : vector<2x8x64xf32>
    %13 = vector.shape_cast %12 : vector<2x8x64xf32> to vector<16x64xf32>
    %c0_8 = arith.constant 0 : index
    %c0_9 = arith.constant 0 : index
    %14 = vector.load %arg10[%c0_8, %c0_9] : memref<1x64xf32, #tpu.memory_space<vmem>>, vector<1x64xf32>
    %c0_10 = arith.constant 0 : index
    %c0_11 = arith.constant 0 : index
    %15 = vector.load %arg11[%c0_10, %c0_11] : memref<1x64xf32, #tpu.memory_space<vmem>>, vector<1x64xf32>
    %c0_12 = arith.constant 0 : index
    %c0_13 = arith.constant 0 : index
    %16 = vector.load %arg16[%c0_12, %c0_13] : memref<1x64xf32, #tpu.memory_space<vmem>>, vector<1x64xf32>
    %c0_14 = arith.constant 0 : index
    %c0_15 = arith.constant 0 : index
    %17 = vector.load %arg17[%c0_14, %c0_15] : memref<1x64xf32, #tpu.memory_space<vmem>>, vector<1x64xf32>
    %18 = arith.truncf %13 : vector<16x64xf32> to vector<16x64xbf16>
    %c0_16 = arith.constant 0 : index
    %c0_17 = arith.constant 0 : index
    %19 = vector.load %arg6[%c0_16, %c0_17] : memref<64x192xbf16, #tpu.memory_space<vmem>>, vector<64x192xbf16>
    %cst_18 = arith.constant dense<0.000000e+00> : vector<16x192xf32>
    %20 = tpu.matmul %18, %19, %cst_18 {dimension_numbers = #tpu.dot_dimension_numbers<[1], [0], [0], [1], [0, 0, 1, 1], [], []>} : vector<16x64xbf16>, vector<64x192xbf16>, vector<16x192xf32> -> vector<16x192xf32>
    %c0_19 = arith.constant 0 : index
    %c0_20 = arith.constant 0 : index
    %21 = vector.load %arg7[%c0_19, %c0_20] : memref<1x192xf32, #tpu.memory_space<vmem>>, vector<1x192xf32>
    %22 = vector.broadcast %21 : vector<1x192xf32> to vector<16x192xf32>
    %23 = arith.addf %20, %22 : vector<16x192xf32>
    %24 = vector.shape_cast %23 : vector<16x192xf32> to vector<2x8x192xf32>
    %25 = vector.extract_strided_slice %24 {offsets = [0, 0, 0], sizes = [2, 8, 16], strides = [1, 1, 1]} : vector<2x8x192xf32> to vector<2x8x16xf32>
    %26 = vector.extract_strided_slice %24 {offsets = [0, 0, 64], sizes = [2, 8, 16], strides = [1, 1, 1]} : vector<2x8x192xf32> to vector<2x8x16xf32>
    %27 = vector.extract_strided_slice %24 {offsets = [0, 0, 128], sizes = [2, 8, 16], strides = [1, 1, 1]} : vector<2x8x192xf32> to vector<2x8x16xf32>
    %28 = arith.truncf %25 : vector<2x8x16xf32> to vector<2x8x16xbf16>
    %29 = arith.truncf %26 : vector<2x8x16xf32> to vector<2x8x16xbf16>
    "tpu.trace_start"() <{level = 10 : i32, message = "bqd,bkd->bqk"}> : () -> ()
    %cst_21 = arith.constant dense<0.000000e+00> : vector<2x8x8xf32>
    %30 = tpu.matmul %28, %29, %cst_21 {dimension_numbers = #tpu.dot_dimension_numbers<[2], [2], [1], [1], [0, 0, 0, 1, 1, 1], [0], [0]>} : vector<2x8x16xbf16>, vector<2x8x16xbf16>, vector<2x8x8xf32> -> vector<2x8x8xf32>
    "tpu.trace_stop"() : () -> ()
    %cst_22 = arith.constant dense<0xFF800000> : vector<2x8xf32>
    %31 = vector.multi_reduction <maximumf>, %30, %cst_22 [2] : vector<2x8x8xf32> to vector<2x8xf32>
    %32 = vector.shape_cast %31 : vector<2x8xf32> to vector<2x8x1xf32>
    %33 = vector.broadcast %32 : vector<2x8x1xf32> to vector<2x8x8xf32>
    %34 = arith.subf %30, %33 : vector<2x8x8xf32>
    %35 = math.exp %34 : vector<2x8x8xf32>
    %cst_23 = arith.constant dense<0.000000e+00> : vector<2x8xf32>
    %36 = vector.multi_reduction <add>, %35, %cst_23 [2] : vector<2x8x8xf32> to vector<2x8xf32>
    %37 = vector.shape_cast %36 : vector<2x8xf32> to vector<2x8x1xf32>
    %38 = tpu.reciprocal %37 {approx = true} : vector<2x8x1xf32> -> vector<2x8x1xf32>
    %39 = vector.broadcast %38 : vector<2x8x1xf32> to vector<2x8x8xf32>
    %40 = arith.mulf %35, %39 : vector<2x8x8xf32>
    %41 = arith.truncf %40 : vector<2x8x8xf32> to vector<2x8x8xbf16>
    %42 = arith.truncf %27 : vector<2x8x16xf32> to vector<2x8x16xbf16>
    "tpu.trace_start"() <{level = 10 : i32, message = "bqk,bkd->bqd"}> : () -> ()
    %cst_24 = arith.constant dense<0.000000e+00> : vector<2x8x16xf32>
    %43 = tpu.matmul %41, %42, %cst_24 {dimension_numbers = #tpu.dot_dimension_numbers<[2], [1], [1], [2], [0, 0, 0, 1, 1, 2], [0], [0]>} : vector<2x8x8xbf16>, vector<2x8x16xbf16>, vector<2x8x16xf32> -> vector<2x8x16xf32>
    "tpu.trace_stop"() : () -> ()
    %44 = vector.extract_strided_slice %24 {offsets = [0, 0, 16], sizes = [2, 8, 16], strides = [1, 1, 1]} : vector<2x8x192xf32> to vector<2x8x16xf32>
    %45 = vector.extract_strided_slice %24 {offsets = [0, 0, 80], sizes = [2, 8, 16], strides = [1, 1, 1]} : vector<2x8x192xf32> to vector<2x8x16xf32>
    %46 = vector.extract_strided_slice %24 {offsets = [0, 0, 144], sizes = [2, 8, 16], strides = [1, 1, 1]} : vector<2x8x192xf32> to vector<2x8x16xf32>
    %47 = arith.truncf %44 : vector<2x8x16xf32> to vector<2x8x16xbf16>
    %48 = arith.truncf %45 : vector<2x8x16xf32> to vector<2x8x16xbf16>
    "tpu.trace_start"() <{level = 10 : i32, message = "bqd,bkd->bqk"}> : () -> ()
    %cst_25 = arith.constant dense<0.000000e+00> : vector<2x8x8xf32>
    %49 = tpu.matmul %47, %48, %cst_25 {dimension_numbers = #tpu.dot_dimension_numbers<[2], [2], [1], [1], [0, 0, 0, 1, 1, 1], [0], [0]>} : vector<2x8x16xbf16>, vector<2x8x16xbf16>, vector<2x8x8xf32> -> vector<2x8x8xf32>
    "tpu.trace_stop"() : () -> ()
    %cst_26 = arith.constant dense<0xFF800000> : vector<2x8xf32>
    %50 = vector.multi_reduction <maximumf>, %49, %cst_26 [2] : vector<2x8x8xf32> to vector<2x8xf32>
    %51 = vector.shape_cast %50 : vector<2x8xf32> to vector<2x8x1xf32>
    %52 = vector.broadcast %51 : vector<2x8x1xf32> to vector<2x8x8xf32>
    %53 = arith.subf %49, %52 : vector<2x8x8xf32>
    %54 = math.exp %53 : vector<2x8x8xf32>
    %cst_27 = arith.constant dense<0.000000e+00> : vector<2x8xf32>
    %55 = vector.multi_reduction <add>, %54, %cst_27 [2] : vector<2x8x8xf32> to vector<2x8xf32>
    %56 = vector.shape_cast %55 : vector<2x8xf32> to vector<2x8x1xf32>
    %57 = tpu.reciprocal %56 {approx = true} : vector<2x8x1xf32> -> vector<2x8x1xf32>
    %58 = vector.broadcast %57 : vector<2x8x1xf32> to vector<2x8x8xf32>
    %59 = arith.mulf %54, %58 : vector<2x8x8xf32>
    %60 = arith.truncf %59 : vector<2x8x8xf32> to vector<2x8x8xbf16>
    %61 = arith.truncf %46 : vector<2x8x16xf32> to vector<2x8x16xbf16>
    "tpu.trace_start"() <{level = 10 : i32, message = "bqk,bkd->bqd"}> : () -> ()
    %cst_28 = arith.constant dense<0.000000e+00> : vector<2x8x16xf32>
    %62 = tpu.matmul %60, %61, %cst_28 {dimension_numbers = #tpu.dot_dimension_numbers<[2], [1], [1], [2], [0, 0, 0, 1, 1, 2], [0], [0]>} : vector<2x8x8xbf16>, vector<2x8x16xbf16>, vector<2x8x16xf32> -> vector<2x8x16xf32>
    "tpu.trace_stop"() : () -> ()
    %63 = vector.extract_strided_slice %24 {offsets = [0, 0, 32], sizes = [2, 8, 16], strides = [1, 1, 1]} : vector<2x8x192xf32> to vector<2x8x16xf32>
    %64 = vector.extract_strided_slice %24 {offsets = [0, 0, 96], sizes = [2, 8, 16], strides = [1, 1, 1]} : vector<2x8x192xf32> to vector<2x8x16xf32>
    %65 = vector.extract_strided_slice %24 {offsets = [0, 0, 160], sizes = [2, 8, 16], strides = [1, 1, 1]} : vector<2x8x192xf32> to vector<2x8x16xf32>
    %66 = arith.truncf %63 : vector<2x8x16xf32> to vector<2x8x16xbf16>
    %67 = arith.truncf %64 : vector<2x8x16xf32> to vector<2x8x16xbf16>
    "tpu.trace_start"() <{level = 10 : i32, message = "bqd,bkd->bqk"}> : () -> ()
    %cst_29 = arith.constant dense<0.000000e+00> : vector<2x8x8xf32>
    %68 = tpu.matmul %66, %67, %cst_29 {dimension_numbers = #tpu.dot_dimension_numbers<[2], [2], [1], [1], [0, 0, 0, 1, 1, 1], [0], [0]>} : vector<2x8x16xbf16>, vector<2x8x16xbf16>, vector<2x8x8xf32> -> vector<2x8x8xf32>
    "tpu.trace_stop"() : () -> ()
    %cst_30 = arith.constant dense<0xFF800000> : vector<2x8xf32>
    %69 = vector.multi_reduction <maximumf>, %68, %cst_30 [2] : vector<2x8x8xf32> to vector<2x8xf32>
    %70 = vector.shape_cast %69 : vector<2x8xf32> to vector<2x8x1xf32>
    %71 = vector.broadcast %70 : vector<2x8x1xf32> to vector<2x8x8xf32>
    %72 = arith.subf %68, %71 : vector<2x8x8xf32>
    %73 = math.exp %72 : vector<2x8x8xf32>
    %cst_31 = arith.constant dense<0.000000e+00> : vector<2x8xf32>
    %74 = vector.multi_reduction <add>, %73, %cst_31 [2] : vector<2x8x8xf32> to vector<2x8xf32>
    %75 = vector.shape_cast %74 : vector<2x8xf32> to vector<2x8x1xf32>
    %76 = tpu.reciprocal %75 {approx = true} : vector<2x8x1xf32> -> vector<2x8x1xf32>
    %77 = vector.broadcast %76 : vector<2x8x1xf32> to vector<2x8x8xf32>
    %78 = arith.mulf %73, %77 : vector<2x8x8xf32>
    %79 = arith.truncf %78 : vector<2x8x8xf32> to vector<2x8x8xbf16>
    %80 = arith.truncf %65 : vector<2x8x16xf32> to vector<2x8x16xbf16>
    "tpu.trace_start"() <{level = 10 : i32, message = "bqk,bkd->bqd"}> : () -> ()
    %cst_32 = arith.constant dense<0.000000e+00> : vector<2x8x16xf32>
    %81 = tpu.matmul %79, %80, %cst_32 {dimension_numbers = #tpu.dot_dimension_numbers<[2], [1], [1], [2], [0, 0, 0, 1, 1, 2], [0], [0]>} : vector<2x8x8xbf16>, vector<2x8x16xbf16>, vector<2x8x16xf32> -> vector<2x8x16xf32>
    "tpu.trace_stop"() : () -> ()
    %82 = vector.extract_strided_slice %24 {offsets = [0, 0, 48], sizes = [2, 8, 16], strides = [1, 1, 1]} : vector<2x8x192xf32> to vector<2x8x16xf32>
    %83 = vector.extract_strided_slice %24 {offsets = [0, 0, 112], sizes = [2, 8, 16], strides = [1, 1, 1]} : vector<2x8x192xf32> to vector<2x8x16xf32>
    %84 = vector.extract_strided_slice %24 {offsets = [0, 0, 176], sizes = [2, 8, 16], strides = [1, 1, 1]} : vector<2x8x192xf32> to vector<2x8x16xf32>
    %85 = arith.truncf %82 : vector<2x8x16xf32> to vector<2x8x16xbf16>
    %86 = arith.truncf %83 : vector<2x8x16xf32> to vector<2x8x16xbf16>
    "tpu.trace_start"() <{level = 10 : i32, message = "bqd,bkd->bqk"}> : () -> ()
    %cst_33 = arith.constant dense<0.000000e+00> : vector<2x8x8xf32>
    %87 = tpu.matmul %85, %86, %cst_33 {dimension_numbers = #tpu.dot_dimension_numbers<[2], [2], [1], [1], [0, 0, 0, 1, 1, 1], [0], [0]>} : vector<2x8x16xbf16>, vector<2x8x16xbf16>, vector<2x8x8xf32> -> vector<2x8x8xf32>
    "tpu.trace_stop"() : () -> ()
    %cst_34 = arith.constant dense<0xFF800000> : vector<2x8xf32>
    %88 = vector.multi_reduction <maximumf>, %87, %cst_34 [2] : vector<2x8x8xf32> to vector<2x8xf32>
    %89 = vector.shape_cast %88 : vector<2x8xf32> to vector<2x8x1xf32>
    %90 = vector.broadcast %89 : vector<2x8x1xf32> to vector<2x8x8xf32>
    %91 = arith.subf %87, %90 : vector<2x8x8xf32>
    %92 = math.exp %91 : vector<2x8x8xf32>
    %cst_35 = arith.constant dense<0.000000e+00> : vector<2x8xf32>
    %93 = vector.multi_reduction <add>, %92, %cst_35 [2] : vector<2x8x8xf32> to vector<2x8xf32>
    %94 = vector.shape_cast %93 : vector<2x8xf32> to vector<2x8x1xf32>
    %95 = tpu.reciprocal %94 {approx = true} : vector<2x8x1xf32> -> vector<2x8x1xf32>
    %96 = vector.broadcast %95 : vector<2x8x1xf32> to vector<2x8x8xf32>
    %97 = arith.mulf %92, %96 : vector<2x8x8xf32>
    %98 = arith.truncf %97 : vector<2x8x8xf32> to vector<2x8x8xbf16>
    %99 = arith.truncf %84 : vector<2x8x16xf32> to vector<2x8x16xbf16>
    "tpu.trace_start"() <{level = 10 : i32, message = "bqk,bkd->bqd"}> : () -> ()
    %cst_36 = arith.constant dense<0.000000e+00> : vector<2x8x16xf32>
    %100 = tpu.matmul %98, %99, %cst_36 {dimension_numbers = #tpu.dot_dimension_numbers<[2], [1], [1], [2], [0, 0, 0, 1, 1, 2], [0], [0]>} : vector<2x8x8xbf16>, vector<2x8x16xbf16>, vector<2x8x16xf32> -> vector<2x8x16xf32>
    "tpu.trace_stop"() : () -> ()
    %101 = tpu.concatenate %43, %62, %81, %100 in 2 : vector<2x8x16xf32>, vector<2x8x16xf32>, vector<2x8x16xf32>, vector<2x8x16xf32> -> vector<2x8x64xf32>
    %102 = vector.shape_cast %101 : vector<2x8x64xf32> to vector<16x64xf32>
    %103 = arith.truncf %102 : vector<16x64xf32> to vector<16x64xbf16>
    %c0_37 = arith.constant 0 : index
    %c0_38 = arith.constant 0 : index
    %104 = vector.load %arg8[%c0_37, %c0_38] : memref<64x64xbf16, #tpu.memory_space<vmem>>, vector<64x64xbf16>
    %cst_39 = arith.constant dense<0.000000e+00> : vector<16x64xf32>
    %105 = tpu.matmul %103, %104, %cst_39 {dimension_numbers = #tpu.dot_dimension_numbers<[1], [0], [0], [1], [0, 0, 1, 1], [], []>} : vector<16x64xbf16>, vector<64x64xbf16>, vector<16x64xf32> -> vector<16x64xf32>
    %c0_40 = arith.constant 0 : index
    %c0_41 = arith.constant 0 : index
    %106 = vector.load %arg9[%c0_40, %c0_41] : memref<1x64xf32, #tpu.memory_space<vmem>>, vector<1x64xf32>
    %107 = vector.broadcast %106 : vector<1x64xf32> to vector<16x64xf32>
    %108 = arith.addf %105, %107 : vector<16x64xf32>
    %109 = arith.addf %13, %108 : vector<16x64xf32>
    %cst_42 = arith.constant dense<0.000000e+00> : vector<16xf32>
    %110 = vector.multi_reduction <add>, %109, %cst_42 [1] : vector<16x64xf32> to vector<16xf32>
    %111 = vector.shape_cast %110 : vector<16xf32> to vector<16x1xf32>
    %cst_43 = arith.constant 6.400000e+01 : f32
    %112 = vector.broadcast %cst_43 : f32 to vector<16x1xf32>
    %113 = arith.divf %111, %112 : vector<16x1xf32>
    %114 = vector.broadcast %113 : vector<16x1xf32> to vector<16x64xf32>
    %115 = arith.subf %109, %114 : vector<16x64xf32>
    %116 = arith.mulf %115, %115 : vector<16x64xf32>
    %cst_44 = arith.constant dense<0.000000e+00> : vector<16xf32>
    %117 = vector.multi_reduction <add>, %116, %cst_44 [1] : vector<16x64xf32> to vector<16xf32>
    %118 = vector.shape_cast %117 : vector<16xf32> to vector<16x1xf32>
    %cst_45 = arith.constant 6.400000e+01 : f32
    %119 = vector.broadcast %cst_45 : f32 to vector<16x1xf32>
    %120 = arith.divf %118, %119 : vector<16x1xf32>
    %121 = vector.broadcast %113 : vector<16x1xf32> to vector<16x64xf32>
    %122 = arith.subf %109, %121 : vector<16x64xf32>
    %cst_46 = arith.constant 9.99999974E-6 : f32
    %123 = vector.broadcast %cst_46 : f32 to vector<16x1xf32>
    %124 = arith.addf %120, %123 : vector<16x1xf32>
    %125 = math.rsqrt %124 : vector<16x1xf32>
    %126 = vector.broadcast %125 : vector<16x1xf32> to vector<16x64xf32>
    %127 = arith.mulf %122, %126 : vector<16x64xf32>
    %128 = vector.broadcast %14 : vector<1x64xf32> to vector<16x64xf32>
    %129 = arith.mulf %127, %128 : vector<16x64xf32>
    %130 = vector.broadcast %15 : vector<1x64xf32> to vector<16x64xf32>
    %131 = arith.addf %129, %130 : vector<16x64xf32>
    %132 = arith.truncf %131 : vector<16x64xf32> to vector<16x64xbf16>
    %c0_47 = arith.constant 0 : index
    %c0_48 = arith.constant 0 : index
    %133 = vector.load %arg12[%c0_47, %c0_48] : memref<64x256xbf16, #tpu.memory_space<vmem>>, vector<64x256xbf16>
    %cst_49 = arith.constant dense<0.000000e+00> : vector<16x256xf32>
    %134 = tpu.matmul %132, %133, %cst_49 {dimension_numbers = #tpu.dot_dimension_numbers<[1], [0], [0], [1], [0, 0, 1, 1], [], []>} : vector<16x64xbf16>, vector<64x256xbf16>, vector<16x256xf32> -> vector<16x256xf32>
    %c0_50 = arith.constant 0 : index
    %c0_51 = arith.constant 0 : index
    %135 = vector.load %arg13[%c0_50, %c0_51] : memref<1x256xf32, #tpu.memory_space<vmem>>, vector<1x256xf32>
    %136 = vector.broadcast %135 : vector<1x256xf32> to vector<16x256xf32>
    %137 = arith.addf %134, %136 : vector<16x256xf32>
    %cst_52 = arith.constant 0.000000e+00 : f32
    %138 = vector.broadcast %cst_52 : f32 to vector<16x256xf32>
    %139 = arith.maximumf %137, %138 : vector<16x256xf32>
    %140 = arith.truncf %139 : vector<16x256xf32> to vector<16x256xbf16>
    %c0_53 = arith.constant 0 : index
    %c0_54 = arith.constant 0 : index
    %141 = vector.load %arg14[%c0_53, %c0_54] : memref<256x64xbf16, #tpu.memory_space<vmem>>, vector<256x64xbf16>
    %cst_55 = arith.constant dense<0.000000e+00> : vector<16x64xf32>
    %142 = tpu.matmul %140, %141, %cst_55 {dimension_numbers = #tpu.dot_dimension_numbers<[1], [0], [0], [1], [0, 0, 1, 1], [], []>} : vector<16x256xbf16>, vector<256x64xbf16>, vector<16x64xf32> -> vector<16x64xf32>
    %c0_56 = arith.constant 0 : index
    %c0_57 = arith.constant 0 : index
    %143 = vector.load %arg15[%c0_56, %c0_57] : memref<1x64xf32, #tpu.memory_space<vmem>>, vector<1x64xf32>
    %144 = vector.broadcast %143 : vector<1x64xf32> to vector<16x64xf32>
    %145 = arith.addf %142, %144 : vector<16x64xf32>
    %146 = arith.addf %131, %145 : vector<16x64xf32>
    %cst_58 = arith.constant dense<0.000000e+00> : vector<16xf32>
    %147 = vector.multi_reduction <add>, %146, %cst_58 [1] : vector<16x64xf32> to vector<16xf32>
    %148 = vector.shape_cast %147 : vector<16xf32> to vector<16x1xf32>
    %cst_59 = arith.constant 6.400000e+01 : f32
    %149 = vector.broadcast %cst_59 : f32 to vector<16x1xf32>
    %150 = arith.divf %148, %149 : vector<16x1xf32>
    %151 = vector.broadcast %150 : vector<16x1xf32> to vector<16x64xf32>
    %152 = arith.subf %146, %151 : vector<16x64xf32>
    %153 = arith.mulf %152, %152 : vector<16x64xf32>
    %cst_60 = arith.constant dense<0.000000e+00> : vector<16xf32>
    %154 = vector.multi_reduction <add>, %153, %cst_60 [1] : vector<16x64xf32> to vector<16xf32>
    %155 = vector.shape_cast %154 : vector<16xf32> to vector<16x1xf32>
    %cst_61 = arith.constant 6.400000e+01 : f32
    %156 = vector.broadcast %cst_61 : f32 to vector<16x1xf32>
    %157 = arith.divf %155, %156 : vector<16x1xf32>
    %158 = vector.broadcast %150 : vector<16x1xf32> to vector<16x64xf32>
    %159 = arith.subf %146, %158 : vector<16x64xf32>
    %cst_62 = arith.constant 9.99999974E-6 : f32
    %160 = vector.broadcast %cst_62 : f32 to vector<16x1xf32>
    %161 = arith.addf %157, %160 : vector<16x1xf32>
    %162 = math.rsqrt %161 : vector<16x1xf32>
    %163 = vector.broadcast %162 : vector<16x1xf32> to vector<16x64xf32>
    %164 = arith.mulf %159, %163 : vector<16x64xf32>
    %165 = vector.broadcast %16 : vector<1x64xf32> to vector<16x64xf32>
    %166 = arith.mulf %164, %165 : vector<16x64xf32>
    %167 = vector.broadcast %17 : vector<1x64xf32> to vector<16x64xf32>
    %168 = arith.addf %166, %167 : vector<16x64xf32>
    %c0_63 = arith.constant 0 : index
    %c0_64 = arith.constant 0 : index
    %169 = vector.load %arg22[%c0_63, %c0_64] : memref<1x64xf32, #tpu.memory_space<vmem>>, vector<1x64xf32>
    %c0_65 = arith.constant 0 : index
    %c0_66 = arith.constant 0 : index
    %170 = vector.load %arg23[%c0_65, %c0_66] : memref<1x64xf32, #tpu.memory_space<vmem>>, vector<1x64xf32>
    %c0_67 = arith.constant 0 : index
    %c0_68 = arith.constant 0 : index
    %171 = vector.load %arg28[%c0_67, %c0_68] : memref<1x64xf32, #tpu.memory_space<vmem>>, vector<1x64xf32>
    %c0_69 = arith.constant 0 : index
    %c0_70 = arith.constant 0 : index
    %172 = vector.load %arg29[%c0_69, %c0_70] : memref<1x64xf32, #tpu.memory_space<vmem>>, vector<1x64xf32>
    %173 = arith.truncf %168 : vector<16x64xf32> to vector<16x64xbf16>
    %c0_71 = arith.constant 0 : index
    %c0_72 = arith.constant 0 : index
    %174 = vector.load %arg18[%c0_71, %c0_72] : memref<64x192xbf16, #tpu.memory_space<vmem>>, vector<64x192xbf16>
    %cst_73 = arith.constant dense<0.000000e+00> : vector<16x192xf32>
    %175 = tpu.matmul %173, %174, %cst_73 {dimension_numbers = #tpu.dot_dimension_numbers<[1], [0], [0], [1], [0, 0, 1, 1], [], []>} : vector<16x64xbf16>, vector<64x192xbf16>, vector<16x192xf32> -> vector<16x192xf32>
    %c0_74 = arith.constant 0 : index
    %c0_75 = arith.constant 0 : index
    %176 = vector.load %arg19[%c0_74, %c0_75] : memref<1x192xf32, #tpu.memory_space<vmem>>, vector<1x192xf32>
    %177 = vector.broadcast %176 : vector<1x192xf32> to vector<16x192xf32>
    %178 = arith.addf %175, %177 : vector<16x192xf32>
    %179 = vector.shape_cast %178 : vector<16x192xf32> to vector<2x8x192xf32>
    %180 = vector.extract_strided_slice %179 {offsets = [0, 0, 0], sizes = [2, 8, 16], strides = [1, 1, 1]} : vector<2x8x192xf32> to vector<2x8x16xf32>
    %181 = vector.extract_strided_slice %179 {offsets = [0, 0, 64], sizes = [2, 8, 16], strides = [1, 1, 1]} : vector<2x8x192xf32> to vector<2x8x16xf32>
    %182 = vector.extract_strided_slice %179 {offsets = [0, 0, 128], sizes = [2, 8, 16], strides = [1, 1, 1]} : vector<2x8x192xf32> to vector<2x8x16xf32>
    %183 = arith.truncf %180 : vector<2x8x16xf32> to vector<2x8x16xbf16>
    %184 = arith.truncf %181 : vector<2x8x16xf32> to vector<2x8x16xbf16>
    "tpu.trace_start"() <{level = 10 : i32, message = "bqd,bkd->bqk"}> : () -> ()
    %cst_76 = arith.constant dense<0.000000e+00> : vector<2x8x8xf32>
    %185 = tpu.matmul %183, %184, %cst_76 {dimension_numbers = #tpu.dot_dimension_numbers<[2], [2], [1], [1], [0, 0, 0, 1, 1, 1], [0], [0]>} : vector<2x8x16xbf16>, vector<2x8x16xbf16>, vector<2x8x8xf32> -> vector<2x8x8xf32>
    "tpu.trace_stop"() : () -> ()
    %cst_77 = arith.constant dense<0xFF800000> : vector<2x8xf32>
    %186 = vector.multi_reduction <maximumf>, %185, %cst_77 [2] : vector<2x8x8xf32> to vector<2x8xf32>
    %187 = vector.shape_cast %186 : vector<2x8xf32> to vector<2x8x1xf32>
    %188 = vector.broadcast %187 : vector<2x8x1xf32> to vector<2x8x8xf32>
    %189 = arith.subf %185, %188 : vector<2x8x8xf32>
    %190 = math.exp %189 : vector<2x8x8xf32>
    %cst_78 = arith.constant dense<0.000000e+00> : vector<2x8xf32>
    %191 = vector.multi_reduction <add>, %190, %cst_78 [2] : vector<2x8x8xf32> to vector<2x8xf32>
    %192 = vector.shape_cast %191 : vector<2x8xf32> to vector<2x8x1xf32>
    %193 = tpu.reciprocal %192 {approx = true} : vector<2x8x1xf32> -> vector<2x8x1xf32>
    %194 = vector.broadcast %193 : vector<2x8x1xf32> to vector<2x8x8xf32>
    %195 = arith.mulf %190, %194 : vector<2x8x8xf32>
    %196 = arith.truncf %195 : vector<2x8x8xf32> to vector<2x8x8xbf16>
    %197 = arith.truncf %182 : vector<2x8x16xf32> to vector<2x8x16xbf16>
    "tpu.trace_start"() <{level = 10 : i32, message = "bqk,bkd->bqd"}> : () -> ()
    %cst_79 = arith.constant dense<0.000000e+00> : vector<2x8x16xf32>
    %198 = tpu.matmul %196, %197, %cst_79 {dimension_numbers = #tpu.dot_dimension_numbers<[2], [1], [1], [2], [0, 0, 0, 1, 1, 2], [0], [0]>} : vector<2x8x8xbf16>, vector<2x8x16xbf16>, vector<2x8x16xf32> -> vector<2x8x16xf32>
    "tpu.trace_stop"() : () -> ()
    %199 = vector.extract_strided_slice %179 {offsets = [0, 0, 16], sizes = [2, 8, 16], strides = [1, 1, 1]} : vector<2x8x192xf32> to vector<2x8x16xf32>
    %200 = vector.extract_strided_slice %179 {offsets = [0, 0, 80], sizes = [2, 8, 16], strides = [1, 1, 1]} : vector<2x8x192xf32> to vector<2x8x16xf32>
    %201 = vector.extract_strided_slice %179 {offsets = [0, 0, 144], sizes = [2, 8, 16], strides = [1, 1, 1]} : vector<2x8x192xf32> to vector<2x8x16xf32>
    %202 = arith.truncf %199 : vector<2x8x16xf32> to vector<2x8x16xbf16>
    %203 = arith.truncf %200 : vector<2x8x16xf32> to vector<2x8x16xbf16>
    "tpu.trace_start"() <{level = 10 : i32, message = "bqd,bkd->bqk"}> : () -> ()
    %cst_80 = arith.constant dense<0.000000e+00> : vector<2x8x8xf32>
    %204 = tpu.matmul %202, %203, %cst_80 {dimension_numbers = #tpu.dot_dimension_numbers<[2], [2], [1], [1], [0, 0, 0, 1, 1, 1], [0], [0]>} : vector<2x8x16xbf16>, vector<2x8x16xbf16>, vector<2x8x8xf32> -> vector<2x8x8xf32>
    "tpu.trace_stop"() : () -> ()
    %cst_81 = arith.constant dense<0xFF800000> : vector<2x8xf32>
    %205 = vector.multi_reduction <maximumf>, %204, %cst_81 [2] : vector<2x8x8xf32> to vector<2x8xf32>
    %206 = vector.shape_cast %205 : vector<2x8xf32> to vector<2x8x1xf32>
    %207 = vector.broadcast %206 : vector<2x8x1xf32> to vector<2x8x8xf32>
    %208 = arith.subf %204, %207 : vector<2x8x8xf32>
    %209 = math.exp %208 : vector<2x8x8xf32>
    %cst_82 = arith.constant dense<0.000000e+00> : vector<2x8xf32>
    %210 = vector.multi_reduction <add>, %209, %cst_82 [2] : vector<2x8x8xf32> to vector<2x8xf32>
    %211 = vector.shape_cast %210 : vector<2x8xf32> to vector<2x8x1xf32>
    %212 = tpu.reciprocal %211 {approx = true} : vector<2x8x1xf32> -> vector<2x8x1xf32>
    %213 = vector.broadcast %212 : vector<2x8x1xf32> to vector<2x8x8xf32>
    %214 = arith.mulf %209, %213 : vector<2x8x8xf32>
    %215 = arith.truncf %214 : vector<2x8x8xf32> to vector<2x8x8xbf16>
    %216 = arith.truncf %201 : vector<2x8x16xf32> to vector<2x8x16xbf16>
    "tpu.trace_start"() <{level = 10 : i32, message = "bqk,bkd->bqd"}> : () -> ()
    %cst_83 = arith.constant dense<0.000000e+00> : vector<2x8x16xf32>
    %217 = tpu.matmul %215, %216, %cst_83 {dimension_numbers = #tpu.dot_dimension_numbers<[2], [1], [1], [2], [0, 0, 0, 1, 1, 2], [0], [0]>} : vector<2x8x8xbf16>, vector<2x8x16xbf16>, vector<2x8x16xf32> -> vector<2x8x16xf32>
    "tpu.trace_stop"() : () -> ()
    %218 = vector.extract_strided_slice %179 {offsets = [0, 0, 32], sizes = [2, 8, 16], strides = [1, 1, 1]} : vector<2x8x192xf32> to vector<2x8x16xf32>
    %219 = vector.extract_strided_slice %179 {offsets = [0, 0, 96], sizes = [2, 8, 16], strides = [1, 1, 1]} : vector<2x8x192xf32> to vector<2x8x16xf32>
    %220 = vector.extract_strided_slice %179 {offsets = [0, 0, 160], sizes = [2, 8, 16], strides = [1, 1, 1]} : vector<2x8x192xf32> to vector<2x8x16xf32>
    %221 = arith.truncf %218 : vector<2x8x16xf32> to vector<2x8x16xbf16>
    %222 = arith.truncf %219 : vector<2x8x16xf32> to vector<2x8x16xbf16>
    "tpu.trace_start"() <{level = 10 : i32, message = "bqd,bkd->bqk"}> : () -> ()
    %cst_84 = arith.constant dense<0.000000e+00> : vector<2x8x8xf32>
    %223 = tpu.matmul %221, %222, %cst_84 {dimension_numbers = #tpu.dot_dimension_numbers<[2], [2], [1], [1], [0, 0, 0, 1, 1, 1], [0], [0]>} : vector<2x8x16xbf16>, vector<2x8x16xbf16>, vector<2x8x8xf32> -> vector<2x8x8xf32>
    "tpu.trace_stop"() : () -> ()
    %cst_85 = arith.constant dense<0xFF800000> : vector<2x8xf32>
    %224 = vector.multi_reduction <maximumf>, %223, %cst_85 [2] : vector<2x8x8xf32> to vector<2x8xf32>
    %225 = vector.shape_cast %224 : vector<2x8xf32> to vector<2x8x1xf32>
    %226 = vector.broadcast %225 : vector<2x8x1xf32> to vector<2x8x8xf32>
    %227 = arith.subf %223, %226 : vector<2x8x8xf32>
    %228 = math.exp %227 : vector<2x8x8xf32>
    %cst_86 = arith.constant dense<0.000000e+00> : vector<2x8xf32>
    %229 = vector.multi_reduction <add>, %228, %cst_86 [2] : vector<2x8x8xf32> to vector<2x8xf32>
    %230 = vector.shape_cast %229 : vector<2x8xf32> to vector<2x8x1xf32>
    %231 = tpu.reciprocal %230 {approx = true} : vector<2x8x1xf32> -> vector<2x8x1xf32>
    %232 = vector.broadcast %231 : vector<2x8x1xf32> to vector<2x8x8xf32>
    %233 = arith.mulf %228, %232 : vector<2x8x8xf32>
    %234 = arith.truncf %233 : vector<2x8x8xf32> to vector<2x8x8xbf16>
    %235 = arith.truncf %220 : vector<2x8x16xf32> to vector<2x8x16xbf16>
    "tpu.trace_start"() <{level = 10 : i32, message = "bqk,bkd->bqd"}> : () -> ()
    %cst_87 = arith.constant dense<0.000000e+00> : vector<2x8x16xf32>
    %236 = tpu.matmul %234, %235, %cst_87 {dimension_numbers = #tpu.dot_dimension_numbers<[2], [1], [1], [2], [0, 0, 0, 1, 1, 2], [0], [0]>} : vector<2x8x8xbf16>, vector<2x8x16xbf16>, vector<2x8x16xf32> -> vector<2x8x16xf32>
    "tpu.trace_stop"() : () -> ()
    %237 = vector.extract_strided_slice %179 {offsets = [0, 0, 48], sizes = [2, 8, 16], strides = [1, 1, 1]} : vector<2x8x192xf32> to vector<2x8x16xf32>
    %238 = vector.extract_strided_slice %179 {offsets = [0, 0, 112], sizes = [2, 8, 16], strides = [1, 1, 1]} : vector<2x8x192xf32> to vector<2x8x16xf32>
    %239 = vector.extract_strided_slice %179 {offsets = [0, 0, 176], sizes = [2, 8, 16], strides = [1, 1, 1]} : vector<2x8x192xf32> to vector<2x8x16xf32>
    %240 = arith.truncf %237 : vector<2x8x16xf32> to vector<2x8x16xbf16>
    %241 = arith.truncf %238 : vector<2x8x16xf32> to vector<2x8x16xbf16>
    "tpu.trace_start"() <{level = 10 : i32, message = "bqd,bkd->bqk"}> : () -> ()
    %cst_88 = arith.constant dense<0.000000e+00> : vector<2x8x8xf32>
    %242 = tpu.matmul %240, %241, %cst_88 {dimension_numbers = #tpu.dot_dimension_numbers<[2], [2], [1], [1], [0, 0, 0, 1, 1, 1], [0], [0]>} : vector<2x8x16xbf16>, vector<2x8x16xbf16>, vector<2x8x8xf32> -> vector<2x8x8xf32>
    "tpu.trace_stop"() : () -> ()
    %cst_89 = arith.constant dense<0xFF800000> : vector<2x8xf32>
    %243 = vector.multi_reduction <maximumf>, %242, %cst_89 [2] : vector<2x8x8xf32> to vector<2x8xf32>
    %244 = vector.shape_cast %243 : vector<2x8xf32> to vector<2x8x1xf32>
    %245 = vector.broadcast %244 : vector<2x8x1xf32> to vector<2x8x8xf32>
    %246 = arith.subf %242, %245 : vector<2x8x8xf32>
    %247 = math.exp %246 : vector<2x8x8xf32>
    %cst_90 = arith.constant dense<0.000000e+00> : vector<2x8xf32>
    %248 = vector.multi_reduction <add>, %247, %cst_90 [2] : vector<2x8x8xf32> to vector<2x8xf32>
    %249 = vector.shape_cast %248 : vector<2x8xf32> to vector<2x8x1xf32>
    %250 = tpu.reciprocal %249 {approx = true} : vector<2x8x1xf32> -> vector<2x8x1xf32>
    %251 = vector.broadcast %250 : vector<2x8x1xf32> to vector<2x8x8xf32>
    %252 = arith.mulf %247, %251 : vector<2x8x8xf32>
    %253 = arith.truncf %252 : vector<2x8x8xf32> to vector<2x8x8xbf16>
    %254 = arith.truncf %239 : vector<2x8x16xf32> to vector<2x8x16xbf16>
    "tpu.trace_start"() <{level = 10 : i32, message = "bqk,bkd->bqd"}> : () -> ()
    %cst_91 = arith.constant dense<0.000000e+00> : vector<2x8x16xf32>
    %255 = tpu.matmul %253, %254, %cst_91 {dimension_numbers = #tpu.dot_dimension_numbers<[2], [1], [1], [2], [0, 0, 0, 1, 1, 2], [0], [0]>} : vector<2x8x8xbf16>, vector<2x8x16xbf16>, vector<2x8x16xf32> -> vector<2x8x16xf32>
    "tpu.trace_stop"() : () -> ()
    %256 = tpu.concatenate %198, %217, %236, %255 in 2 : vector<2x8x16xf32>, vector<2x8x16xf32>, vector<2x8x16xf32>, vector<2x8x16xf32> -> vector<2x8x64xf32>
    %257 = vector.shape_cast %256 : vector<2x8x64xf32> to vector<16x64xf32>
    %258 = arith.truncf %257 : vector<16x64xf32> to vector<16x64xbf16>
    %c0_92 = arith.constant 0 : index
    %c0_93 = arith.constant 0 : index
    %259 = vector.load %arg20[%c0_92, %c0_93] : memref<64x64xbf16, #tpu.memory_space<vmem>>, vector<64x64xbf16>
    %cst_94 = arith.constant dense<0.000000e+00> : vector<16x64xf32>
    %260 = tpu.matmul %258, %259, %cst_94 {dimension_numbers = #tpu.dot_dimension_numbers<[1], [0], [0], [1], [0, 0, 1, 1], [], []>} : vector<16x64xbf16>, vector<64x64xbf16>, vector<16x64xf32> -> vector<16x64xf32>
    %c0_95 = arith.constant 0 : index
    %c0_96 = arith.constant 0 : index
    %261 = vector.load %arg21[%c0_95, %c0_96] : memref<1x64xf32, #tpu.memory_space<vmem>>, vector<1x64xf32>
    %262 = vector.broadcast %261 : vector<1x64xf32> to vector<16x64xf32>
    %263 = arith.addf %260, %262 : vector<16x64xf32>
    %264 = arith.addf %168, %263 : vector<16x64xf32>
    %cst_97 = arith.constant dense<0.000000e+00> : vector<16xf32>
    %265 = vector.multi_reduction <add>, %264, %cst_97 [1] : vector<16x64xf32> to vector<16xf32>
    %266 = vector.shape_cast %265 : vector<16xf32> to vector<16x1xf32>
    %cst_98 = arith.constant 6.400000e+01 : f32
    %267 = vector.broadcast %cst_98 : f32 to vector<16x1xf32>
    %268 = arith.divf %266, %267 : vector<16x1xf32>
    %269 = vector.broadcast %268 : vector<16x1xf32> to vector<16x64xf32>
    %270 = arith.subf %264, %269 : vector<16x64xf32>
    %271 = arith.mulf %270, %270 : vector<16x64xf32>
    %cst_99 = arith.constant dense<0.000000e+00> : vector<16xf32>
    %272 = vector.multi_reduction <add>, %271, %cst_99 [1] : vector<16x64xf32> to vector<16xf32>
    %273 = vector.shape_cast %272 : vector<16xf32> to vector<16x1xf32>
    %cst_100 = arith.constant 6.400000e+01 : f32
    %274 = vector.broadcast %cst_100 : f32 to vector<16x1xf32>
    %275 = arith.divf %273, %274 : vector<16x1xf32>
    %276 = vector.broadcast %268 : vector<16x1xf32> to vector<16x64xf32>
    %277 = arith.subf %264, %276 : vector<16x64xf32>
    %cst_101 = arith.constant 9.99999974E-6 : f32
    %278 = vector.broadcast %cst_101 : f32 to vector<16x1xf32>
    %279 = arith.addf %275, %278 : vector<16x1xf32>
    %280 = math.rsqrt %279 : vector<16x1xf32>
    %281 = vector.broadcast %280 : vector<16x1xf32> to vector<16x64xf32>
    %282 = arith.mulf %277, %281 : vector<16x64xf32>
    %283 = vector.broadcast %169 : vector<1x64xf32> to vector<16x64xf32>
    %284 = arith.mulf %282, %283 : vector<16x64xf32>
    %285 = vector.broadcast %170 : vector<1x64xf32> to vector<16x64xf32>
    %286 = arith.addf %284, %285 : vector<16x64xf32>
    %287 = arith.truncf %286 : vector<16x64xf32> to vector<16x64xbf16>
    %c0_102 = arith.constant 0 : index
    %c0_103 = arith.constant 0 : index
    %288 = vector.load %arg24[%c0_102, %c0_103] : memref<64x256xbf16, #tpu.memory_space<vmem>>, vector<64x256xbf16>
    %cst_104 = arith.constant dense<0.000000e+00> : vector<16x256xf32>
    %289 = tpu.matmul %287, %288, %cst_104 {dimension_numbers = #tpu.dot_dimension_numbers<[1], [0], [0], [1], [0, 0, 1, 1], [], []>} : vector<16x64xbf16>, vector<64x256xbf16>, vector<16x256xf32> -> vector<16x256xf32>
    %c0_105 = arith.constant 0 : index
    %c0_106 = arith.constant 0 : index
    %290 = vector.load %arg25[%c0_105, %c0_106] : memref<1x256xf32, #tpu.memory_space<vmem>>, vector<1x256xf32>
    %291 = vector.broadcast %290 : vector<1x256xf32> to vector<16x256xf32>
    %292 = arith.addf %289, %291 : vector<16x256xf32>
    %cst_107 = arith.constant 0.000000e+00 : f32
    %293 = vector.broadcast %cst_107 : f32 to vector<16x256xf32>
    %294 = arith.maximumf %292, %293 : vector<16x256xf32>
    %295 = arith.truncf %294 : vector<16x256xf32> to vector<16x256xbf16>
    %c0_108 = arith.constant 0 : index
    %c0_109 = arith.constant 0 : index
    %296 = vector.load %arg26[%c0_108, %c0_109] : memref<256x64xbf16, #tpu.memory_space<vmem>>, vector<256x64xbf16>
    %cst_110 = arith.constant dense<0.000000e+00> : vector<16x64xf32>
    %297 = tpu.matmul %295, %296, %cst_110 {dimension_numbers = #tpu.dot_dimension_numbers<[1], [0], [0], [1], [0, 0, 1, 1], [], []>} : vector<16x256xbf16>, vector<256x64xbf16>, vector<16x64xf32> -> vector<16x64xf32>
    %c0_111 = arith.constant 0 : index
    %c0_112 = arith.constant 0 : index
    %298 = vector.load %arg27[%c0_111, %c0_112] : memref<1x64xf32, #tpu.memory_space<vmem>>, vector<1x64xf32>
    %299 = vector.broadcast %298 : vector<1x64xf32> to vector<16x64xf32>
    %300 = arith.addf %297, %299 : vector<16x64xf32>
    %301 = arith.addf %286, %300 : vector<16x64xf32>
    %cst_113 = arith.constant dense<0.000000e+00> : vector<16xf32>
    %302 = vector.multi_reduction <add>, %301, %cst_113 [1] : vector<16x64xf32> to vector<16xf32>
    %303 = vector.shape_cast %302 : vector<16xf32> to vector<16x1xf32>
    %cst_114 = arith.constant 6.400000e+01 : f32
    %304 = vector.broadcast %cst_114 : f32 to vector<16x1xf32>
    %305 = arith.divf %303, %304 : vector<16x1xf32>
    %306 = vector.broadcast %305 : vector<16x1xf32> to vector<16x64xf32>
    %307 = arith.subf %301, %306 : vector<16x64xf32>
    %308 = arith.mulf %307, %307 : vector<16x64xf32>
    %cst_115 = arith.constant dense<0.000000e+00> : vector<16xf32>
    %309 = vector.multi_reduction <add>, %308, %cst_115 [1] : vector<16x64xf32> to vector<16xf32>
    %310 = vector.shape_cast %309 : vector<16xf32> to vector<16x1xf32>
    %cst_116 = arith.constant 6.400000e+01 : f32
    %311 = vector.broadcast %cst_116 : f32 to vector<16x1xf32>
    %312 = arith.divf %310, %311 : vector<16x1xf32>
    %313 = vector.broadcast %305 : vector<16x1xf32> to vector<16x64xf32>
    %314 = arith.subf %301, %313 : vector<16x64xf32>
    %cst_117 = arith.constant 9.99999974E-6 : f32
    %315 = vector.broadcast %cst_117 : f32 to vector<16x1xf32>
    %316 = arith.addf %312, %315 : vector<16x1xf32>
    %317 = math.rsqrt %316 : vector<16x1xf32>
    %318 = vector.broadcast %317 : vector<16x1xf32> to vector<16x64xf32>
    %319 = arith.mulf %314, %318 : vector<16x64xf32>
    %320 = vector.broadcast %171 : vector<1x64xf32> to vector<16x64xf32>
    %321 = arith.mulf %319, %320 : vector<16x64xf32>
    %322 = vector.broadcast %172 : vector<1x64xf32> to vector<16x64xf32>
    %323 = arith.addf %321, %322 : vector<16x64xf32>
    %c0_118 = arith.constant 0 : index
    %c0_119 = arith.constant 0 : index
    %324 = vector.load %arg2[%c0_118, %c0_119] : memref<2x16xf32, #tpu.memory_space<vmem>>, vector<2x16xf32>
    %cst_120 = arith.constant dense<0.000000e+00> : vector<2x64xf32>
    %325 = tpu.matmul %324, %323, %cst_120 {dimension_numbers = #tpu.dot_dimension_numbers<[1], [0], [0], [1], [0, 0, 1, 1], [], []>} : vector<2x16xf32>, vector<16x64xf32>, vector<2x64xf32> -> vector<2x64xf32>
    %326 = arith.truncf %325 : vector<2x64xf32> to vector<2x64xbf16>
    %c0_121 = arith.constant 0 : index
    %c0_122 = arith.constant 0 : index
    %327 = vector.load %arg30[%c0_121, %c0_122] : memref<64x128xbf16, #tpu.memory_space<vmem>>, vector<64x128xbf16>
    %cst_123 = arith.constant dense<0.000000e+00> : vector<2x128xf32>
    %328 = tpu.matmul %326, %327, %cst_123 {dimension_numbers = #tpu.dot_dimension_numbers<[1], [0], [0], [1], [0, 0, 1, 1], [], []>} : vector<2x64xbf16>, vector<64x128xbf16>, vector<2x128xf32> -> vector<2x128xf32>
    %c0_124 = arith.constant 0 : index
    %c0_125 = arith.constant 0 : index
    %329 = vector.load %arg31[%c0_124, %c0_125] : memref<1x128xf32, #tpu.memory_space<vmem>>, vector<1x128xf32>
    %330 = vector.broadcast %329 : vector<1x128xf32> to vector<2x128xf32>
    %331 = arith.addf %328, %330 : vector<2x128xf32>
    %c0_126 = arith.constant 0 : index
    %c0_127 = arith.constant 0 : index
    %332 = vector.load %arg32[%c0_126, %c0_127] : memref<2x128xf32, #tpu.memory_space<vmem>>, vector<2x128xf32>
    tpu.vector_store %arg32[%c0_126, %c0_127], %331 {strides = array<i32>} : memref<2x128xf32, #tpu.memory_space<vmem>>, vector<2x128xf32>,
    return
  }
  func.func @transform_0(%arg0: i32) -> (i32, i32, i32) {
    %c0_i32 = arith.constant 0 : i32
    %c0_i32_0 = arith.constant 0 : i32
    %c0_i32_1 = arith.constant 0 : i32
    return %arg0, %c0_i32, %c0_i32_0 : i32, i32, i32
  }
  func.func @transform_1(%arg0: i32) -> (i32, i32) {
    %c0_i32 = arith.constant 0 : i32
    %c0_i32_0 = arith.constant 0 : i32
    %c0_i32_1 = arith.constant 0 : i32
    return %c0_i32, %c0_i32_0 : i32, i32
  }
  func.func @transform_2(%arg0: i32) -> (i32, i32) {
    %c0_i32 = arith.constant 0 : i32
    %c0_i32_0 = arith.constant 0 : i32
    %c0_i32_1 = arith.constant 0 : i32
    return %c0_i32, %c0_i32_0 : i32, i32
  }
  func.func @transform_3(%arg0: i32) -> (i32, i32) {
    %c0_i32 = arith.constant 0 : i32
    %c0_i32_0 = arith.constant 0 : i32
    %c0_i32_1 = arith.constant 0 : i32
    return %c0_i32, %c0_i32_0 : i32, i32
  }
  func.func @transform_4(%arg0: i32) -> (i32, i32) {
    %c0_i32 = arith.constant 0 : i32
    %c0_i32_0 = arith.constant 0 : i32
    %c0_i32_1 = arith.constant 0 : i32
    return %c0_i32, %c0_i32_0 : i32, i32
  }
  func.func @transform_5(%arg0: i32) -> (i32, i32) {
    %c0_i32 = arith.constant 0 : i32
    %c0_i32_0 = arith.constant 0 : i32
    %c0_i32_1 = arith.constant 0 : i32
    return %c0_i32, %c0_i32_0 : i32, i32
  }
  func.func @transform_6(%arg0: i32) -> (i32, i32) {
    %c0_i32 = arith.constant 0 : i32
    %c0_i32_0 = arith.constant 0 : i32
    %c0_i32_1 = arith.constant 0 : i32
    return %c0_i32, %c0_i32_0 : i32, i32
  }
  func.func @transform_7(%arg0: i32) -> (i32, i32) {
    %c0_i32 = arith.constant 0 : i32
    %c0_i32_0 = arith.constant 0 : i32
    %c0_i32_1 = arith.constant 0 : i32
    return %c0_i32, %c0_i32_0 : i32, i32
  }
  func.func @transform_8(%arg0: i32) -> (i32, i32) {
    %c0_i32 = arith.constant 0 : i32
    %c0_i32_0 = arith.constant 0 : i32
    %c0_i32_1 = arith.constant 0 : i32
    return %c0_i32, %c0_i32_0 : i32, i32
  }
  func.func @transform_9(%arg0: i32) -> (i32, i32) {
    %c0_i32 = arith.constant 0 : i32
    %c0_i32_0 = arith.constant 0 : i32
    %c0_i32_1 = arith.constant 0 : i32
    return %c0_i32, %c0_i32_0 : i32, i32
  }
  func.func @transform_10(%arg0: i32) -> (i32, i32) {
    %c0_i32 = arith.constant 0 : i32
    %c0_i32_0 = arith.constant 0 : i32
    %c0_i32_1 = arith.constant 0 : i32
    return %c0_i32, %c0_i32_0 : i32, i32
  }
  func.func @transform_11(%arg0: i32) -> (i32, i32) {
    %c0_i32 = arith.constant 0 : i32
    %c0_i32_0 = arith.constant 0 : i32
    %c0_i32_1 = arith.constant 0 : i32
    return %c0_i32, %c0_i32_0 : i32, i32
  }
  func.func @transform_12(%arg0: i32) -> (i32, i32) {
    %c0_i32 = arith.constant 0 : i32
    %c0_i32_0 = arith.constant 0 : i32
    %c0_i32_1 = arith.constant 0 : i32
    return %c0_i32, %c0_i32_0 : i32, i32
  }
  func.func @transform_13(%arg0: i32) -> (i32, i32) {
    %c0_i32 = arith.constant 0 : i32
    %c0_i32_0 = arith.constant 0 : i32
    %c0_i32_1 = arith.constant 0 : i32
    return %c0_i32, %c0_i32_0 : i32, i32
  }
  func.func @transform_14(%arg0: i32) -> (i32, i32) {
    %c0_i32 = arith.constant 0 : i32
    %c0_i32_0 = arith.constant 0 : i32
    %c0_i32_1 = arith.constant 0 : i32
    return %c0_i32, %c0_i32_0 : i32, i32
  }
  func.func @transform_15(%arg0: i32) -> (i32, i32) {
    %c0_i32 = arith.constant 0 : i32
    %c0_i32_0 = arith.constant 0 : i32
    %c0_i32_1 = arith.constant 0 : i32
    return %c0_i32, %c0_i32_0 : i32, i32
  }
  func.func @transform_16(%arg0: i32) -> (i32, i32) {
    %c0_i32 = arith.constant 0 : i32
    %c0_i32_0 = arith.constant 0 : i32
    %c0_i32_1 = arith.constant 0 : i32
    return %c0_i32, %c0_i32_0 : i32, i32
  }
  func.func @transform_17(%arg0: i32) -> (i32, i32) {
    %c0_i32 = arith.constant 0 : i32
    %c0_i32_0 = arith.constant 0 : i32
    %c0_i32_1 = arith.constant 0 : i32
    return %c0_i32, %c0_i32_0 : i32, i32
  }
  func.func @transform_18(%arg0: i32) -> (i32, i32) {
    %c0_i32 = arith.constant 0 : i32
    %c0_i32_0 = arith.constant 0 : i32
    %c0_i32_1 = arith.constant 0 : i32
    return %c0_i32, %c0_i32_0 : i32, i32
  }
  func.func @transform_19(%arg0: i32) -> (i32, i32) {
    %c0_i32 = arith.constant 0 : i32
    %c0_i32_0 = arith.constant 0 : i32
    %c0_i32_1 = arith.constant 0 : i32
    return %c0_i32, %c0_i32_0 : i32, i32
  }
  func.func @transform_20(%arg0: i32) -> (i32, i32) {
    %c0_i32 = arith.constant 0 : i32
    %c0_i32_0 = arith.constant 0 : i32
    %c0_i32_1 = arith.constant 0 : i32
    return %c0_i32, %c0_i32_0 : i32, i32
  }
  func.func @transform_21(%arg0: i32) -> (i32, i32) {
    %c0_i32 = arith.constant 0 : i32
    %c0_i32_0 = arith.constant 0 : i32
    %c0_i32_1 = arith.constant 0 : i32
    return %c0_i32, %c0_i32_0 : i32, i32
  }
  func.func @transform_22(%arg0: i32) -> (i32, i32) {
    %c0_i32 = arith.constant 0 : i32
    %c0_i32_0 = arith.constant 0 : i32
    %c0_i32_1 = arith.constant 0 : i32
    return %c0_i32, %c0_i32_0 : i32, i32
  }
  func.func @transform_23(%arg0: i32) -> (i32, i32) {
    %c0_i32 = arith.constant 0 : i32
    %c0_i32_0 = arith.constant 0 : i32
    %c0_i32_1 = arith.constant 0 : i32
    return %c0_i32, %c0_i32_0 : i32, i32
  }
  func.func @transform_24(%arg0: i32) -> (i32, i32) {
    %c0_i32 = arith.constant 0 : i32
    %c0_i32_0 = arith.constant 0 : i32
    %c0_i32_1 = arith.constant 0 : i32
    return %c0_i32, %c0_i32_0 : i32, i32
  }
  func.func @transform_25(%arg0: i32) -> (i32, i32) {
    %c0_i32 = arith.constant 0 : i32
    %c0_i32_0 = arith.constant 0 : i32
    %c0_i32_1 = arith.constant 0 : i32
    return %c0_i32, %c0_i32_0 : i32, i32
  }
  func.func @transform_26(%arg0: i32) -> (i32, i32) {
    %c0_i32 = arith.constant 0 : i32
    %c0_i32_0 = arith.constant 0 : i32
    %c0_i32_1 = arith.constant 0 : i32
    return %c0_i32, %c0_i32_0 : i32, i32
  }
  func.func @transform_27(%arg0: i32) -> (i32, i32) {
    %c0_i32 = arith.constant 0 : i32
    %c0_i32_0 = arith.constant 0 : i32
    %c0_i32_1 = arith.constant 0 : i32
    return %c0_i32, %c0_i32_0 : i32, i32
  }
  func.func @transform_28(%arg0: i32) -> (i32, i32) {
    %c0_i32 = arith.constant 0 : i32
    %c0_i32_0 = arith.constant 0 : i32
    %c0_i32_1 = arith.constant 0 : i32
    return %c0_i32, %c0_i32_0 : i32, i32
  }
  func.func @transform_29(%arg0: i32) -> (i32, i32) {
    %c0_i32 = arith.constant 0 : i32
    %c0_i32_0 = arith.constant 0 : i32
    %c0_i32_1 = arith.constant 0 : i32
    return %c0_i32, %c0_i32_0 : i32, i32
  }
  func.func @transform_30(%arg0: i32) -> (i32, i32) {
    %c0_i32 = arith.constant 0 : i32
    %c0_i32_0 = arith.constant 0 : i32
    %c0_i32_1 = arith.constant 0 : i32
    return %c0_i32, %c0_i32_0 : i32, i32
  }
  func.func @transform_31(%arg0: i32) -> (i32, i32) {
    %c0_i32 = arith.constant 0 : i32
    %c0_i32_0 = arith.constant 0 : i32
    return %arg0, %c0_i32 : i32, i32
  }
}

</mosaic_0001>

<llo_original>
// kernel: tpu_custom_call.1
$region0: #{tpu_custom_call.1}
  #allocation0 [shape = 'u32[]', space=smem, size = 0x4, offset = 0x4, fixed_abs, tag = 'smem constant byte address 0x4 - core index']
  #allocation1 [shape = 'u32[72,128]{1,0:T(1,128)}', space=vmem, size = 0x9000, scoped, tag = 'internal scratch']
  %s0 = inlined_call_operand.smem [shape: u32[32], index: -1, kind: input, shape index: {}]
  %s1 = sld [smem:[%s0]]
  %s2 = scalar_lea.smem %s0, 1
  %s3 = sld [smem:[%s2]]
  %s4 = scalar_lea.smem %s0, 2
  %s5 = sld [smem:[%s4]]
  %s6 = scalar_lea.smem %s0, 3
  %s7 = sld [smem:[%s6]]
  %s8 = scalar_lea.smem %s0, 4
  %s9 = sld [smem:[%s8]]
  %s10 = scalar_lea.smem %s0, 5
  %s11 = sld [smem:[%s10]]
  %s12 = scalar_lea.smem %s0, 6
  %s13 = sld [smem:[%s12]]
  %s14 = scalar_lea.smem %s0, 7
  %s15 = sld [smem:[%s14]]
  %s16 = scalar_lea.smem %s0, 8
  %s17 = sld [smem:[%s16]]
  %s18 = scalar_lea.smem %s0, 9
  %s19 = sld [smem:[%s18]]
  %s20 = scalar_lea.smem %s0, 10
  %s21 = sld [smem:[%s20]]
  %s22 = scalar_lea.smem %s0, 11
  %s23 = sld [smem:[%s22]]
  %s24 = scalar_lea.smem %s0, 12
  %s25 = sld [smem:[%s24]]
  %s26 = scalar_lea.smem %s0, 13
  %s27 = sld [smem:[%s26]]
  %s28 = scalar_lea.smem %s0, 14
  %s29 = sld [smem:[%s28]]
  %s30 = scalar_lea.smem %s0, 15
  %s31 = sld [smem:[%s30]]
  %s32 = scalar_lea.smem %s0, 16
  %s33 = sld [smem:[%s32]]
  %s34 = scalar_lea.smem %s0, 17
  %s35 = sld [smem:[%s34]]
  %s36 = scalar_lea.smem %s0, 18
  %s37 = sld [smem:[%s36]]
  %s38 = scalar_lea.smem %s0, 19
  %s39 = sld [smem:[%s38]]
  %s40 = scalar_lea.smem %s0, 20
  %s41 = sld [smem:[%s40]]
  %s42 = scalar_lea.smem %s0, 21
  %s43 = sld [smem:[%s42]]
  %s44 = scalar_lea.smem %s0, 22
  %s45 = sld [smem:[%s44]]
  %s46 = scalar_lea.smem %s0, 23
  %s47 = sld [smem:[%s46]]
  %s48 = scalar_lea.smem %s0, 24
  %s49 = sld [smem:[%s48]]
  %s50 = scalar_lea.smem %s0, 25
  %s51 = sld [smem:[%s50]]
  %s52 = scalar_lea.smem %s0, 26
  %s53 = sld [smem:[%s52]]
  %s54 = scalar_lea.smem %s0, 27
  %s55 = sld [smem:[%s54]]
  %s56 = scalar_lea.smem %s0, 28
  %s57 = sld [smem:[%s56]]
  %s58 = scalar_lea.smem %s0, 29
  %s59 = sld [smem:[%s58]]
  %s60 = scalar_lea.smem %s0, 30
  %s61 = sld [smem:[%s60]]
  %s62 = scalar_lea.smem %s0, 31
  %s63 = sld [smem:[%s62]]
  %s64 = sld [smem:[#allocation0]]
  $region170: #{tpu_custom_call.1} parent=0
    _
  %s66 = ssub.s32 1, %s64
  %s67 = scalar_select 0, %s66, %s64
  $region1: #{tpu_custom_call.1} parent=0
    #allocation2 [shape = 'u8[8192]{0}', space=vmem, size = 0x2000, scoped, tag = 'input window, operand 0, single buffered']
    #allocation3 [shape = 's32[1]{0}', space=sflag, size = 0x4, scoped, tag = 'scoped memory for tpu_custom_call.1']
    #allocation4 [shape = 's32[1]{0}', space=sflag, size = 0x4, scoped, tag = 'scoped memory for tpu_custom_call.1']
    #allocation5 [shape = 'u8[1024]{0}', space=vmem, size = 0x400, scoped, tag = 'input window, operand 1, single buffered']
    #allocation6 [shape = 's32[1]{0}', space=sflag, size = 0x4, scoped, tag = 'scoped memory for tpu_custom_call.1']
    #allocation7 [shape = 'u8[4096]{0}', space=vmem, size = 0x1000, scoped, tag = 'input window, operand 2, single buffered']
    #allocation8 [shape = 'u8[512]{0}', space=vmem, size = 0x400, scoped, tag = 'input window, operand 3, single buffered']
    #allocation9 [shape = 's32[1]{0}', space=sflag, size = 0x4, scoped, tag = 'scoped memory for tpu_custom_call.1']
    #allocation10 [shape = 'u8[4096]{0}', space=vmem, size = 0x1000, scoped, tag = 'input window, operand 4, single buffered']
    #allocation11 [shape = 'u8[512]{0}', space=vmem, size = 0x400, scoped, tag = 'input window, operand 8, single buffered']
    #allocation12 [shape = 's32[1]{0}', space=sflag, size = 0x4, scoped, tag = 'scoped memory for tpu_custom_call.1']
    #allocation13 [shape = 'u8[512]{0}', space=vmem, size = 0x400, scoped, tag = 'input window, operand 9, single buffered']
    #allocation14 [shape = 'u8[512]{0}', space=vmem, size = 0x400, scoped, tag = 'input window, operand 14, single buffered']
    #allocation15 [shape = 's32[1]{0}', space=sflag, size = 0x4, scoped, tag = 'scoped memory for tpu_custom_call.1']
    #allocation16 [shape = 'u8[16384]{0}', space=vmem, size = 0x4000, scoped, tag = 'input window, operand 29, single buffered']
    #allocation17 [shape = 'u8[1024]{0}', space=vmem, size = 0x400, scoped, tag = 'output window, operand 0, single buffered']
    %68 = vsyncpa [#allocation3], 0
    %69 = vsyncpa [#allocation6], 0
    %70 = vsyncpa [#allocation9], 0
    %71 = vsyncpa [#allocation12], 0
    %72 = vsyncpa [#allocation15], 0
    %73 = vsyncpa [#allocation4], 0
    // Predicated region
    $region2: #{tpu_custom_call.1} parent=1 // pred_check
      _
    $region3: #{tpu_custom_call.1} parent=1 // pred_check_branch
      %75 = sbr.rel (0) target = $region5
    $region4: #{tpu_custom_call.1} parent=1 // pred_region
      %77 = vsyncadd [#allocation3], 0
      %s78 = sshll.u32 %s1, 4
      %s79 = int_to_ptr.hbm [resolvable:$true] %s78
      %s80 = sshll.u32 [#allocation2], 4
      %s81 = int_to_ptr.vmem [resolvable:$true] %s80
      %86 = dma.hbm_to_vmem [thread:$0]  %s79, 256, %s81, [#allocation3], 128, 128, 8
    $region5: #{tpu_custom_call.1} parent=1 // pred_fallthru
      _
    // Predicated region
    $region6: #{tpu_custom_call.1} parent=1 // pred_check
      _
    $region7: #{tpu_custom_call.1} parent=1 // pred_check_branch
      %88 = sbr.rel (0) target = $region9
    $region8: #{tpu_custom_call.1} parent=1 // pred_region
      %90 = vsyncadd [#allocation6], 0
      %s92 = sshll.u32 %s3, 4
      %s93 = int_to_ptr.hbm [resolvable:$true] %s92
      %s94 = sshll.u32 [#allocation5], 4
      %s95 = int_to_ptr.vmem [resolvable:$true] %s94
      %97 = dma.hbm_to_vmem [thread:$0]  %s93, 32, %s95, [#allocation6]
    $region9: #{tpu_custom_call.1} parent=1 // pred_fallthru
      _
    // Predicated region
    $region10: #{tpu_custom_call.1} parent=1 // pred_check
      _
    $region11: #{tpu_custom_call.1} parent=1 // pred_check_branch
      %99 = sbr.rel (0) target = $region13
    $region12: #{tpu_custom_call.1} parent=1 // pred_region
      %101 = vsyncadd [#allocation6], 0
      %s102 = sshll.u32 %s5, 4
      %s103 = int_to_ptr.hbm [resolvable:$true] %s102
      %s104 = sshll.u32 [#allocation7], 4
      %s105 = int_to_ptr.vmem [resolvable:$true] %s104
      %110 = dma.hbm_to_vmem [thread:$0]  %s103, 128, %s105, [#allocation6], 64, 64, 4
    $region13: #{tpu_custom_call.1} parent=1 // pred_fallthru
      _
    // Predicated region
    $region14: #{tpu_custom_call.1} parent=1 // pred_check
      _
    $region15: #{tpu_custom_call.1} parent=1 // pred_check_branch
      %112 = sbr.rel (0) target = $region17
    $region16: #{tpu_custom_call.1} parent=1 // pred_region
      %114 = vsyncadd [#allocation9], 0
      %s116 = sshll.u32 %s7, 4
      %s117 = int_to_ptr.hbm [resolvable:$true] %s116
      %s118 = sshll.u32 [#allocation8], 4
      %s119 = int_to_ptr.vmem [resolvable:$true] %s118
      %121 = dma.hbm_to_vmem [thread:$0]  %s117, 16, %s119, [#allocation9]
    $region17: #{tpu_custom_call.1} parent=1 // pred_fallthru
      _
    // Predicated region
    $region18: #{tpu_custom_call.1} parent=1 // pred_check
      _
    $region19: #{tpu_custom_call.1} parent=1 // pred_check_branch
      %123 = sbr.rel (0) target = $region21
    $region20: #{tpu_custom_call.1} parent=1 // pred_region
      %125 = vsyncadd [#allocation9], 0
      %s127 = sshll.u32 %s9, 4
      %s128 = int_to_ptr.hbm [resolvable:$true] %s127
      %s129 = sshll.u32 [#allocation10], 4
      %s130 = int_to_ptr.vmem [resolvable:$true] %s129
      %132 = dma.hbm_to_vmem [thread:$0]  %s128, 128, %s130, [#allocation9]
    $region21: #{tpu_custom_call.1} parent=1 // pred_fallthru
      _
    // Predicated region
    $region22: #{tpu_custom_call.1} parent=1 // pred_check
      _
    $region23: #{tpu_custom_call.1} parent=1 // pred_check_branch
      %134 = sbr.rel (0) target = $region25
    $region24: #{tpu_custom_call.1} parent=1 // pred_region
      _
    $region25: #{tpu_custom_call.1} parent=1 // pred_fallthru
      _
    // Predicated region
    $region26: #{tpu_custom_call.1} parent=1 // pred_check
      _
    $region27: #{tpu_custom_call.1} parent=1 // pred_check_branch
      %136 = sbr.rel (0) target = $region29
    $region28: #{tpu_custom_call.1} parent=1 // pred_region
      _
    $region29: #{tpu_custom_call.1} parent=1 // pred_fallthru
      _
    // Predicated region
    $region30: #{tpu_custom_call.1} parent=1 // pred_check
      _
    $region31: #{tpu_custom_call.1} parent=1 // pred_check_branch
      %138 = sbr.rel (0) target = $region33
    $region32: #{tpu_custom_call.1} parent=1 // pred_region
      _
    $region33: #{tpu_custom_call.1} parent=1 // pred_fallthru
      _
    // Predicated region
    $region34: #{tpu_custom_call.1} parent=1 // pred_check
      _
    $region35: #{tpu_custom_call.1} parent=1 // pred_check_branch
      %140 = sbr.rel (0) target = $region37
    $region36: #{tpu_custom_call.1} parent=1 // pred_region
      %142 = vsyncadd [#allocation12], 0
      %s144 = sshll.u32 %s17, 4
      %s145 = int_to_ptr.hbm [resolvable:$true] %s144
      %s146 = sshll.u32 [#allocation11], 4
      %s147 = int_to_ptr.vmem [resolvable:$true] %s146
      %149 = dma.hbm_to_vmem [thread:$0]  %s145, 16, %s147, [#allocation12]
    $region37: #{tpu_custom_call.1} parent=1 // pred_fallthru
      _
    // Predicated region
    $region38: #{tpu_custom_call.1} parent=1 // pred_check
      _
    $region39: #{tpu_custom_call.1} parent=1 // pred_check_branch
      %151 = sbr.rel (0) target = $region41
    $region40: #{tpu_custom_call.1} parent=1 // pred_region
      %153 = vsyncadd [#allocation12], 0
      %s155 = sshll.u32 %s19, 4
      %s156 = int_to_ptr.hbm [resolvable:$true] %s155
      %s157 = sshll.u32 [#allocation13], 4
      %s158 = int_to_ptr.vmem [resolvable:$true] %s157
      %160 = dma.hbm_to_vmem [thread:$0]  %s156, 16, %s158, [#allocation12]
    $region41: #{tpu_custom_call.1} parent=1 // pred_fallthru
      _
    // Predicated region
    $region42: #{tpu_custom_call.1} parent=1 // pred_check
      _
    $region43: #{tpu_custom_call.1} parent=1 // pred_check_branch
      %162 = sbr.rel (0) target = $region45
    $region44: #{tpu_custom_call.1} parent=1 // pred_region
      _
    $region45: #{tpu_custom_call.1} parent=1 // pred_fallthru
      _
    // Predicated region
    $region46: #{tpu_custom_call.1} parent=1 // pred_check
      _
    $region47: #{tpu_custom_call.1} parent=1 // pred_check_branch
      %164 = sbr.rel (0) target = $region49
    $region48: #{tpu_custom_call.1} parent=1 // pred_region
      _
    $region49: #{tpu_custom_call.1} parent=1 // pred_fallthru
      _
    // Predicated region
    $region50: #{tpu_custom_call.1} parent=1 // pred_check
      _
    $region51: #{tpu_custom_call.1} parent=1 // pred_check_branch
      %166 = sbr.rel (0) target = $region53
    $region52: #{tpu_custom_call.1} parent=1 // pred_region
      _
    $region53: #{tpu_custom_call.1} parent=1 // pred_fallthru
      _
    // Predicated region
    $region54: #{tpu_custom_call.1} parent=1 // pred_check
      _
    $region55: #{tpu_custom_call.1} parent=1 // pred_check_branch
      %168 = sbr.rel (0) target = $region57
    $region56: #{tpu_custom_call.1} parent=1 // pred_region
      _
    $region57: #{tpu_custom_call.1} parent=1 // pred_fallthru
      _
    // Predicated region
    $region58: #{tpu_custom_call.1} parent=1 // pred_check
      _
    $region59: #{tpu_custom_call.1} parent=1 // pred_check_branch
      %170 = sbr.rel (0) target = $region61
    $region60: #{tpu_custom_call.1} parent=1 // pred_region
      %172 = vsyncadd [#allocation15], 0
      %s174 = sshll.u32 %s29, 4
      %s175 = int_to_ptr.hbm [resolvable:$true] %s174
      %s176 = sshll.u32 [#allocation14], 4
      %s177 = int_to_ptr.vmem [resolvable:$true] %s176
      %179 = dma.hbm_to_vmem [thread:$0]  %s175, 16, %s177, [#allocation15]
    $region61: #{tpu_custom_call.1} parent=1 // pred_fallthru
      _
    // Predicated region
    $region62: #{tpu_custom_call.1} parent=1 // pred_check
      _
    $region63: #{tpu_custom_call.1} parent=1 // pred_check_branch
      %181 = sbr.rel (0) target = $region65
    $region64: #{tpu_custom_call.1} parent=1 // pred_region
      _
    $region65: #{tpu_custom_call.1} parent=1 // pred_fallthru
      _
    // Predicated region
    $region66: #{tpu_custom_call.1} parent=1 // pred_check
      _
    $region67: #{tpu_custom_call.1} parent=1 // pred_check_branch
      %183 = sbr.rel (0) target = $region69
    $region68: #{tpu_custom_call.1} parent=1 // pred_region
      _
    $region69: #{tpu_custom_call.1} parent=1 // pred_fallthru
      _
    // Predicated region
    $region70: #{tpu_custom_call.1} parent=1 // pred_check
      _
    $region71: #{tpu_custom_call.1} parent=1 // pred_check_branch
      %185 = sbr.rel (0) target = $region73
    $region72: #{tpu_custom_call.1} parent=1 // pred_region
      _
    $region73: #{tpu_custom_call.1} parent=1 // pred_fallthru
      _
    // Predicated region
    $region74: #{tpu_custom_call.1} parent=1 // pred_check
      _
    $region75: #{tpu_custom_call.1} parent=1 // pred_check_branch
      %187 = sbr.rel (0) target = $region77
    $region76: #{tpu_custom_call.1} parent=1 // pred_region
      _
    $region77: #{tpu_custom_call.1} parent=1 // pred_fallthru
      _
    // Predicated region
    $region78: #{tpu_custom_call.1} parent=1 // pred_check
      _
    $region79: #{tpu_custom_call.1} parent=1 // pred_check_branch
      %189 = sbr.rel (0) target = $region81
    $region80: #{tpu_custom_call.1} parent=1 // pred_region
      _
    $region81: #{tpu_custom_call.1} parent=1 // pred_fallthru
      _
    // Predicated region
    $region82: #{tpu_custom_call.1} parent=1 // pred_check
      _
    $region83: #{tpu_custom_call.1} parent=1 // pred_check_branch
      %191 = sbr.rel (0) target = $region85
    $region84: #{tpu_custom_call.1} parent=1 // pred_region
      _
    $region85: #{tpu_custom_call.1} parent=1 // pred_fallthru
      _
    // Predicated region
    $region86: #{tpu_custom_call.1} parent=1 // pred_check
      _
    $region87: #{tpu_custom_call.1} parent=1 // pred_check_branch
      %193 = sbr.rel (0) target = $region89
    $region88: #{tpu_custom_call.1} parent=1 // pred_region
      _
    $region89: #{tpu_custom_call.1} parent=1 // pred_fallthru
      _
    // Predicated region
    $region90: #{tpu_custom_call.1} parent=1 // pred_check
      _
    $region91: #{tpu_custom_call.1} parent=1 // pred_check_branch
      %195 = sbr.rel (0) target = $region93
    $region92: #{tpu_custom_call.1} parent=1 // pred_region
      _
    $region93: #{tpu_custom_call.1} parent=1 // pred_fallthru
      _
    // Predicated region
    $region94: #{tpu_custom_call.1} parent=1 // pred_check
      _
    $region95: #{tpu_custom_call.1} parent=1 // pred_check_branch
      %197 = sbr.rel (0) target = $region97
    $region96: #{tpu_custom_call.1} parent=1 // pred_region
      _
    $region97: #{tpu_custom_call.1} parent=1 // pred_fallthru
      _
    // Predicated region
    $region98: #{tpu_custom_call.1} parent=1 // pred_check
      _
    $region99: #{tpu_custom_call.1} parent=1 // pred_check_branch
      %199 = sbr.rel (0) target = $region101
    $region100: #{tpu_custom_call.1} parent=1 // pred_region
      _
    $region101: #{tpu_custom_call.1} parent=1 // pred_fallthru
      _
    // Predicated region
    $region102: #{tpu_custom_call.1} parent=1 // pred_check
      _
    $region103: #{tpu_custom_call.1} parent=1 // pred_check_branch
      %201 = sbr.rel (0) target = $region105
    $region104: #{tpu_custom_call.1} parent=1 // pred_region
      _
    $region105: #{tpu_custom_call.1} parent=1 // pred_fallthru
      _
    // Predicated region
    $region106: #{tpu_custom_call.1} parent=1 // pred_check
      _
    $region107: #{tpu_custom_call.1} parent=1 // pred_check_branch
      %203 = sbr.rel (0) target = $region109
    $region108: #{tpu_custom_call.1} parent=1 // pred_region
      _
    $region109: #{tpu_custom_call.1} parent=1 // pred_fallthru
      _
    // Predicated region
    $region110: #{tpu_custom_call.1} parent=1 // pred_check
      _
    $region111: #{tpu_custom_call.1} parent=1 // pred_check_branch
      %205 = sbr.rel (0) target = $region113
    $region112: #{tpu_custom_call.1} parent=1 // pred_region
      _
    $region113: #{tpu_custom_call.1} parent=1 // pred_fallthru
      _
    // Predicated region
    $region114: #{tpu_custom_call.1} parent=1 // pred_check
      _
    $region115: #{tpu_custom_call.1} parent=1 // pred_check_branch
      %207 = sbr.rel (0) target = $region117
    $region116: #{tpu_custom_call.1} parent=1 // pred_region
      _
    $region117: #{tpu_custom_call.1} parent=1 // pred_fallthru
      _
    // Predicated region
    $region118: #{tpu_custom_call.1} parent=1 // pred_check
      _
    $region119: #{tpu_custom_call.1} parent=1 // pred_check_branch
      %209 = sbr.rel (0) target = $region121
    $region120: #{tpu_custom_call.1} parent=1 // pred_region
      %211 = vsyncadd [#allocation15], 0
      %s212 = sshll.u32 %s59, 4
      %s213 = int_to_ptr.hbm [resolvable:$true] %s212
      %s214 = sshll.u32 [#allocation16], 4
      %s215 = int_to_ptr.vmem [resolvable:$true] %s214
      %220 = dma.hbm_to_vmem [thread:$0]  %s213, 512, %s215, [#allocation15], 64, 64, 4
    $region121: #{tpu_custom_call.1} parent=1 // pred_fallthru
      _
    // Predicated region
    $region122: #{tpu_custom_call.1} parent=1 // pred_check
      _
    $region123: #{tpu_custom_call.1} parent=1 // pred_check_branch
      %222 = sbr.rel (0) target = $region125
    $region124: #{tpu_custom_call.1} parent=1 // pred_region
      _
    $region125: #{tpu_custom_call.1} parent=1 // pred_fallthru
      _
    // Predicated region
    $region126: #{tpu_custom_call.1} parent=1 // pred_check
      _
    $region127: #{tpu_custom_call.1} parent=1 // pred_check_branch
      %224 = sbr.rel (0) target = $region129
    $region128: #{tpu_custom_call.1} parent=1 // pred_region
      %226 = dma.done [#allocation3], 256
    $region129: #{tpu_custom_call.1} parent=1 // pred_fallthru
      _
    // Predicated region
    $region130: #{tpu_custom_call.1} parent=1 // pred_check
      _
    $region131: #{tpu_custom_call.1} parent=1 // pred_check_branch
      %228 = sbr.rel (0) target = $region133
    $region132: #{tpu_custom_call.1} parent=1 // pred_region
      %230 = dma.done [#allocation6], 32
    $region133: #{tpu_custom_call.1} parent=1 // pred_fallthru
      _
    // Predicated region
    $region134: #{tpu_custom_call.1} parent=1 // pred_check
      _
    $region135: #{tpu_custom_call.1} parent=1 // pred_check_branch
      %232 = sbr.rel (0) target = $region137
    $region136: #{tpu_custom_call.1} parent=1 // pred_region
      %234 = dma.done [#allocation6], 128
    $region137: #{tpu_custom_call.1} parent=1 // pred_fallthru
      _
    // Predicated region
    $region138: #{tpu_custom_call.1} parent=1 // pred_check
      _
    $region139: #{tpu_custom_call.1} parent=1 // pred_check_branch
      %236 = sbr.rel (0) target = $region141
    $region140: #{tpu_custom_call.1} parent=1 // pred_region
      %238 = dma.done [#allocation9], 16
    $region141: #{tpu_custom_call.1} parent=1 // pred_fallthru
      _
    // Predicated region
    $region142: #{tpu_custom_call.1} parent=1 // pred_check
      _
    $region143: #{tpu_custom_call.1} parent=1 // pred_check_branch
      %240 = sbr.rel (0) target = $region145
    $region144: #{tpu_custom_call.1} parent=1 // pred_region
      %242 = dma.done [#allocation9], 128
    $region145: #{tpu_custom_call.1} parent=1 // pred_fallthru
      _
    // Predicated region
    $region146: #{tpu_custom_call.1} parent=1 // pred_check
      _
    $region147: #{tpu_custom_call.1} parent=1 // pred_check_branch
      %244 = sbr.rel (0) target = $region149
    $region148: #{tpu_custom_call.1} parent=1 // pred_region
      %246 = dma.done [#allocation12], 16
    $region149: #{tpu_custom_call.1} parent=1 // pred_fallthru
      _
    // Predicated region
    $region150: #{tpu_custom_call.1} parent=1 // pred_check
      _
    $region151: #{tpu_custom_call.1} parent=1 // pred_check_branch
      %248 = sbr.rel (0) target = $region153
    $region152: #{tpu_custom_call.1} parent=1 // pred_region
      %250 = dma.done [#allocation12], 16
    $region153: #{tpu_custom_call.1} parent=1 // pred_fallthru
      _
    // Predicated region
    $region154: #{tpu_custom_call.1} parent=1 // pred_check
      _
    $region155: #{tpu_custom_call.1} parent=1 // pred_check_branch
      %252 = sbr.rel (0) target = $region157
    $region156: #{tpu_custom_call.1} parent=1 // pred_region
      %254 = dma.done [#allocation15], 16
    $region157: #{tpu_custom_call.1} parent=1 // pred_fallthru
      _
    // Predicated region
    $region158: #{tpu_custom_call.1} parent=1 // pred_check
      _
    $region159: #{tpu_custom_call.1} parent=1 // pred_check_branch
      %256 = sbr.rel (0) target = $region161
    $region160: #{tpu_custom_call.1} parent=1 // pred_region
      %258 = dma.done [#allocation15], 512
    $region161: #{tpu_custom_call.1} parent=1 // pred_fallthru
      _
    %v260 = vld [vmem:[#allocation2] sm:$0xff]
    %v261 = vld [vmem:[#allocation2 + $0x8] sm:$0xff]
    %v262 = vpack.c.bf16 %v261, %v260
    %v263 = vld [vmem:[#allocation7] sm:$0xf]
    %v264 = vld [vmem:[#allocation7 + $0x4] sm:$0xf]
    %v265 = vld [vmem:[#allocation8] sm:$0x1]
    %v267 = vperm.slane %v265, 0
    %v271 = vunpack.c.l.b16 %v263
    %v272 = vunpack.c.l.b16 %v264
    %v273 = vpack.c.b16 %v272, %v271
    %vm275 = vcmask 130048
    %v277 = vsel %vm275, %v262, 0
    %279 = vmatpush.bf16.msra.mxu0 0
    %280 = vmatpush.bf16.msra.mxu0 0
    %281 = vmatpush.bf16.msra.mxu0 0
    %282 = vmatpush.bf16.msra.mxu0 0
    %283 = vmatpush.bf16.msra.mxu0 0
    %284 = vmatpush.bf16.msra.mxu0 0
    %285 = vmatpush.bf16.msra.mxu0 0
    %286 = vmatpush.bf16.msra.mxu0 %v273
    %287 = vmatmul.bf16.gmra.mxu0 %v277
    %v288 = vpop.f32.mrf.mxu0
    %v289 = vadd.f32 %v267, %v288
    %v290 = vpop.f32.mrf.mxu0
    %v291 = vadd.f32 %v267, %v290
    %292 = vdwg.mxu0
    %v293 = vld [vmem:[#allocation10] sm:$0xff]
    %v294 = vadd.f32 %v289, %v293
    %v295 = vadd.f32 %v291, %v293
    %v296 = vld [vmem:[#allocation13] sm:$0x1]
    %v297 = vld [vmem:[%s21] sm:$0x1]
    %v298 = vld [vmem:[%s31] sm:$0x1]
    %v299 = vld [vmem:[%s33] sm:$0x1]
    %v300 = vpack.c.bf16 %v295, %v294
    %v301 = vld [vmem:[%s11] sm:$0xff]
    %v302 = vld [vmem:[%s11 + $0x8] sm:$0xff]
    %v303 = vld [vmem:[%s11 + $0x10] sm:$0xff]
    %v304 = vld [vmem:[%s11 + $0x18] sm:$0xff]
    %v305 = vld [vmem:[%s11 + $0x20] sm:$0xff]
    %v306 = vld [vmem:[%s11 + $0x28] sm:$0xff]
    %v307 = vld [vmem:[%s11 + $0x30] sm:$0xff]
    %v308 = vld [vmem:[%s11 + $0x38] sm:$0xff]
    %v309 = vld [vmem:[%s13] sm:$0x3]
    %v311 = vperm.slane %v309, 0
    %v312 = vperm.slane %v309, 1
    %v323 = vunpack.c.l.b16 %v301
    %v324 = vunpack.c.h.b16 %v301
    %v325 = vunpack.c.l.b16 %v302
    %v326 = vunpack.c.h.b16 %v302
    %v327 = vunpack.c.l.b16 %v303
    %v328 = vunpack.c.h.b16 %v303
    %v329 = vunpack.c.l.b16 %v304
    %v330 = vunpack.c.h.b16 %v304
    %v331 = vunpack.c.l.b16 %v305
    %v332 = vunpack.c.h.b16 %v305
    %v333 = vunpack.c.l.b16 %v306
    %v334 = vunpack.c.h.b16 %v306
    %v335 = vunpack.c.l.b16 %v307
    %v336 = vunpack.c.h.b16 %v307
    %v337 = vunpack.c.l.b16 %v308
    %v338 = vunpack.c.h.b16 %v308
    %v339 = vpack.c.b16 %v325, %v323
    %v340 = vpack.c.b16 %v326, %v324
    %v341 = vpack.c.b16 %v329, %v327
    %v342 = vpack.c.b16 %v330, %v328
    %v343 = vpack.c.b16 %v333, %v331
    %v344 = vpack.c.b16 %v334, %v332
    %v345 = vpack.c.b16 %v337, %v335
    %v346 = vpack.c.b16 %v338, %v336
    %vm355 = vcmask 523264
    %v357 = vsel %vm355, %v300, 0
    %359 = vmatpush.bf16.msra.mxu0 0
    %360 = vmatpush.bf16.msra.mxu0 0
    %361 = vmatpush.bf16.msra.mxu0 0
    %362 = vmatpush.bf16.msra.mxu0 0
    %363 = vmatpush.bf16.msra.mxu0 %v345
    %364 = vmatpush.bf16.msra.mxu0 %v343
    %365 = vmatpush.bf16.msra.mxu0 %v341
    %366 = vmatpush.bf16.msra.mxu0 %v339
    %367 = vmatmul.bf16.gmra.mxu0 %v357
    %v368 = vpop.f32.mrf.mxu0
    %v369 = vadd.f32 %v311, %v368
    %v370 = vpop.f32.mrf.mxu0
    %v371 = vadd.f32 %v311, %v370
    %372 = vdwg.mxu0
    %373 = vmatpush.bf16.msra.mxu0 0
    %374 = vmatpush.bf16.msra.mxu0 0
    %375 = vmatpush.bf16.msra.mxu0 0
    %376 = vmatpush.bf16.msra.mxu0 0
    %377 = vmatpush.bf16.msra.mxu0 %v346
    %378 = vmatpush.bf16.msra.mxu0 %v344
    %379 = vmatpush.bf16.msra.mxu0 %v342
    %380 = vmatpush.bf16.msra.mxu0 %v340
    %381 = vmatmul.bf16.gmra.mxu0 %v357
    %v382 = vpop.f32.mrf.mxu0
    %v383 = vadd.f32 %v312, %v382
    %v384 = vpop.f32.mrf.mxu0
    %v385 = vadd.f32 %v312, %v384
    %386 = vdwg.mxu0
    %v387 = vpack.c.bf16 %v369, %v369
    %v388 = vpack.c.bf16 %v371, %v371
    %v390 = vunpack.c.l.b16 %v387
    %v391 = vpack.c.b16 %v390, %v390
    %392 = vrot.lane.b32.xlu0 %v391, 64
    %v393 = vpop.permute.xlu0 %392
    %v395 = vsel %vm275, %v387, 0
    %v398 = vsel %vm275, %v393, 0
    %400 = vmatpush.bf16.xpose.msra.mxu0 0
    %401 = vmatpush.bf16.xpose.msra.mxu0 0
    %402 = vmatpush.bf16.xpose.msra.mxu0 0
    %403 = vmatpush.bf16.xpose.msra.mxu0 0
    %404 = vmatpush.bf16.xpose.msra.mxu0 0
    %405 = vmatpush.bf16.xpose.msra.mxu0 0
    %406 = vmatpush.bf16.xpose.msra.mxu0 0
    %407 = vmatpush.bf16.xpose.msra.mxu0 %v398
    %408 = vmatmul.bf16.gmra.mxu0 %v395
    %v409 = vpop.f32.mrf.mxu0
    %v410 = vadd.f32 0.0, %v409
    %v411 = vpop.f32.mrf.mxu0
    %412 = vdwg.mxu0
    %v414 = vunpack.c.l.b16 %v388
    %v415 = vpack.c.b16 %v414, %v414
    %416 = vrot.lane.b32.xlu0 %v415, 64
    %v417 = vpop.permute.xlu0 %416
    %v419 = vsel %vm275, %v388, 0
    %v422 = vsel %vm275, %v417, 0
    %424 = vmatpush.bf16.xpose.msra.mxu0 0
    %425 = vmatpush.bf16.xpose.msra.mxu0 0
    %426 = vmatpush.bf16.xpose.msra.mxu0 0
    %427 = vmatpush.bf16.xpose.msra.mxu0 0
    %428 = vmatpush.bf16.xpose.msra.mxu0 0
    %429 = vmatpush.bf16.xpose.msra.mxu0 0
    %430 = vmatpush.bf16.xpose.msra.mxu0 0
    %431 = vmatpush.bf16.xpose.msra.mxu0 %v422
    %432 = vmatmul.bf16.gmra.mxu0 %v419
    %v433 = vpop.f32.mrf.mxu0
    %v434 = vadd.f32 0.0, %v433
    %v435 = vpop.f32.mrf.mxu0
    %436 = vdwg.mxu0
    %vm437 = vcmask 64512
    %v438 = vsel %vm437, %v410, -inf
    %439 = vmax.xlane.f32.xlu0 %v438
    %v440 = vpop.xlane.xlu0 %439
    %v441 = vsel %vm437, %v434, -inf
    %442 = vmax.xlane.f32.xlu0 %v441
    %v443 = vpop.xlane.xlu0 %442
    %v444 = vsub.f32 %v410, %v440
    %v445 = vsub.f32 %v434, %v443
    %v446 = vmul.f32 %v444, 1.442695
    %v447 = vpow.pop %v446
    %v448 = vmul.f32 %v445, 1.442695
    %v449 = vpow.pop %v448
    %v450 = vsel %vm437, %v447, 0.0
    %451 = vadd.xlane.f32.xlu0 %v450
    %v452 = vpop.xlane.xlu0 %451
    %v453 = vsel %vm437, %v449, 0.0
    %454 = vadd.xlane.f32.xlu0 %v453
    %v455 = vpop.xlane.xlu0 %454
    %v456 = vrcp.pop %v452
    %v457 = vrcp.pop %v455
    %v458 = vmul.f32 %v447, %v456
    %v459 = vmul.f32 %v449, %v457
    %v460 = vpack.c.bf16 %v458, %v458
    %v461 = vpack.c.bf16 %v459, %v459
    %v462 = vpack.c.bf16 %v383, %v383
    %v463 = vpack.c.bf16 %v385, %v385
    %v465 = vsel %vm437, %v460, 0
    %vm467 = vcmask 1043456
    %v469 = vsel %vm467, %v462, 0
    %471 = vmatpush.bf16.msra.mxu0 0
    %472 = vmatpush.bf16.msra.mxu0 0
    %473 = vmatpush.bf16.msra.mxu0 0
    %474 = vmatpush.bf16.msra.mxu0 0
    %475 = vmatpush.bf16.msra.mxu0 0
    %476 = vmatpush.bf16.msra.mxu0 0
    %477 = vmatpush.bf16.msra.mxu0 0
    %478 = vmatpush.bf16.msra.mxu0 %v469
    %479 = vmatmul.bf16.gmra.mxu0 %v465
    %v480 = vpop.f32.mrf.mxu0
    %v481 = vadd.f32 0.0, %v480
    %v482 = vpop.f32.mrf.mxu0
    %483 = vdwg.mxu0
    %v485 = vsel %vm437, %v461, 0
    %v488 = vsel %vm467, %v463, 0
    %490 = vmatpush.bf16.msra.mxu0 0
    %491 = vmatpush.bf16.msra.mxu0 0
    %492 = vmatpush.bf16.msra.mxu0 0
    %493 = vmatpush.bf16.msra.mxu0 0
    %494 = vmatpush.bf16.msra.mxu0 0
    %495 = vmatpush.bf16.msra.mxu0 0
    %496 = vmatpush.bf16.msra.mxu0 0
    %497 = vmatpush.bf16.msra.mxu0 %v488
    %498 = vmatmul.bf16.gmra.mxu0 %v485
    %v499 = vpop.f32.mrf.mxu0
    %v500 = vadd.f32 0.0, %v499
    %v501 = vpop.f32.mrf.mxu0
    %502 = vdwg.mxu0
    %503 = vrot.lane.b32.xlu0 %v391, 112
    %v504 = vpop.permute.xlu0 %503
    %505 = vrot.lane.b32.xlu0 %v391, 48
    %v506 = vpop.permute.xlu0 %505
    %v508 = vsel %vm275, %v504, 0
    %v511 = vsel %vm275, %v506, 0
    %513 = vmatpush.bf16.xpose.msra.mxu0 0
    %514 = vmatpush.bf16.xpose.msra.mxu0 0
    %515 = vmatpush.bf16.xpose.msra.mxu0 0
    %516 = vmatpush.bf16.xpose.msra.mxu0 0
    %517 = vmatpush.bf16.xpose.msra.mxu0 0
    %518 = vmatpush.bf16.xpose.msra.mxu0 0
    %519 = vmatpush.bf16.xpose.msra.mxu0 0
    %520 = vmatpush.bf16.xpose.msra.mxu0 %v511
    %521 = vmatmul.bf16.gmra.mxu0 %v508
    %v522 = vpop.f32.mrf.mxu0
    %v523 = vadd.f32 0.0, %v522
    %v524 = vpop.f32.mrf.mxu0
    %525 = vdwg.mxu0
    %526 = vrot.lane.b32.xlu0 %v415, 112
    %v527 = vpop.permute.xlu0 %526
    %528 = vrot.lane.b32.xlu0 %v415, 48
    %v529 = vpop.permute.xlu0 %528
    %v531 = vsel %vm275, %v527, 0
    %v534 = vsel %vm275, %v529, 0
    %536 = vmatpush.bf16.xpose.msra.mxu0 0
    %537 = vmatpush.bf16.xpose.msra.mxu0 0
    %538 = vmatpush.bf16.xpose.msra.mxu0 0
    %539 = vmatpush.bf16.xpose.msra.mxu0 0
    %540 = vmatpush.bf16.xpose.msra.mxu0 0
    %541 = vmatpush.bf16.xpose.msra.mxu0 0
    %542 = vmatpush.bf16.xpose.msra.mxu0 0
    %543 = vmatpush.bf16.xpose.msra.mxu0 %v534
    %544 = vmatmul.bf16.gmra.mxu0 %v531
    %v545 = vpop.f32.mrf.mxu0
    %v546 = vadd.f32 0.0, %v545
    %v547 = vpop.f32.mrf.mxu0
    %548 = vdwg.mxu0
    %v549 = vsel %vm437, %v523, -inf
    %550 = vmax.xlane.f32.xlu0 %v549
    %v551 = vpop.xlane.xlu0 %550
    %v552 = vsel %vm437, %v546, -inf
    %553 = vmax.xlane.f32.xlu0 %v552
    %v554 = vpop.xlane.xlu0 %553
    %v555 = vsub.f32 %v523, %v551
    %v556 = vsub.f32 %v546, %v554
    %v557 = vmul.f32 %v555, 1.442695
    %v558 = vpow.pop %v557
    %v559 = vmul.f32 %v556, 1.442695
    %v560 = vpow.pop %v559
    %v561 = vsel %vm437, %v558, 0.0
    %562 = vadd.xlane.f32.xlu0 %v561
    %v563 = vpop.xlane.xlu0 %562
    %v564 = vsel %vm437, %v560, 0.0
    %565 = vadd.xlane.f32.xlu0 %v564
    %v566 = vpop.xlane.xlu0 %565
    %v567 = vrcp.pop %v563
    %v568 = vrcp.pop %v566
    %v569 = vmul.f32 %v558, %v567
    %v570 = vmul.f32 %v560, %v568
    %v571 = vpack.c.bf16 %v569, %v569
    %v572 = vpack.c.bf16 %v570, %v570
    %v574 = vunpack.c.l.b16 %v462
    %v575 = vpack.c.b16 %v574, %v574
    %576 = vrot.lane.b32.xlu0 %v575, 112
    %v577 = vpop.permute.xlu0 %576
    %v579 = vsel %vm437, %v571, 0
    %v582 = vsel %vm467, %v577, 0
    %584 = vmatpush.bf16.msra.mxu0 0
    %585 = vmatpush.bf16.msra.mxu0 0
    %586 = vmatpush.bf16.msra.mxu0 0
    %587 = vmatpush.bf16.msra.mxu0 0
    %588 = vmatpush.bf16.msra.mxu0 0
    %589 = vmatpush.bf16.msra.mxu0 0
    %590 = vmatpush.bf16.msra.mxu0 0
    %591 = vmatpush.bf16.msra.mxu0 %v582
    %592 = vmatmul.bf16.gmra.mxu0 %v579
    %v593 = vpop.f32.mrf.mxu0
    %v594 = vadd.f32 0.0, %v593
    %v595 = vpop.f32.mrf.mxu0
    %596 = vdwg.mxu0
    %v598 = vunpack.c.l.b16 %v463
    %v599 = vpack.c.b16 %v598, %v598
    %600 = vrot.lane.b32.xlu0 %v599, 112
    %v601 = vpop.permute.xlu0 %600
    %v603 = vsel %vm437, %v572, 0
    %v606 = vsel %vm467, %v601, 0
    %608 = vmatpush.bf16.msra.mxu0 0
    %609 = vmatpush.bf16.msra.mxu0 0
    %610 = vmatpush.bf16.msra.mxu0 0
    %611 = vmatpush.bf16.msra.mxu0 0
    %612 = vmatpush.bf16.msra.mxu0 0
    %613 = vmatpush.bf16.msra.mxu0 0
    %614 = vmatpush.bf16.msra.mxu0 0
    %615 = vmatpush.bf16.msra.mxu0 %v606
    %616 = vmatmul.bf16.gmra.mxu0 %v603
    %v617 = vpop.f32.mrf.mxu0
    %v618 = vadd.f32 0.0, %v617
    %v619 = vpop.f32.mrf.mxu0
    %620 = vdwg.mxu0
    %621 = vrot.lane.b32.xlu0 %v391, 96
    %v622 = vpop.permute.xlu0 %621
    %623 = vrot.lane.b32.xlu0 %v391, 32
    %v624 = vpop.permute.xlu0 %623
    %v626 = vsel %vm275, %v622, 0
    %v629 = vsel %vm275, %v624, 0
    %631 = vmatpush.bf16.xpose.msra.mxu0 0
    %632 = vmatpush.bf16.xpose.msra.mxu0 0
    %633 = vmatpush.bf16.xpose.msra.mxu0 0
    %634 = vmatpush.bf16.xpose.msra.mxu0 0
    %635 = vmatpush.bf16.xpose.msra.mxu0 0
    %636 = vmatpush.bf16.xpose.msra.mxu0 0
    %637 = vmatpush.bf16.xpose.msra.mxu0 0
    %638 = vmatpush.bf16.xpose.msra.mxu0 %v629
    %639 = vmatmul.bf16.gmra.mxu0 %v626
    %v640 = vpop.f32.mrf.mxu0
    %v641 = vadd.f32 0.0, %v640
    %v642 = vpop.f32.mrf.mxu0
    %643 = vdwg.mxu0
    %644 = vrot.lane.b32.xlu0 %v415, 96
    %v645 = vpop.permute.xlu0 %644
    %646 = vrot.lane.b32.xlu0 %v415, 32
    %v647 = vpop.permute.xlu0 %646
    %v649 = vsel %vm275, %v645, 0
    %v652 = vsel %vm275, %v647, 0
    %654 = vmatpush.bf16.xpose.msra.mxu0 0
    %655 = vmatpush.bf16.xpose.msra.mxu0 0
    %656 = vmatpush.bf16.xpose.msra.mxu0 0
    %657 = vmatpush.bf16.xpose.msra.mxu0 0
    %658 = vmatpush.bf16.xpose.msra.mxu0 0
    %659 = vmatpush.bf16.xpose.msra.mxu0 0
    %660 = vmatpush.bf16.xpose.msra.mxu0 0
    %661 = vmatpush.bf16.xpose.msra.mxu0 %v652
    %662 = vmatmul.bf16.gmra.mxu0 %v649
    %v663 = vpop.f32.mrf.mxu0
    %v664 = vadd.f32 0.0, %v663
    %v665 = vpop.f32.mrf.mxu0
    %666 = vdwg.mxu0
    %v667 = vsel %vm437, %v641, -inf
    %668 = vmax.xlane.f32.xlu0 %v667
    %v669 = vpop.xlane.xlu0 %668
    %v670 = vsel %vm437, %v664, -inf
    %671 = vmax.xlane.f32.xlu0 %v670
    %v672 = vpop.xlane.xlu0 %671
    %v673 = vsub.f32 %v641, %v669
    %v674 = vsub.f32 %v664, %v672
    %v675 = vmul.f32 %v673, 1.442695
    %v676 = vpow.pop %v675
    %v677 = vmul.f32 %v674, 1.442695
    %v678 = vpow.pop %v677
    %v679 = vsel %vm437, %v676, 0.0
    %680 = vadd.xlane.f32.xlu0 %v679
    %v681 = vpop.xlane.xlu0 %680
    %v682 = vsel %vm437, %v678, 0.0
    %683 = vadd.xlane.f32.xlu0 %v682
    %v684 = vpop.xlane.xlu0 %683
    %v685 = vrcp.pop %v681
    %v686 = vrcp.pop %v684
    %v687 = vmul.f32 %v676, %v685
    %v688 = vmul.f32 %v678, %v686
    %v689 = vpack.c.bf16 %v687, %v687
    %v690 = vpack.c.bf16 %v688, %v688
    %691 = vrot.lane.b32.xlu0 %v575, 96
    %v692 = vpop.permute.xlu0 %691
    %v694 = vsel %vm437, %v689, 0
    %v697 = vsel %vm467, %v692, 0
    %699 = vmatpush.bf16.msra.mxu0 0
    %700 = vmatpush.bf16.msra.mxu0 0
    %701 = vmatpush.bf16.msra.mxu0 0
    %702 = vmatpush.bf16.msra.mxu0 0
    %703 = vmatpush.bf16.msra.mxu0 0
    %704 = vmatpush.bf16.msra.mxu0 0
    %705 = vmatpush.bf16.msra.mxu0 0
    %706 = vmatpush.bf16.msra.mxu0 %v697
    %707 = vmatmul.bf16.gmra.mxu0 %v694
    %v708 = vpop.f32.mrf.mxu0
    %v709 = vadd.f32 0.0, %v708
    %v710 = vpop.f32.mrf.mxu0
    %711 = vdwg.mxu0
    %712 = vrot.lane.b32.xlu0 %v599, 96
    %v713 = vpop.permute.xlu0 %712
    %v715 = vsel %vm437, %v690, 0
    %v718 = vsel %vm467, %v713, 0
    %720 = vmatpush.bf16.msra.mxu0 0
    %721 = vmatpush.bf16.msra.mxu0 0
    %722 = vmatpush.bf16.msra.mxu0 0
    %723 = vmatpush.bf16.msra.mxu0 0
    %724 = vmatpush.bf16.msra.mxu0 0
    %725 = vmatpush.bf16.msra.mxu0 0
    %726 = vmatpush.bf16.msra.mxu0 0
    %727 = vmatpush.bf16.msra.mxu0 %v718
    %728 = vmatmul.bf16.gmra.mxu0 %v715
    %v729 = vpop.f32.mrf.mxu0
    %v730 = vadd.f32 0.0, %v729
    %v731 = vpop.f32.mrf.mxu0
    %732 = vdwg.mxu0
    %733 = vrot.lane.b32.xlu0 %v391, 80
    %v734 = vpop.permute.xlu0 %733
    %735 = vrot.lane.b32.xlu0 %v391, 16
    %v736 = vpop.permute.xlu0 %735
    %v738 = vsel %vm275, %v734, 0
    %v741 = vsel %vm275, %v736, 0
    %743 = vmatpush.bf16.xpose.msra.mxu0 0
    %744 = vmatpush.bf16.xpose.msra.mxu0 0
    %745 = vmatpush.bf16.xpose.msra.mxu0 0
    %746 = vmatpush.bf16.xpose.msra.mxu0 0
    %747 = vmatpush.bf16.xpose.msra.mxu0 0
    %748 = vmatpush.bf16.xpose.msra.mxu0 0
    %749 = vmatpush.bf16.xpose.msra.mxu0 0
    %750 = vmatpush.bf16.xpose.msra.mxu0 %v741
    %751 = vmatmul.bf16.gmra.mxu0 %v738
    %v752 = vpop.f32.mrf.mxu0
    %v753 = vadd.f32 0.0, %v752
    %v754 = vpop.f32.mrf.mxu0
    %755 = vdwg.mxu0
    %756 = vrot.lane.b32.xlu0 %v415, 80
    %v757 = vpop.permute.xlu0 %756
    %758 = vrot.lane.b32.xlu0 %v415, 16
    %v759 = vpop.permute.xlu0 %758
    %v761 = vsel %vm275, %v757, 0
    %v764 = vsel %vm275, %v759, 0
    %766 = vmatpush.bf16.xpose.msra.mxu0 0
    %767 = vmatpush.bf16.xpose.msra.mxu0 0
    %768 = vmatpush.bf16.xpose.msra.mxu0 0
    %769 = vmatpush.bf16.xpose.msra.mxu0 0
    %770 = vmatpush.bf16.xpose.msra.mxu0 0
    %771 = vmatpush.bf16.xpose.msra.mxu0 0
    %772 = vmatpush.bf16.xpose.msra.mxu0 0
    %773 = vmatpush.bf16.xpose.msra.mxu0 %v764
    %774 = vmatmul.bf16.gmra.mxu0 %v761
    %v775 = vpop.f32.mrf.mxu0
    %v776 = vadd.f32 0.0, %v775
    %v777 = vpop.f32.mrf.mxu0
    %778 = vdwg.mxu0
    %v779 = vsel %vm437, %v753, -inf
    %780 = vmax.xlane.f32.xlu0 %v779
    %v781 = vpop.xlane.xlu0 %780
    %v782 = vsel %vm437, %v776, -inf
    %783 = vmax.xlane.f32.xlu0 %v782
    %v784 = vpop.xlane.xlu0 %783
    %v785 = vsub.f32 %v753, %v781
    %v786 = vsub.f32 %v776, %v784
    %v787 = vmul.f32 %v785, 1.442695
    %v788 = vpow.pop %v787
    %v789 = vmul.f32 %v786, 1.442695
    %v790 = vpow.pop %v789
    %v791 = vsel %vm437, %v788, 0.0
    %792 = vadd.xlane.f32.xlu0 %v791
    %v793 = vpop.xlane.xlu0 %792
    %v794 = vsel %vm437, %v790, 0.0
    %795 = vadd.xlane.f32.xlu0 %v794
    %v796 = vpop.xlane.xlu0 %795
    %v797 = vrcp.pop %v793
    %v798 = vrcp.pop %v796
    %v799 = vmul.f32 %v788, %v797
    %v800 = vmul.f32 %v790, %v798
    %v801 = vpack.c.bf16 %v799, %v799
    %v802 = vpack.c.bf16 %v800, %v800
    %803 = vrot.lane.b32.xlu0 %v575, 80
    %v804 = vpop.permute.xlu0 %803
    %v806 = vsel %vm437, %v801, 0
    %v809 = vsel %vm467, %v804, 0
    %811 = vmatpush.bf16.msra.mxu0 0
    %812 = vmatpush.bf16.msra.mxu0 0
    %813 = vmatpush.bf16.msra.mxu0 0
    %814 = vmatpush.bf16.msra.mxu0 0
    %815 = vmatpush.bf16.msra.mxu0 0
    %816 = vmatpush.bf16.msra.mxu0 0
    %817 = vmatpush.bf16.msra.mxu0 0
    %818 = vmatpush.bf16.msra.mxu0 %v809
    %819 = vmatmul.bf16.gmra.mxu0 %v806
    %v820 = vpop.f32.mrf.mxu0
    %v821 = vadd.f32 0.0, %v820
    %v822 = vpop.f32.mrf.mxu0
    %823 = vdwg.mxu0
    %824 = vrot.lane.b32.xlu0 %v599, 80
    %v825 = vpop.permute.xlu0 %824
    %v827 = vsel %vm437, %v802, 0
    %v830 = vsel %vm467, %v825, 0
    %832 = vmatpush.bf16.msra.mxu0 0
    %833 = vmatpush.bf16.msra.mxu0 0
    %834 = vmatpush.bf16.msra.mxu0 0
    %835 = vmatpush.bf16.msra.mxu0 0
    %836 = vmatpush.bf16.msra.mxu0 0
    %837 = vmatpush.bf16.msra.mxu0 0
    %838 = vmatpush.bf16.msra.mxu0 0
    %839 = vmatpush.bf16.msra.mxu0 %v830
    %840 = vmatmul.bf16.gmra.mxu0 %v827
    %v841 = vpop.f32.mrf.mxu0
    %v842 = vadd.f32 0.0, %v841
    %v843 = vpop.f32.mrf.mxu0
    %844 = vdwg.mxu0
    %847 = vrot.lane.b32.xlu0 %v594, 16
    %v848 = vpop.permute.xlu0 %847
    %849 = vrot.lane.b32.xlu0 %v618, 16
    %v850 = vpop.permute.xlu0 %849
    %855 = vrot.lane.b32.xlu0 %v709, 32
    %v856 = vpop.permute.xlu0 %855
    %857 = vrot.lane.b32.xlu0 %v730, 32
    %v858 = vpop.permute.xlu0 %857
    %863 = vrot.lane.b32.xlu0 %v821, 48
    %v864 = vpop.permute.xlu0 %863
    %865 = vrot.lane.b32.xlu0 %v842, 48
    %v866 = vpop.permute.xlu0 %865
    %v869 = vsel %vm275, %v481, %v848
    %v870 = vsel %vm275, %v500, %v850
    %vm871 = vcmask 261120
    %v872 = vsel %vm871, %v869, %v856
    %v873 = vsel %vm871, %v870, %v858
    %vm874 = vcmask 392192
    %v875 = vsel %vm874, %v872, %v864
    %v876 = vsel %vm874, %v873, %v866
    %v877 = vpack.c.bf16 %v876, %v875
    %v878 = vld [vmem:[%s15] sm:$0xf]
    %v879 = vld [vmem:[%s15 + $0x4] sm:$0xf]
    %v880 = vld [vmem:[%s15 + $0x8] sm:$0xf]
    %v881 = vld [vmem:[%s15 + $0xc] sm:$0xf]
    %v882 = vld [vmem:[%s15 + $0x10] sm:$0xf]
    %v883 = vld [vmem:[%s15 + $0x14] sm:$0xf]
    %v884 = vld [vmem:[%s15 + $0x18] sm:$0xf]
    %v885 = vld [vmem:[%s15 + $0x1c] sm:$0xf]
    %v886 = vld [vmem:[#allocation11] sm:$0x1]
    %v888 = vperm.slane %v886, 0
    %v898 = vunpack.c.l.b16 %v878
    %v899 = vunpack.c.l.b16 %v879
    %v900 = vunpack.c.l.b16 %v880
    %v901 = vunpack.c.l.b16 %v881
    %v902 = vunpack.c.l.b16 %v882
    %v903 = vunpack.c.l.b16 %v883
    %v904 = vunpack.c.l.b16 %v884
    %v905 = vunpack.c.l.b16 %v885
    %v906 = vpack.c.b16 %v899, %v898
    %v907 = vpack.c.b16 %v901, %v900
    %v908 = vpack.c.b16 %v903, %v902
    %v909 = vpack.c.b16 %v905, %v904
    %v915 = vsel %vm355, %v877, 0
    %917 = vmatpush.bf16.msra.mxu0 0
    %918 = vmatpush.bf16.msra.mxu0 0
    %919 = vmatpush.bf16.msra.mxu0 0
    %920 = vmatpush.bf16.msra.mxu0 0
    %921 = vmatpush.bf16.msra.mxu0 %v909
    %922 = vmatpush.bf16.msra.mxu0 %v908
    %923 = vmatpush.bf16.msra.mxu0 %v907
    %924 = vmatpush.bf16.msra.mxu0 %v906
    %925 = vmatmul.bf16.gmra.mxu0 %v915
    %v926 = vpop.f32.mrf.mxu0
    %v927 = vadd.f32 %v888, %v926
    %v928 = vpop.f32.mrf.mxu0
    %v929 = vadd.f32 %v888, %v928
    %930 = vdwg.mxu0
    %v931 = vadd.f32 %v294, %v927
    %v932 = vadd.f32 %v295, %v929
    %v933 = vsel %vm355, %v931, 0.0
    %934 = vadd.xlane.f32.xlu0 %v933
    %v935 = vpop.xlane.xlu0 %934
    %v936 = vsel %vm355, %v932, 0.0
    %937 = vadd.xlane.f32.xlu0 %v936
    %v938 = vpop.xlane.xlu0 %937
    %v939 = vrcp.pop 64.0
    %v940 = vmul.f32 64.0, %v939
    %v941 = vsub.f32 1.0, %v940
    %v942 = vmul.f32 %v939, %v941
    %v943 = vadd.f32 %v939, %v942
    %vm944 = vweird.f32 %v939
    %v945 = vsel %vm944, %v939, %v943
    %v946 = vmul.f32 %v935, %v945
    %v947 = vmul.f32 %v938, %v945
    %v948 = vsub.f32 %v931, %v946
    %v949 = vsub.f32 %v932, %v947
    %v950 = vmul.f32 %v948, %v948
    %v951 = vmul.f32 %v949, %v949
    %v952 = vsel %vm355, %v950, 0.0
    %953 = vadd.xlane.f32.xlu0 %v952
    %v954 = vpop.xlane.xlu0 %953
    %v955 = vsel %vm355, %v951, 0.0
    %956 = vadd.xlane.f32.xlu0 %v955
    %v957 = vpop.xlane.xlu0 %956
    %v958 = vmul.f32 %v954, %v945
    %v959 = vmul.f32 %v957, %v945
    %v960 = vadd.f32 %v958, 1e-05
    %v961 = vadd.f32 %v959, 1e-05
    %v962 = vrsqrt.pop %v960
    %v963 = vmul.f32 %v962, %v960
    %v964 = vmul.f32 %v963, %v962
    %v965 = vmul.f32 0.5, %v964
    %v966 = vsub.f32 1.5, %v965
    %v967 = vmul.f32 %v962, %v966
    %vm968 = vweird.f32 %v960
    %vm969 = vweird.f32 %v962
    %vm970 = vmor %vm968, %vm969
    %v971 = vsel %vm970, %v962, %v967
    %v972 = vrsqrt.pop %v961
    %v973 = vmul.f32 %v972, %v961
    %v974 = vmul.f32 %v973, %v972
    %v975 = vmul.f32 0.5, %v974
    %v976 = vsub.f32 1.5, %v975
    %v977 = vmul.f32 %v972, %v976
    %vm978 = vweird.f32 %v961
    %vm979 = vweird.f32 %v972
    %vm980 = vmor %vm978, %vm979
    %v981 = vsel %vm980, %v972, %v977
    %v982 = vmul.f32 %v948, %v971
    %v983 = vmul.f32 %v949, %v981
    %v985 = vperm.slane %v296, 0
    %v987 = vmul.f32 %v982, %v985
    %v988 = vmul.f32 %v983, %v985
    %v990 = vperm.slane %v297, 0
    %v992 = vadd.f32 %v987, %v990
    %v993 = vadd.f32 %v988, %v990
    %v994 = vpack.c.bf16 %v993, %v992
    %v995 = vld [vmem:[%s23] sm:$0xff]
    %v996 = vld [vmem:[%s23 + $0x8] sm:$0xff]
    %v997 = vld [vmem:[%s23 + $0x10] sm:$0xff]
    %v998 = vld [vmem:[%s23 + $0x18] sm:$0xff]
    %v999 = vld [vmem:[%s23 + $0x20] sm:$0xff]
    %v1000 = vld [vmem:[%s23 + $0x28] sm:$0xff]
    %v1001 = vld [vmem:[%s23 + $0x30] sm:$0xff]
    %v1002 = vld [vmem:[%s23 + $0x38] sm:$0xff]
    %v1003 = vld [vmem:[%s25] sm:$0x3]
    %v1005 = vperm.slane %v1003, 0
    %v1006 = vperm.slane %v1003, 1
    %v1017 = vunpack.c.l.b16 %v995
    %v1018 = vunpack.c.h.b16 %v995
    %v1019 = vunpack.c.l.b16 %v996
    %v1020 = vunpack.c.h.b16 %v996
    %v1021 = vunpack.c.l.b16 %v997
    %v1022 = vunpack.c.h.b16 %v997
    %v1023 = vunpack.c.l.b16 %v998
    %v1024 = vunpack.c.h.b16 %v998
    %v1025 = vunpack.c.l.b16 %v999
    %v1026 = vunpack.c.h.b16 %v999
    %v1027 = vunpack.c.l.b16 %v1000
    %v1028 = vunpack.c.h.b16 %v1000
    %v1029 = vunpack.c.l.b16 %v1001
    %v1030 = vunpack.c.h.b16 %v1001
    %v1031 = vunpack.c.l.b16 %v1002
    %v1032 = vunpack.c.h.b16 %v1002
    %v1033 = vpack.c.b16 %v1019, %v1017
    %v1034 = vpack.c.b16 %v1020, %v1018
    %v1035 = vpack.c.b16 %v1023, %v1021
    %v1036 = vpack.c.b16 %v1024, %v1022
    %v1037 = vpack.c.b16 %v1027, %v1025
    %v1038 = vpack.c.b16 %v1028, %v1026
    %v1039 = vpack.c.b16 %v1031, %v1029
    %v1040 = vpack.c.b16 %v1032, %v1030
    %v1050 = vsel %vm355, %v994, 0
    %1052 = vmatpush.bf16.msra.mxu0 0
    %1053 = vmatpush.bf16.msra.mxu0 0
    %1054 = vmatpush.bf16.msra.mxu0 0
    %1055 = vmatpush.bf16.msra.mxu0 0
    %1056 = vmatpush.bf16.msra.mxu0 %v1039
    %1057 = vmatpush.bf16.msra.mxu0 %v1037
    %1058 = vmatpush.bf16.msra.mxu0 %v1035
    %1059 = vmatpush.bf16.msra.mxu0 %v1033
    %1060 = vmatmul.bf16.gmra.mxu0 %v1050
    %v1061 = vpop.f32.mrf.mxu0
    %v1062 = vadd.f32 %v1005, %v1061
    %v1063 = vpop.f32.mrf.mxu0
    %v1064 = vadd.f32 %v1005, %v1063
    %1065 = vdwg.mxu0
    %1066 = vmatpush.bf16.msra.mxu0 0
    %1067 = vmatpush.bf16.msra.mxu0 0
    %1068 = vmatpush.bf16.msra.mxu0 0
    %1069 = vmatpush.bf16.msra.mxu0 0
    %1070 = vmatpush.bf16.msra.mxu0 %v1040
    %1071 = vmatpush.bf16.msra.mxu0 %v1038
    %1072 = vmatpush.bf16.msra.mxu0 %v1036
    %1073 = vmatpush.bf16.msra.mxu0 %v1034
    %1074 = vmatmul.bf16.gmra.mxu0 %v1050
    %v1075 = vpop.f32.mrf.mxu0
    %v1076 = vadd.f32 %v1006, %v1075
    %v1077 = vpop.f32.mrf.mxu0
    %v1078 = vadd.f32 %v1006, %v1077
    %1079 = vdwg.mxu0
    %v1080 = vmax.f32 %v1062, 0.0
    %v1081 = vmax.f32 %v1076, 0.0
    %v1082 = vmax.f32 %v1064, 0.0
    %v1083 = vmax.f32 %v1078, 0.0
    %v1084 = vpack.c.bf16 %v1082, %v1080
    %v1085 = vpack.c.bf16 %v1083, %v1081
    %v1086 = vld [vmem:[%s27] sm:$0xf]
    %v1087 = vld [vmem:[%s27 + $0x4] sm:$0xf]
    %v1088 = vld [vmem:[%s27 + $0x8] sm:$0xf]
    %v1089 = vld [vmem:[%s27 + $0xc] sm:$0xf]
    %v1090 = vld [vmem:[%s27 + $0x10] sm:$0xf]
    %v1091 = vld [vmem:[%s27 + $0x14] sm:$0xf]
    %v1092 = vld [vmem:[%s27 + $0x18] sm:$0xf]
    %v1093 = vld [vmem:[%s27 + $0x1c] sm:$0xf]
    %v1094 = vld [vmem:[%s27 + $0x20] sm:$0xf]
    %v1095 = vld [vmem:[%s27 + $0x24] sm:$0xf]
    %v1096 = vld [vmem:[%s27 + $0x28] sm:$0xf]
    %v1097 = vld [vmem:[%s27 + $0x2c] sm:$0xf]
    %v1098 = vld [vmem:[%s27 + $0x30] sm:$0xf]
    %v1099 = vld [vmem:[%s27 + $0x34] sm:$0xf]
    %v1100 = vld [vmem:[%s27 + $0x38] sm:$0xf]
    %v1101 = vld [vmem:[%s27 + $0x3c] sm:$0xf]
    %v1102 = vld [vmem:[%s27 + $0x40] sm:$0xf]
    %v1103 = vld [vmem:[%s27 + $0x44] sm:$0xf]
    %v1104 = vld [vmem:[%s27 + $0x48] sm:$0xf]
    %v1105 = vld [vmem:[%s27 + $0x4c] sm:$0xf]
    %v1106 = vld [vmem:[%s27 + $0x50] sm:$0xf]
    %v1107 = vld [vmem:[%s27 + $0x54] sm:$0xf]
    %v1108 = vld [vmem:[%s27 + $0x58] sm:$0xf]
    %v1109 = vld [vmem:[%s27 + $0x5c] sm:$0xf]
    %v1110 = vld [vmem:[%s27 + $0x60] sm:$0xf]
    %v1111 = vld [vmem:[%s27 + $0x64] sm:$0xf]
    %v1112 = vld [vmem:[%s27 + $0x68] sm:$0xf]
    %v1113 = vld [vmem:[%s27 + $0x6c] sm:$0xf]
    %v1114 = vld [vmem:[%s27 + $0x70] sm:$0xf]
    %v1115 = vld [vmem:[%s27 + $0x74] sm:$0xf]
    %v1116 = vld [vmem:[%s27 + $0x78] sm:$0xf]
    %v1117 = vld [vmem:[%s27 + $0x7c] sm:$0xf]
    %v1118 = vld [vmem:[#allocation14] sm:$0x1]
    %v1120 = vperm.slane %v1118, 0
    %v1154 = vunpack.c.l.b16 %v1086
    %v1155 = vunpack.c.l.b16 %v1087
    %v1156 = vunpack.c.l.b16 %v1088
    %v1157 = vunpack.c.l.b16 %v1089
    %v1158 = vunpack.c.l.b16 %v1090
    %v1159 = vunpack.c.l.b16 %v1091
    %v1160 = vunpack.c.l.b16 %v1092
    %v1161 = vunpack.c.l.b16 %v1093
    %v1162 = vunpack.c.l.b16 %v1094
    %v1163 = vunpack.c.l.b16 %v1095
    %v1164 = vunpack.c.l.b16 %v1096
    %v1165 = vunpack.c.l.b16 %v1097
    %v1166 = vunpack.c.l.b16 %v1098
    %v1167 = vunpack.c.l.b16 %v1099
    %v1168 = vunpack.c.l.b16 %v1100
    %v1169 = vunpack.c.l.b16 %v1101
    %v1170 = vunpack.c.l.b16 %v1102
    %v1171 = vunpack.c.l.b16 %v1103
    %v1172 = vunpack.c.l.b16 %v1104
    %v1173 = vunpack.c.l.b16 %v1105
    %v1174 = vunpack.c.l.b16 %v1106
    %v1175 = vunpack.c.l.b16 %v1107
    %v1176 = vunpack.c.l.b16 %v1108
    %v1177 = vunpack.c.l.b16 %v1109
    %v1178 = vunpack.c.l.b16 %v1110
    %v1179 = vunpack.c.l.b16 %v1111
    %v1180 = vunpack.c.l.b16 %v1112
    %v1181 = vunpack.c.l.b16 %v1113
    %v1182 = vunpack.c.l.b16 %v1114
    %v1183 = vunpack.c.l.b16 %v1115
    %v1184 = vunpack.c.l.b16 %v1116
    %v1185 = vunpack.c.l.b16 %v1117
    %v1186 = vpack.c.b16 %v1155, %v1154
    %v1187 = vpack.c.b16 %v1157, %v1156
    %v1188 = vpack.c.b16 %v1159, %v1158
    %v1189 = vpack.c.b16 %v1161, %v1160
    %v1190 = vpack.c.b16 %v1163, %v1162
    %v1191 = vpack.c.b16 %v1165, %v1164
    %v1192 = vpack.c.b16 %v1167, %v1166
    %v1193 = vpack.c.b16 %v1169, %v1168
    %v1194 = vpack.c.b16 %v1171, %v1170
    %v1195 = vpack.c.b16 %v1173, %v1172
    %v1196 = vpack.c.b16 %v1175, %v1174
    %v1197 = vpack.c.b16 %v1177, %v1176
    %v1198 = vpack.c.b16 %v1179, %v1178
    %v1199 = vpack.c.b16 %v1181, %v1180
    %v1200 = vpack.c.b16 %v1183, %v1182
    %v1201 = vpack.c.b16 %v1185, %v1184
    %1218 = vmatpush.bf16.msra.mxu0 %v1193
    %1219 = vmatpush.bf16.msra.mxu0 %v1192
    %1220 = vmatpush.bf16.msra.mxu0 %v1191
    %1221 = vmatpush.bf16.msra.mxu0 %v1190
    %1222 = vmatpush.bf16.msra.mxu0 %v1189
    %1223 = vmatpush.bf16.msra.mxu0 %v1188
    %1224 = vmatpush.bf16.msra.mxu0 %v1187
    %1225 = vmatpush.bf16.msra.mxu0 %v1186
    %1226 = vmatmul.bf16.gmra.mxu0 %v1084
    %v1227 = vpop.f32.mrf.mxu0
    %v1228 = vadd.f32 %v1120, %v1227
    %v1229 = vpop.f32.mrf.mxu0
    %v1230 = vadd.f32 %v1120, %v1229
    %1231 = vdwg.mxu0
    %1232 = vmatpush.bf16.msra.mxu0 %v1201
    %1233 = vmatpush.bf16.msra.mxu0 %v1200
    %1234 = vmatpush.bf16.msra.mxu0 %v1199
    %1235 = vmatpush.bf16.msra.mxu0 %v1198
    %1236 = vmatpush.bf16.msra.mxu0 %v1197
    %1237 = vmatpush.bf16.msra.mxu0 %v1196
    %1238 = vmatpush.bf16.msra.mxu0 %v1195
    %1239 = vmatpush.bf16.msra.mxu0 %v1194
    %1240 = vmatmul.bf16.gmra.mxu0 %v1085
    %v1241 = vpop.f32.mrf.mxu0
    %v1242 = vadd.f32 %v1228, %v1241
    %v1243 = vpop.f32.mrf.mxu0
    %v1244 = vadd.f32 %v1230, %v1243
    %1245 = vdwg.mxu0
    %v1246 = vadd.f32 %v992, %v1242
    %v1247 = vadd.f32 %v993, %v1244
    %v1248 = vsel %vm355, %v1246, 0.0
    %1249 = vadd.xlane.f32.xlu0 %v1248
    %v1250 = vpop.xlane.xlu0 %1249
    %v1251 = vsel %vm355, %v1247, 0.0
    %1252 = vadd.xlane.f32.xlu0 %v1251
    %v1253 = vpop.xlane.xlu0 %1252
    %v1254 = vmul.f32 %v1250, %v945
    %v1255 = vmul.f32 %v1253, %v945
    %v1256 = vsub.f32 %v1246, %v1254
    %v1257 = vsub.f32 %v1247, %v1255
    %v1258 = vmul.f32 %v1256, %v1256
    %v1259 = vmul.f32 %v1257, %v1257
    %v1260 = vsel %vm355, %v1258, 0.0
    %1261 = vadd.xlane.f32.xlu0 %v1260
    %v1262 = vpop.xlane.xlu0 %1261
    %v1263 = vsel %vm355, %v1259, 0.0
    %1264 = vadd.xlane.f32.xlu0 %v1263
    %v1265 = vpop.xlane.xlu0 %1264
    %v1266 = vmul.f32 %v1262, %v945
    %v1267 = vmul.f32 %v1265, %v945
    %v1268 = vadd.f32 %v1266, 1e-05
    %v1269 = vadd.f32 %v1267, 1e-05
    %v1270 = vrsqrt.pop %v1268
    %v1271 = vmul.f32 %v1270, %v1268
    %v1272 = vmul.f32 %v1271, %v1270
    %v1273 = vmul.f32 0.5, %v1272
    %v1274 = vsub.f32 1.5, %v1273
    %v1275 = vmul.f32 %v1270, %v1274
    %vm1276 = vweird.f32 %v1268
    %vm1277 = vweird.f32 %v1270
    %vm1278 = vmor %vm1276, %vm1277
    %v1279 = vsel %vm1278, %v1270, %v1275
    %v1280 = vrsqrt.pop %v1269
    %v1281 = vmul.f32 %v1280, %v1269
    %v1282 = vmul.f32 %v1281, %v1280
    %v1283 = vmul.f32 0.5, %v1282
    %v1284 = vsub.f32 1.5, %v1283
    %v1285 = vmul.f32 %v1280, %v1284
    %vm1286 = vweird.f32 %v1269
    %vm1287 = vweird.f32 %v1280
    %vm1288 = vmor %vm1286, %vm1287
    %v1289 = vsel %vm1288, %v1280, %v1285
    %v1290 = vmul.f32 %v1256, %v1279
    %v1291 = vmul.f32 %v1257, %v1289
    %v1293 = vperm.slane %v298, 0
    %v1295 = vmul.f32 %v1290, %v1293
    %v1296 = vmul.f32 %v1291, %v1293
    %v1298 = vperm.slane %v299, 0
    %v1300 = vadd.f32 %v1295, %v1298
    %v1301 = vadd.f32 %v1296, %v1298
    %v1302 = vld [vmem:[%s43] sm:$0x1]
    %v1303 = vld [vmem:[%s45] sm:$0x1]
    %v1304 = vld [vmem:[%s55] sm:$0x1]
    %v1305 = vld [vmem:[%s57] sm:$0x1]
    %v1306 = vpack.c.bf16 %v1301, %v1300
    %v1307 = vld [vmem:[%s35] sm:$0xff]
    %v1308 = vld [vmem:[%s35 + $0x8] sm:$0xff]
    %v1309 = vld [vmem:[%s35 + $0x10] sm:$0xff]
    %v1310 = vld [vmem:[%s35 + $0x18] sm:$0xff]
    %v1311 = vld [vmem:[%s35 + $0x20] sm:$0xff]
    %v1312 = vld [vmem:[%s35 + $0x28] sm:$0xff]
    %v1313 = vld [vmem:[%s35 + $0x30] sm:$0xff]
    %v1314 = vld [vmem:[%s35 + $0x38] sm:$0xff]
    %v1315 = vld [vmem:[%s37] sm:$0x3]
    %v1317 = vperm.slane %v1315, 0
    %v1318 = vperm.slane %v1315, 1
    %v1329 = vunpack.c.l.b16 %v1307
    %v1330 = vunpack.c.h.b16 %v1307
    %v1331 = vunpack.c.l.b16 %v1308
    %v1332 = vunpack.c.h.b16 %v1308
    %v1333 = vunpack.c.l.b16 %v1309
    %v1334 = vunpack.c.h.b16 %v1309
    %v1335 = vunpack.c.l.b16 %v1310
    %v1336 = vunpack.c.h.b16 %v1310
    %v1337 = vunpack.c.l.b16 %v1311
    %v1338 = vunpack.c.h.b16 %v1311
    %v1339 = vunpack.c.l.b16 %v1312
    %v1340 = vunpack.c.h.b16 %v1312
    %v1341 = vunpack.c.l.b16 %v1313
    %v1342 = vunpack.c.h.b16 %v1313
    %v1343 = vunpack.c.l.b16 %v1314
    %v1344 = vunpack.c.h.b16 %v1314
    %v1345 = vpack.c.b16 %v1331, %v1329
    %v1346 = vpack.c.b16 %v1332, %v1330
    %v1347 = vpack.c.b16 %v1335, %v1333
    %v1348 = vpack.c.b16 %v1336, %v1334
    %v1349 = vpack.c.b16 %v1339, %v1337
    %v1350 = vpack.c.b16 %v1340, %v1338
    %v1351 = vpack.c.b16 %v1343, %v1341
    %v1352 = vpack.c.b16 %v1344, %v1342
    %v1362 = vsel %vm355, %v1306, 0
    %1364 = vmatpush.bf16.msra.mxu0 0
    %1365 = vmatpush.bf16.msra.mxu0 0
    %1366 = vmatpush.bf16.msra.mxu0 0
    %1367 = vmatpush.bf16.msra.mxu0 0
    %1368 = vmatpush.bf16.msra.mxu0 %v1351
    %1369 = vmatpush.bf16.msra.mxu0 %v1349
    %1370 = vmatpush.bf16.msra.mxu0 %v1347
    %1371 = vmatpush.bf16.msra.mxu0 %v1345
    %1372 = vmatmul.bf16.gmra.mxu0 %v1362
    %v1373 = vpop.f32.mrf.mxu0
    %v1374 = vadd.f32 %v1317, %v1373
    %v1375 = vpop.f32.mrf.mxu0
    %v1376 = vadd.f32 %v1317, %v1375
    %1377 = vdwg.mxu0
    %1378 = vmatpush.bf16.msra.mxu0 0
    %1379 = vmatpush.bf16.msra.mxu0 0
    %1380 = vmatpush.bf16.msra.mxu0 0
    %1381 = vmatpush.bf16.msra.mxu0 0
    %1382 = vmatpush.bf16.msra.mxu0 %v1352
    %1383 = vmatpush.bf16.msra.mxu0 %v1350
    %1384 = vmatpush.bf16.msra.mxu0 %v1348
    %1385 = vmatpush.bf16.msra.mxu0 %v1346
    %1386 = vmatmul.bf16.gmra.mxu0 %v1362
    %v1387 = vpop.f32.mrf.mxu0
    %v1388 = vadd.f32 %v1318, %v1387
    %v1389 = vpop.f32.mrf.mxu0
    %v1390 = vadd.f32 %v1318, %v1389
    %1391 = vdwg.mxu0
    %v1392 = vpack.c.bf16 %v1374, %v1374
    %v1393 = vpack.c.bf16 %v1376, %v1376
    %v1395 = vunpack.c.l.b16 %v1392
    %v1396 = vpack.c.b16 %v1395, %v1395
    %1397 = vrot.lane.b32.xlu0 %v1396, 64
    %v1398 = vpop.permute.xlu0 %1397
    %v1400 = vsel %vm275, %v1392, 0
    %v1403 = vsel %vm275, %v1398, 0
    %1405 = vmatpush.bf16.xpose.msra.mxu0 0
    %1406 = vmatpush.bf16.xpose.msra.mxu0 0
    %1407 = vmatpush.bf16.xpose.msra.mxu0 0
    %1408 = vmatpush.bf16.xpose.msra.mxu0 0
    %1409 = vmatpush.bf16.xpose.msra.mxu0 0
    %1410 = vmatpush.bf16.xpose.msra.mxu0 0
    %1411 = vmatpush.bf16.xpose.msra.mxu0 0
    %1412 = vmatpush.bf16.xpose.msra.mxu0 %v1403
    %1413 = vmatmul.bf16.gmra.mxu0 %v1400
    %v1414 = vpop.f32.mrf.mxu0
    %v1415 = vadd.f32 0.0, %v1414
    %v1416 = vpop.f32.mrf.mxu0
    %1417 = vdwg.mxu0
    %v1419 = vunpack.c.l.b16 %v1393
    %v1420 = vpack.c.b16 %v1419, %v1419
    %1421 = vrot.lane.b32.xlu0 %v1420, 64
    %v1422 = vpop.permute.xlu0 %1421
    %v1424 = vsel %vm275, %v1393, 0
    %v1427 = vsel %vm275, %v1422, 0
    %1429 = vmatpush.bf16.xpose.msra.mxu0 0
    %1430 = vmatpush.bf16.xpose.msra.mxu0 0
    %1431 = vmatpush.bf16.xpose.msra.mxu0 0
    %1432 = vmatpush.bf16.xpose.msra.mxu0 0
    %1433 = vmatpush.bf16.xpose.msra.mxu0 0
    %1434 = vmatpush.bf16.xpose.msra.mxu0 0
    %1435 = vmatpush.bf16.xpose.msra.mxu0 0
    %1436 = vmatpush.bf16.xpose.msra.mxu0 %v1427
    %1437 = vmatmul.bf16.gmra.mxu0 %v1424
    %v1438 = vpop.f32.mrf.mxu0
    %v1439 = vadd.f32 0.0, %v1438
    %v1440 = vpop.f32.mrf.mxu0
    %1441 = vdwg.mxu0
    %v1442 = vsel %vm437, %v1415, -inf
    %1443 = vmax.xlane.f32.xlu0 %v1442
    %v1444 = vpop.xlane.xlu0 %1443
    %v1445 = vsel %vm437, %v1439, -inf
    %1446 = vmax.xlane.f32.xlu0 %v1445
    %v1447 = vpop.xlane.xlu0 %1446
    %v1448 = vsub.f32 %v1415, %v1444
    %v1449 = vsub.f32 %v1439, %v1447
    %v1450 = vmul.f32 %v1448, 1.442695
    %v1451 = vpow.pop %v1450
    %v1452 = vmul.f32 %v1449, 1.442695
    %v1453 = vpow.pop %v1452
    %v1454 = vsel %vm437, %v1451, 0.0
    %1455 = vadd.xlane.f32.xlu0 %v1454
    %v1456 = vpop.xlane.xlu0 %1455
    %v1457 = vsel %vm437, %v1453, 0.0
    %1458 = vadd.xlane.f32.xlu0 %v1457
    %v1459 = vpop.xlane.xlu0 %1458
    %v1460 = vrcp.pop %v1456
    %v1461 = vrcp.pop %v1459
    %v1462 = vmul.f32 %v1451, %v1460
    %v1463 = vmul.f32 %v1453, %v1461
    %v1464 = vpack.c.bf16 %v1462, %v1462
    %v1465 = vpack.c.bf16 %v1463, %v1463
    %v1466 = vpack.c.bf16 %v1388, %v1388
    %v1467 = vpack.c.bf16 %v1390, %v1390
    %v1469 = vsel %vm437, %v1464, 0
    %v1472 = vsel %vm467, %v1466, 0
    %1474 = vmatpush.bf16.msra.mxu0 0
    %1475 = vmatpush.bf16.msra.mxu0 0
    %1476 = vmatpush.bf16.msra.mxu0 0
    %1477 = vmatpush.bf16.msra.mxu0 0
    %1478 = vmatpush.bf16.msra.mxu0 0
    %1479 = vmatpush.bf16.msra.mxu0 0
    %1480 = vmatpush.bf16.msra.mxu0 0
    %1481 = vmatpush.bf16.msra.mxu0 %v1472
    %1482 = vmatmul.bf16.gmra.mxu0 %v1469
    %v1483 = vpop.f32.mrf.mxu0
    %v1484 = vadd.f32 0.0, %v1483
    %v1485 = vpop.f32.mrf.mxu0
    %1486 = vdwg.mxu0
    %v1488 = vsel %vm437, %v1465, 0
    %v1491 = vsel %vm467, %v1467, 0
    %1493 = vmatpush.bf16.msra.mxu0 0
    %1494 = vmatpush.bf16.msra.mxu0 0
    %1495 = vmatpush.bf16.msra.mxu0 0
    %1496 = vmatpush.bf16.msra.mxu0 0
    %1497 = vmatpush.bf16.msra.mxu0 0
    %1498 = vmatpush.bf16.msra.mxu0 0
    %1499 = vmatpush.bf16.msra.mxu0 0
    %1500 = vmatpush.bf16.msra.mxu0 %v1491
    %1501 = vmatmul.bf16.gmra.mxu0 %v1488
    %v1502 = vpop.f32.mrf.mxu0
    %v1503 = vadd.f32 0.0, %v1502
    %v1504 = vpop.f32.mrf.mxu0
    %1505 = vdwg.mxu0
    %1506 = vrot.lane.b32.xlu0 %v1396, 112
    %v1507 = vpop.permute.xlu0 %1506
    %1508 = vrot.lane.b32.xlu0 %v1396, 48
    %v1509 = vpop.permute.xlu0 %1508
    %v1511 = vsel %vm275, %v1507, 0
    %v1514 = vsel %vm275, %v1509, 0
    %1516 = vmatpush.bf16.xpose.msra.mxu0 0
    %1517 = vmatpush.bf16.xpose.msra.mxu0 0
    %1518 = vmatpush.bf16.xpose.msra.mxu0 0
    %1519 = vmatpush.bf16.xpose.msra.mxu0 0
    %1520 = vmatpush.bf16.xpose.msra.mxu0 0
    %1521 = vmatpush.bf16.xpose.msra.mxu0 0
    %1522 = vmatpush.bf16.xpose.msra.mxu0 0
    %1523 = vmatpush.bf16.xpose.msra.mxu0 %v1514
    %1524 = vmatmul.bf16.gmra.mxu0 %v1511
    %v1525 = vpop.f32.mrf.mxu0
    %v1526 = vadd.f32 0.0, %v1525
    %v1527 = vpop.f32.mrf.mxu0
    %1528 = vdwg.mxu0
    %1529 = vrot.lane.b32.xlu0 %v1420, 112
    %v1530 = vpop.permute.xlu0 %1529
    %1531 = vrot.lane.b32.xlu0 %v1420, 48
    %v1532 = vpop.permute.xlu0 %1531
    %v1534 = vsel %vm275, %v1530, 0
    %v1537 = vsel %vm275, %v1532, 0
    %1539 = vmatpush.bf16.xpose.msra.mxu0 0
    %1540 = vmatpush.bf16.xpose.msra.mxu0 0
    %1541 = vmatpush.bf16.xpose.msra.mxu0 0
    %1542 = vmatpush.bf16.xpose.msra.mxu0 0
    %1543 = vmatpush.bf16.xpose.msra.mxu0 0
    %1544 = vmatpush.bf16.xpose.msra.mxu0 0
    %1545 = vmatpush.bf16.xpose.msra.mxu0 0
    %1546 = vmatpush.bf16.xpose.msra.mxu0 %v1537
    %1547 = vmatmul.bf16.gmra.mxu0 %v1534
    %v1548 = vpop.f32.mrf.mxu0
    %v1549 = vadd.f32 0.0, %v1548
    %v1550 = vpop.f32.mrf.mxu0
    %1551 = vdwg.mxu0
    %v1552 = vsel %vm437, %v1526, -inf
    %1553 = vmax.xlane.f32.xlu0 %v1552
    %v1554 = vpop.xlane.xlu0 %1553
    %v1555 = vsel %vm437, %v1549, -inf
    %1556 = vmax.xlane.f32.xlu0 %v1555
    %v1557 = vpop.xlane.xlu0 %1556
    %v1558 = vsub.f32 %v1526, %v1554
    %v1559 = vsub.f32 %v1549, %v1557
    %v1560 = vmul.f32 %v1558, 1.442695
    %v1561 = vpow.pop %v1560
    %v1562 = vmul.f32 %v1559, 1.442695
    %v1563 = vpow.pop %v1562
    %v1564 = vsel %vm437, %v1561, 0.0
    %1565 = vadd.xlane.f32.xlu0 %v1564
    %v1566 = vpop.xlane.xlu0 %1565
    %v1567 = vsel %vm437, %v1563, 0.0
    %1568 = vadd.xlane.f32.xlu0 %v1567
    %v1569 = vpop.xlane.xlu0 %1568
    %v1570 = vrcp.pop %v1566
    %v1571 = vrcp.pop %v1569
    %v1572 = vmul.f32 %v1561, %v1570
    %v1573 = vmul.f32 %v1563, %v1571
    %v1574 = vpack.c.bf16 %v1572, %v1572
    %v1575 = vpack.c.bf16 %v1573, %v1573
    %v1577 = vunpack.c.l.b16 %v1466
    %v1578 = vpack.c.b16 %v1577, %v1577
    %1579 = vrot.lane.b32.xlu0 %v1578, 112
    %v1580 = vpop.permute.xlu0 %1579
    %v1582 = vsel %vm437, %v1574, 0
    %v1585 = vsel %vm467, %v1580, 0
    %1587 = vmatpush.bf16.msra.mxu0 0
    %1588 = vmatpush.bf16.msra.mxu0 0
    %1589 = vmatpush.bf16.msra.mxu0 0
    %1590 = vmatpush.bf16.msra.mxu0 0
    %1591 = vmatpush.bf16.msra.mxu0 0
    %1592 = vmatpush.bf16.msra.mxu0 0
    %1593 = vmatpush.bf16.msra.mxu0 0
    %1594 = vmatpush.bf16.msra.mxu0 %v1585
    %1595 = vmatmul.bf16.gmra.mxu0 %v1582
    %v1596 = vpop.f32.mrf.mxu0
    %v1597 = vadd.f32 0.0, %v1596
    %v1598 = vpop.f32.mrf.mxu0
    %1599 = vdwg.mxu0
    %v1601 = vunpack.c.l.b16 %v1467
    %v1602 = vpack.c.b16 %v1601, %v1601
    %1603 = vrot.lane.b32.xlu0 %v1602, 112
    %v1604 = vpop.permute.xlu0 %1603
    %v1606 = vsel %vm437, %v1575, 0
    %v1609 = vsel %vm467, %v1604, 0
    %1611 = vmatpush.bf16.msra.mxu0 0
    %1612 = vmatpush.bf16.msra.mxu0 0
    %1613 = vmatpush.bf16.msra.mxu0 0
    %1614 = vmatpush.bf16.msra.mxu0 0
    %1615 = vmatpush.bf16.msra.mxu0 0
    %1616 = vmatpush.bf16.msra.mxu0 0
    %1617 = vmatpush.bf16.msra.mxu0 0
    %1618 = vmatpush.bf16.msra.mxu0 %v1609
    %1619 = vmatmul.bf16.gmra.mxu0 %v1606
    %v1620 = vpop.f32.mrf.mxu0
    %v1621 = vadd.f32 0.0, %v1620
    %v1622 = vpop.f32.mrf.mxu0
    %1623 = vdwg.mxu0
    %1624 = vrot.lane.b32.xlu0 %v1396, 96
    %v1625 = vpop.permute.xlu0 %1624
    %1626 = vrot.lane.b32.xlu0 %v1396, 32
    %v1627 = vpop.permute.xlu0 %1626
    %v1629 = vsel %vm275, %v1625, 0
    %v1632 = vsel %vm275, %v1627, 0
    %1634 = vmatpush.bf16.xpose.msra.mxu0 0
    %1635 = vmatpush.bf16.xpose.msra.mxu0 0
    %1636 = vmatpush.bf16.xpose.msra.mxu0 0
    %1637 = vmatpush.bf16.xpose.msra.mxu0 0
    %1638 = vmatpush.bf16.xpose.msra.mxu0 0
    %1639 = vmatpush.bf16.xpose.msra.mxu0 0
    %1640 = vmatpush.bf16.xpose.msra.mxu0 0
    %1641 = vmatpush.bf16.xpose.msra.mxu0 %v1632
    %1642 = vmatmul.bf16.gmra.mxu0 %v1629
    %v1643 = vpop.f32.mrf.mxu0
    %v1644 = vadd.f32 0.0, %v1643
    %v1645 = vpop.f32.mrf.mxu0
    %1646 = vdwg.mxu0
    %1647 = vrot.lane.b32.xlu0 %v1420, 96
    %v1648 = vpop.permute.xlu0 %1647
    %1649 = vrot.lane.b32.xlu0 %v1420, 32
    %v1650 = vpop.permute.xlu0 %1649
    %v1652 = vsel %vm275, %v1648, 0
    %v1655 = vsel %vm275, %v1650, 0
    %1657 = vmatpush.bf16.xpose.msra.mxu0 0
    %1658 = vmatpush.bf16.xpose.msra.mxu0 0
    %1659 = vmatpush.bf16.xpose.msra.mxu0 0
    %1660 = vmatpush.bf16.xpose.msra.mxu0 0
    %1661 = vmatpush.bf16.xpose.msra.mxu0 0
    %1662 = vmatpush.bf16.xpose.msra.mxu0 0
    %1663 = vmatpush.bf16.xpose.msra.mxu0 0
    %1664 = vmatpush.bf16.xpose.msra.mxu0 %v1655
    %1665 = vmatmul.bf16.gmra.mxu0 %v1652
    %v1666 = vpop.f32.mrf.mxu0
    %v1667 = vadd.f32 0.0, %v1666
    %v1668 = vpop.f32.mrf.mxu0
    %1669 = vdwg.mxu0
    %v1670 = vsel %vm437, %v1644, -inf
    %1671 = vmax.xlane.f32.xlu0 %v1670
    %v1672 = vpop.xlane.xlu0 %1671
    %v1673 = vsel %vm437, %v1667, -inf
    %1674 = vmax.xlane.f32.xlu0 %v1673
    %v1675 = vpop.xlane.xlu0 %1674
    %v1676 = vsub.f32 %v1644, %v1672
    %v1677 = vsub.f32 %v1667, %v1675
    %v1678 = vmul.f32 %v1676, 1.442695
    %v1679 = vpow.pop %v1678
    %v1680 = vmul.f32 %v1677, 1.442695
    %v1681 = vpow.pop %v1680
    %v1682 = vsel %vm437, %v1679, 0.0
    %1683 = vadd.xlane.f32.xlu0 %v1682
    %v1684 = vpop.xlane.xlu0 %1683
    %v1685 = vsel %vm437, %v1681, 0.0
    %1686 = vadd.xlane.f32.xlu0 %v1685
    %v1687 = vpop.xlane.xlu0 %1686
    %v1688 = vrcp.pop %v1684
    %v1689 = vrcp.pop %v1687
    %v1690 = vmul.f32 %v1679, %v1688
    %v1691 = vmul.f32 %v1681, %v1689
    %v1692 = vpack.c.bf16 %v1690, %v1690
    %v1693 = vpack.c.bf16 %v1691, %v1691
    %1694 = vrot.lane.b32.xlu0 %v1578, 96
    %v1695 = vpop.permute.xlu0 %1694
    %v1697 = vsel %vm437, %v1692, 0
    %v1700 = vsel %vm467, %v1695, 0
    %1702 = vmatpush.bf16.msra.mxu0 0
    %1703 = vmatpush.bf16.msra.mxu0 0
    %1704 = vmatpush.bf16.msra.mxu0 0
    %1705 = vmatpush.bf16.msra.mxu0 0
    %1706 = vmatpush.bf16.msra.mxu0 0
    %1707 = vmatpush.bf16.msra.mxu0 0
    %1708 = vmatpush.bf16.msra.mxu0 0
    %1709 = vmatpush.bf16.msra.mxu0 %v1700
    %1710 = vmatmul.bf16.gmra.mxu0 %v1697
    %v1711 = vpop.f32.mrf.mxu0
    %v1712 = vadd.f32 0.0, %v1711
    %v1713 = vpop.f32.mrf.mxu0
    %1714 = vdwg.mxu0
    %1715 = vrot.lane.b32.xlu0 %v1602, 96
    %v1716 = vpop.permute.xlu0 %1715
    %v1718 = vsel %vm437, %v1693, 0
    %v1721 = vsel %vm467, %v1716, 0
    %1723 = vmatpush.bf16.msra.mxu0 0
    %1724 = vmatpush.bf16.msra.mxu0 0
    %1725 = vmatpush.bf16.msra.mxu0 0
    %1726 = vmatpush.bf16.msra.mxu0 0
    %1727 = vmatpush.bf16.msra.mxu0 0
    %1728 = vmatpush.bf16.msra.mxu0 0
    %1729 = vmatpush.bf16.msra.mxu0 0
    %1730 = vmatpush.bf16.msra.mxu0 %v1721
    %1731 = vmatmul.bf16.gmra.mxu0 %v1718
    %v1732 = vpop.f32.mrf.mxu0
    %v1733 = vadd.f32 0.0, %v1732
    %v1734 = vpop.f32.mrf.mxu0
    %1735 = vdwg.mxu0
    %1736 = vrot.lane.b32.xlu0 %v1396, 80
    %v1737 = vpop.permute.xlu0 %1736
    %1738 = vrot.lane.b32.xlu0 %v1396, 16
    %v1739 = vpop.permute.xlu0 %1738
    %v1741 = vsel %vm275, %v1737, 0
    %v1744 = vsel %vm275, %v1739, 0
    %1746 = vmatpush.bf16.xpose.msra.mxu0 0
    %1747 = vmatpush.bf16.xpose.msra.mxu0 0
    %1748 = vmatpush.bf16.xpose.msra.mxu0 0
    %1749 = vmatpush.bf16.xpose.msra.mxu0 0
    %1750 = vmatpush.bf16.xpose.msra.mxu0 0
    %1751 = vmatpush.bf16.xpose.msra.mxu0 0
    %1752 = vmatpush.bf16.xpose.msra.mxu0 0
    %1753 = vmatpush.bf16.xpose.msra.mxu0 %v1744
    %1754 = vmatmul.bf16.gmra.mxu0 %v1741
    %v1755 = vpop.f32.mrf.mxu0
    %v1756 = vadd.f32 0.0, %v1755
    %v1757 = vpop.f32.mrf.mxu0
    %1758 = vdwg.mxu0
    %1759 = vrot.lane.b32.xlu0 %v1420, 80
    %v1760 = vpop.permute.xlu0 %1759
    %1761 = vrot.lane.b32.xlu0 %v1420, 16
    %v1762 = vpop.permute.xlu0 %1761
    %v1764 = vsel %vm275, %v1760, 0
    %v1767 = vsel %vm275, %v1762, 0
    %1769 = vmatpush.bf16.xpose.msra.mxu0 0
    %1770 = vmatpush.bf16.xpose.msra.mxu0 0
    %1771 = vmatpush.bf16.xpose.msra.mxu0 0
    %1772 = vmatpush.bf16.xpose.msra.mxu0 0
    %1773 = vmatpush.bf16.xpose.msra.mxu0 0
    %1774 = vmatpush.bf16.xpose.msra.mxu0 0
    %1775 = vmatpush.bf16.xpose.msra.mxu0 0
    %1776 = vmatpush.bf16.xpose.msra.mxu0 %v1767
    %1777 = vmatmul.bf16.gmra.mxu0 %v1764
    %v1778 = vpop.f32.mrf.mxu0
    %v1779 = vadd.f32 0.0, %v1778
    %v1780 = vpop.f32.mrf.mxu0
    %1781 = vdwg.mxu0
    %v1782 = vsel %vm437, %v1756, -inf
    %1783 = vmax.xlane.f32.xlu0 %v1782
    %v1784 = vpop.xlane.xlu0 %1783
    %v1785 = vsel %vm437, %v1779, -inf
    %1786 = vmax.xlane.f32.xlu0 %v1785
    %v1787 = vpop.xlane.xlu0 %1786
    %v1788 = vsub.f32 %v1756, %v1784
    %v1789 = vsub.f32 %v1779, %v1787
    %v1790 = vmul.f32 %v1788, 1.442695
    %v1791 = vpow.pop %v1790
    %v1792 = vmul.f32 %v1789, 1.442695
    %v1793 = vpow.pop %v1792
    %v1794 = vsel %vm437, %v1791, 0.0
    %1795 = vadd.xlane.f32.xlu0 %v1794
    %v1796 = vpop.xlane.xlu0 %1795
    %v1797 = vsel %vm437, %v1793, 0.0
    %1798 = vadd.xlane.f32.xlu0 %v1797
    %v1799 = vpop.xlane.xlu0 %1798
    %v1800 = vrcp.pop %v1796
    %v1801 = vrcp.pop %v1799
    %v1802 = vmul.f32 %v1791, %v1800
    %v1803 = vmul.f32 %v1793, %v1801
    %v1804 = vpack.c.bf16 %v1802, %v1802
    %v1805 = vpack.c.bf16 %v1803, %v1803
    %1806 = vrot.lane.b32.xlu0 %v1578, 80
    %v1807 = vpop.permute.xlu0 %1806
    %v1809 = vsel %vm437, %v1804, 0
    %v1812 = vsel %vm467, %v1807, 0
    %1814 = vmatpush.bf16.msra.mxu0 0
    %1815 = vmatpush.bf16.msra.mxu0 0
    %1816 = vmatpush.bf16.msra.mxu0 0
    %1817 = vmatpush.bf16.msra.mxu0 0
    %1818 = vmatpush.bf16.msra.mxu0 0
    %1819 = vmatpush.bf16.msra.mxu0 0
    %1820 = vmatpush.bf16.msra.mxu0 0
    %1821 = vmatpush.bf16.msra.mxu0 %v1812
    %1822 = vmatmul.bf16.gmra.mxu0 %v1809
    %v1823 = vpop.f32.mrf.mxu0
    %v1824 = vadd.f32 0.0, %v1823
    %v1825 = vpop.f32.mrf.mxu0
    %1826 = vdwg.mxu0
    %1827 = vrot.lane.b32.xlu0 %v1602, 80
    %v1828 = vpop.permute.xlu0 %1827
    %v1830 = vsel %vm437, %v1805, 0
    %v1833 = vsel %vm467, %v1828, 0
    %1835 = vmatpush.bf16.msra.mxu0 0
    %1836 = vmatpush.bf16.msra.mxu0 0
    %1837 = vmatpush.bf16.msra.mxu0 0
    %1838 = vmatpush.bf16.msra.mxu0 0
    %1839 = vmatpush.bf16.msra.mxu0 0
    %1840 = vmatpush.bf16.msra.mxu0 0
    %1841 = vmatpush.bf16.msra.mxu0 0
    %1842 = vmatpush.bf16.msra.mxu0 %v1833
    %1843 = vmatmul.bf16.gmra.mxu0 %v1830
    %v1844 = vpop.f32.mrf.mxu0
    %v1845 = vadd.f32 0.0, %v1844
    %v1846 = vpop.f32.mrf.mxu0
    %1847 = vdwg.mxu0
    %1850 = vrot.lane.b32.xlu0 %v1597, 16
    %v1851 = vpop.permute.xlu0 %1850
    %1852 = vrot.lane.b32.xlu0 %v1621, 16
    %v1853 = vpop.permute.xlu0 %1852
    %1858 = vrot.lane.b32.xlu0 %v1712, 32
    %v1859 = vpop.permute.xlu0 %1858
    %1860 = vrot.lane.b32.xlu0 %v1733, 32
    %v1861 = vpop.permute.xlu0 %1860
    %1866 = vrot.lane.b32.xlu0 %v1824, 48
    %v1867 = vpop.permute.xlu0 %1866
    %1868 = vrot.lane.b32.xlu0 %v1845, 48
    %v1869 = vpop.permute.xlu0 %1868
    %v1872 = vsel %vm275, %v1484, %v1851
    %v1873 = vsel %vm275, %v1503, %v1853
    %v1874 = vsel %vm871, %v1872, %v1859
    %v1875 = vsel %vm871, %v1873, %v1861
    %v1876 = vsel %vm874, %v1874, %v1867
    %v1877 = vsel %vm874, %v1875, %v1869
    %v1878 = vpack.c.bf16 %v1877, %v1876
    %v1879 = vld [vmem:[%s39] sm:$0xf]
    %v1880 = vld [vmem:[%s39 + $0x4] sm:$0xf]
    %v1881 = vld [vmem:[%s39 + $0x8] sm:$0xf]
    %v1882 = vld [vmem:[%s39 + $0xc] sm:$0xf]
    %v1883 = vld [vmem:[%s39 + $0x10] sm:$0xf]
    %v1884 = vld [vmem:[%s39 + $0x14] sm:$0xf]
    %v1885 = vld [vmem:[%s39 + $0x18] sm:$0xf]
    %v1886 = vld [vmem:[%s39 + $0x1c] sm:$0xf]
    %v1887 = vld [vmem:[%s41] sm:$0x1]
    %v1889 = vperm.slane %v1887, 0
    %v1899 = vunpack.c.l.b16 %v1879
    %v1900 = vunpack.c.l.b16 %v1880
    %v1901 = vunpack.c.l.b16 %v1881
    %v1902 = vunpack.c.l.b16 %v1882
    %v1903 = vunpack.c.l.b16 %v1883
    %v1904 = vunpack.c.l.b16 %v1884
    %v1905 = vunpack.c.l.b16 %v1885
    %v1906 = vunpack.c.l.b16 %v1886
    %v1907 = vpack.c.b16 %v1900, %v1899
    %v1908 = vpack.c.b16 %v1902, %v1901
    %v1909 = vpack.c.b16 %v1904, %v1903
    %v1910 = vpack.c.b16 %v1906, %v1905
    %v1916 = vsel %vm355, %v1878, 0
    %1918 = vmatpush.bf16.msra.mxu0 0
    %1919 = vmatpush.bf16.msra.mxu0 0
    %1920 = vmatpush.bf16.msra.mxu0 0
    %1921 = vmatpush.bf16.msra.mxu0 0
    %1922 = vmatpush.bf16.msra.mxu0 %v1910
    %1923 = vmatpush.bf16.msra.mxu0 %v1909
    %1924 = vmatpush.bf16.msra.mxu0 %v1908
    %1925 = vmatpush.bf16.msra.mxu0 %v1907
    %1926 = vmatmul.bf16.gmra.mxu0 %v1916
    %v1927 = vpop.f32.mrf.mxu0
    %v1928 = vadd.f32 %v1889, %v1927
    %v1929 = vpop.f32.mrf.mxu0
    %v1930 = vadd.f32 %v1889, %v1929
    %1931 = vdwg.mxu0
    %v1932 = vadd.f32 %v1300, %v1928
    %v1933 = vadd.f32 %v1301, %v1930
    %v1934 = vsel %vm355, %v1932, 0.0
    %1935 = vadd.xlane.f32.xlu0 %v1934
    %v1936 = vpop.xlane.xlu0 %1935
    %v1937 = vsel %vm355, %v1933, 0.0
    %1938 = vadd.xlane.f32.xlu0 %v1937
    %v1939 = vpop.xlane.xlu0 %1938
    %v1940 = vmul.f32 %v1936, %v945
    %v1941 = vmul.f32 %v1939, %v945
    %v1942 = vsub.f32 %v1932, %v1940
    %v1943 = vsub.f32 %v1933, %v1941
    %v1944 = vmul.f32 %v1942, %v1942
    %v1945 = vmul.f32 %v1943, %v1943
    %v1946 = vsel %vm355, %v1944, 0.0
    %1947 = vadd.xlane.f32.xlu0 %v1946
    %v1948 = vpop.xlane.xlu0 %1947
    %v1949 = vsel %vm355, %v1945, 0.0
    %1950 = vadd.xlane.f32.xlu0 %v1949
    %v1951 = vpop.xlane.xlu0 %1950
    %v1952 = vmul.f32 %v1948, %v945
    %v1953 = vmul.f32 %v1951, %v945
    %v1954 = vadd.f32 %v1952, 1e-05
    %v1955 = vadd.f32 %v1953, 1e-05
    %v1956 = vrsqrt.pop %v1954
    %v1957 = vmul.f32 %v1956, %v1954
    %v1958 = vmul.f32 %v1957, %v1956
    %v1959 = vmul.f32 0.5, %v1958
    %v1960 = vsub.f32 1.5, %v1959
    %v1961 = vmul.f32 %v1956, %v1960
    %vm1962 = vweird.f32 %v1954
    %vm1963 = vweird.f32 %v1956
    %vm1964 = vmor %vm1962, %vm1963
    %v1965 = vsel %vm1964, %v1956, %v1961
    %v1966 = vrsqrt.pop %v1955
    %v1967 = vmul.f32 %v1966, %v1955
    %v1968 = vmul.f32 %v1967, %v1966
    %v1969 = vmul.f32 0.5, %v1968
    %v1970 = vsub.f32 1.5, %v1969
    %v1971 = vmul.f32 %v1966, %v1970
    %vm1972 = vweird.f32 %v1955
    %vm1973 = vweird.f32 %v1966
    %vm1974 = vmor %vm1972, %vm1973
    %v1975 = vsel %vm1974, %v1966, %v1971
    %v1976 = vmul.f32 %v1942, %v1965
    %v1977 = vmul.f32 %v1943, %v1975
    %v1979 = vperm.slane %v1302, 0
    %v1981 = vmul.f32 %v1976, %v1979
    %v1982 = vmul.f32 %v1977, %v1979
    %v1984 = vperm.slane %v1303, 0
    %v1986 = vadd.f32 %v1981, %v1984
    %v1987 = vadd.f32 %v1982, %v1984
    %v1988 = vpack.c.bf16 %v1987, %v1986
    %v1989 = vld [vmem:[%s47] sm:$0xff]
    %v1990 = vld [vmem:[%s47 + $0x8] sm:$0xff]
    %v1991 = vld [vmem:[%s47 + $0x10] sm:$0xff]
    %v1992 = vld [vmem:[%s47 + $0x18] sm:$0xff]
    %v1993 = vld [vmem:[%s47 + $0x20] sm:$0xff]
    %v1994 = vld [vmem:[%s47 + $0x28] sm:$0xff]
    %v1995 = vld [vmem:[%s47 + $0x30] sm:$0xff]
    %v1996 = vld [vmem:[%s47 + $0x38] sm:$0xff]
    %v1997 = vld [vmem:[%s49] sm:$0x3]
    %v1999 = vperm.slane %v1997, 0
    %v2000 = vperm.slane %v1997, 1
    %v2011 = vunpack.c.l.b16 %v1989
    %v2012 = vunpack.c.h.b16 %v1989
    %v2013 = vunpack.c.l.b16 %v1990
    %v2014 = vunpack.c.h.b16 %v1990
    %v2015 = vunpack.c.l.b16 %v1991
    %v2016 = vunpack.c.h.b16 %v1991
    %v2017 = vunpack.c.l.b16 %v1992
    %v2018 = vunpack.c.h.b16 %v1992
    %v2019 = vunpack.c.l.b16 %v1993
    %v2020 = vunpack.c.h.b16 %v1993
    %v2021 = vunpack.c.l.b16 %v1994
    %v2022 = vunpack.c.h.b16 %v1994
    %v2023 = vunpack.c.l.b16 %v1995
    %v2024 = vunpack.c.h.b16 %v1995
    %v2025 = vunpack.c.l.b16 %v1996
    %v2026 = vunpack.c.h.b16 %v1996
    %v2027 = vpack.c.b16 %v2013, %v2011
    %v2028 = vpack.c.b16 %v2014, %v2012
    %v2029 = vpack.c.b16 %v2017, %v2015
    %v2030 = vpack.c.b16 %v2018, %v2016
    %v2031 = vpack.c.b16 %v2021, %v2019
    %v2032 = vpack.c.b16 %v2022, %v2020
    %v2033 = vpack.c.b16 %v2025, %v2023
    %v2034 = vpack.c.b16 %v2026, %v2024
    %v2044 = vsel %vm355, %v1988, 0
    %2046 = vmatpush.bf16.msra.mxu0 0
    %2047 = vmatpush.bf16.msra.mxu0 0
    %2048 = vmatpush.bf16.msra.mxu0 0
    %2049 = vmatpush.bf16.msra.mxu0 0
    %2050 = vmatpush.bf16.msra.mxu0 %v2033
    %2051 = vmatpush.bf16.msra.mxu0 %v2031
    %2052 = vmatpush.bf16.msra.mxu0 %v2029
    %2053 = vmatpush.bf16.msra.mxu0 %v2027
    %2054 = vmatmul.bf16.gmra.mxu0 %v2044
    %v2055 = vpop.f32.mrf.mxu0
    %v2056 = vadd.f32 %v1999, %v2055
    %v2057 = vpop.f32.mrf.mxu0
    %v2058 = vadd.f32 %v1999, %v2057
    %2059 = vdwg.mxu0
    %2060 = vmatpush.bf16.msra.mxu0 0
    %2061 = vmatpush.bf16.msra.mxu0 0
    %2062 = vmatpush.bf16.msra.mxu0 0
    %2063 = vmatpush.bf16.msra.mxu0 0
    %2064 = vmatpush.bf16.msra.mxu0 %v2034
    %2065 = vmatpush.bf16.msra.mxu0 %v2032
    %2066 = vmatpush.bf16.msra.mxu0 %v2030
    %2067 = vmatpush.bf16.msra.mxu0 %v2028
    %2068 = vmatmul.bf16.gmra.mxu0 %v2044
    %v2069 = vpop.f32.mrf.mxu0
    %v2070 = vadd.f32 %v2000, %v2069
    %v2071 = vpop.f32.mrf.mxu0
    %v2072 = vadd.f32 %v2000, %v2071
    %2073 = vdwg.mxu0
    %v2074 = vmax.f32 %v2056, 0.0
    %v2075 = vmax.f32 %v2070, 0.0
    %v2076 = vmax.f32 %v2058, 0.0
    %v2077 = vmax.f32 %v2072, 0.0
    %v2078 = vpack.c.bf16 %v2076, %v2074
    %v2079 = vpack.c.bf16 %v2077, %v2075
    %v2080 = vld [vmem:[%s51] sm:$0xf]
    %v2081 = vld [vmem:[%s51 + $0x4] sm:$0xf]
    %v2082 = vld [vmem:[%s51 + $0x8] sm:$0xf]
    %v2083 = vld [vmem:[%s51 + $0xc] sm:$0xf]
    %v2084 = vld [vmem:[%s51 + $0x10] sm:$0xf]
    %v2085 = vld [vmem:[%s51 + $0x14] sm:$0xf]
    %v2086 = vld [vmem:[%s51 + $0x18] sm:$0xf]
    %v2087 = vld [vmem:[%s51 + $0x1c] sm:$0xf]
    %v2088 = vld [vmem:[%s51 + $0x20] sm:$0xf]
    %v2089 = vld [vmem:[%s51 + $0x24] sm:$0xf]
    %v2090 = vld [vmem:[%s51 + $0x28] sm:$0xf]
    %v2091 = vld [vmem:[%s51 + $0x2c] sm:$0xf]
    %v2092 = vld [vmem:[%s51 + $0x30] sm:$0xf]
    %v2093 = vld [vmem:[%s51 + $0x34] sm:$0xf]
    %v2094 = vld [vmem:[%s51 + $0x38] sm:$0xf]
    %v2095 = vld [vmem:[%s51 + $0x3c] sm:$0xf]
    %v2096 = vld [vmem:[%s51 + $0x40] sm:$0xf]
    %v2097 = vld [vmem:[%s51 + $0x44] sm:$0xf]
    %v2098 = vld [vmem:[%s51 + $0x48] sm:$0xf]
    %v2099 = vld [vmem:[%s51 + $0x4c] sm:$0xf]
    %v2100 = vld [vmem:[%s51 + $0x50] sm:$0xf]
    %v2101 = vld [vmem:[%s51 + $0x54] sm:$0xf]
    %v2102 = vld [vmem:[%s51 + $0x58] sm:$0xf]
    %v2103 = vld [vmem:[%s51 + $0x5c] sm:$0xf]
    %v2104 = vld [vmem:[%s51 + $0x60] sm:$0xf]
    %v2105 = vld [vmem:[%s51 + $0x64] sm:$0xf]
    %v2106 = vld [vmem:[%s51 + $0x68] sm:$0xf]
    %v2107 = vld [vmem:[%s51 + $0x6c] sm:$0xf]
    %v2108 = vld [vmem:[%s51 + $0x70] sm:$0xf]
    %v2109 = vld [vmem:[%s51 + $0x74] sm:$0xf]
    %v2110 = vld [vmem:[%s51 + $0x78] sm:$0xf]
    %v2111 = vld [vmem:[%s51 + $0x7c] sm:$0xf]
    %v2112 = vld [vmem:[%s53] sm:$0x1]
    %v2114 = vperm.slane %v2112, 0
    %v2148 = vunpack.c.l.b16 %v2080
    %v2149 = vunpack.c.l.b16 %v2081
    %v2150 = vunpack.c.l.b16 %v2082
    %v2151 = vunpack.c.l.b16 %v2083
    %v2152 = vunpack.c.l.b16 %v2084
    %v2153 = vunpack.c.l.b16 %v2085
    %v2154 = vunpack.c.l.b16 %v2086
    %v2155 = vunpack.c.l.b16 %v2087
    %v2156 = vunpack.c.l.b16 %v2088
    %v2157 = vunpack.c.l.b16 %v2089
    %v2158 = vunpack.c.l.b16 %v2090
    %v2159 = vunpack.c.l.b16 %v2091
    %v2160 = vunpack.c.l.b16 %v2092
    %v2161 = vunpack.c.l.b16 %v2093
    %v2162 = vunpack.c.l.b16 %v2094
    %v2163 = vunpack.c.l.b16 %v2095
    %v2164 = vunpack.c.l.b16 %v2096
    %v2165 = vunpack.c.l.b16 %v2097
    %v2166 = vunpack.c.l.b16 %v2098
    %v2167 = vunpack.c.l.b16 %v2099
    %v2168 = vunpack.c.l.b16 %v2100
    %v2169 = vunpack.c.l.b16 %v2101
    %v2170 = vunpack.c.l.b16 %v2102
    %v2171 = vunpack.c.l.b16 %v2103
    %v2172 = vunpack.c.l.b16 %v2104
    %v2173 = vunpack.c.l.b16 %v2105
    %v2174 = vunpack.c.l.b16 %v2106
    %v2175 = vunpack.c.l.b16 %v2107
    %v2176 = vunpack.c.l.b16 %v2108
    %v2177 = vunpack.c.l.b16 %v2109
    %v2178 = vunpack.c.l.b16 %v2110
    %v2179 = vunpack.c.l.b16 %v2111
    %v2180 = vpack.c.b16 %v2149, %v2148
    %v2181 = vpack.c.b16 %v2151, %v2150
    %v2182 = vpack.c.b16 %v2153, %v2152
    %v2183 = vpack.c.b16 %v2155, %v2154
    %v2184 = vpack.c.b16 %v2157, %v2156
    %v2185 = vpack.c.b16 %v2159, %v2158
    %v2186 = vpack.c.b16 %v2161, %v2160
    %v2187 = vpack.c.b16 %v2163, %v2162
    %v2188 = vpack.c.b16 %v2165, %v2164
    %v2189 = vpack.c.b16 %v2167, %v2166
    %v2190 = vpack.c.b16 %v2169, %v2168
    %v2191 = vpack.c.b16 %v2171, %v2170
    %v2192 = vpack.c.b16 %v2173, %v2172
    %v2193 = vpack.c.b16 %v2175, %v2174
    %v2194 = vpack.c.b16 %v2177, %v2176
    %v2195 = vpack.c.b16 %v2179, %v2178
    %2212 = vmatpush.bf16.msra.mxu0 %v2187
    %2213 = vmatpush.bf16.msra.mxu0 %v2186
    %2214 = vmatpush.bf16.msra.mxu0 %v2185
    %2215 = vmatpush.bf16.msra.mxu0 %v2184
    %2216 = vmatpush.bf16.msra.mxu0 %v2183
    %2217 = vmatpush.bf16.msra.mxu0 %v2182
    %2218 = vmatpush.bf16.msra.mxu0 %v2181
    %2219 = vmatpush.bf16.msra.mxu0 %v2180
    %2220 = vmatmul.bf16.gmra.mxu0 %v2078
    %v2221 = vpop.f32.mrf.mxu0
    %v2222 = vadd.f32 %v2114, %v2221
    %v2223 = vpop.f32.mrf.mxu0
    %v2224 = vadd.f32 %v2114, %v2223
    %2225 = vdwg.mxu0
    %2226 = vmatpush.bf16.msra.mxu0 %v2195
    %2227 = vmatpush.bf16.msra.mxu0 %v2194
    %2228 = vmatpush.bf16.msra.mxu0 %v2193
    %2229 = vmatpush.bf16.msra.mxu0 %v2192
    %2230 = vmatpush.bf16.msra.mxu0 %v2191
    %2231 = vmatpush.bf16.msra.mxu0 %v2190
    %2232 = vmatpush.bf16.msra.mxu0 %v2189
    %2233 = vmatpush.bf16.msra.mxu0 %v2188
    %2234 = vmatmul.bf16.gmra.mxu0 %v2079
    %v2235 = vpop.f32.mrf.mxu0
    %v2236 = vadd.f32 %v2222, %v2235
    %v2237 = vpop.f32.mrf.mxu0
    %v2238 = vadd.f32 %v2224, %v2237
    %2239 = vdwg.mxu0
    %v2240 = vadd.f32 %v1986, %v2236
    %v2241 = vadd.f32 %v1987, %v2238
    %v2242 = vsel %vm355, %v2240, 0.0
    %2243 = vadd.xlane.f32.xlu0 %v2242
    %v2244 = vpop.xlane.xlu0 %2243
    %v2245 = vsel %vm355, %v2241, 0.0
    %2246 = vadd.xlane.f32.xlu0 %v2245
    %v2247 = vpop.xlane.xlu0 %2246
    %v2248 = vmul.f32 %v2244, %v945
    %v2249 = vmul.f32 %v2247, %v945
    %v2250 = vsub.f32 %v2240, %v2248
    %v2251 = vsub.f32 %v2241, %v2249
    %v2252 = vmul.f32 %v2250, %v2250
    %v2253 = vmul.f32 %v2251, %v2251
    %v2254 = vsel %vm355, %v2252, 0.0
    %2255 = vadd.xlane.f32.xlu0 %v2254
    %v2256 = vpop.xlane.xlu0 %2255
    %v2257 = vsel %vm355, %v2253, 0.0
    %2258 = vadd.xlane.f32.xlu0 %v2257
    %v2259 = vpop.xlane.xlu0 %2258
    %v2260 = vmul.f32 %v2256, %v945
    %v2261 = vmul.f32 %v2259, %v945
    %v2262 = vadd.f32 %v2260, 1e-05
    %v2263 = vadd.f32 %v2261, 1e-05
    %v2264 = vrsqrt.pop %v2262
    %v2265 = vmul.f32 %v2264, %v2262
    %v2266 = vmul.f32 %v2265, %v2264
    %v2267 = vmul.f32 0.5, %v2266
    %v2268 = vsub.f32 1.5, %v2267
    %v2269 = vmul.f32 %v2264, %v2268
    %vm2270 = vweird.f32 %v2262
    %vm2271 = vweird.f32 %v2264
    %vm2272 = vmor %vm2270, %vm2271
    %v2273 = vsel %vm2272, %v2264, %v2269
    %v2274 = vrsqrt.pop %v2263
    %v2275 = vmul.f32 %v2274, %v2263
    %v2276 = vmul.f32 %v2275, %v2274
    %v2277 = vmul.f32 0.5, %v2276
    %v2278 = vsub.f32 1.5, %v2277
    %v2279 = vmul.f32 %v2274, %v2278
    %vm2280 = vweird.f32 %v2263
    %vm2281 = vweird.f32 %v2274
    %vm2282 = vmor %vm2280, %vm2281
    %v2283 = vsel %vm2282, %v2274, %v2279
    %v2284 = vmul.f32 %v2250, %v2273
    %v2285 = vmul.f32 %v2251, %v2283
    %v2287 = vperm.slane %v1304, 0
    %v2289 = vmul.f32 %v2284, %v2287
    %v2290 = vmul.f32 %v2285, %v2287
    %v2292 = vperm.slane %v1305, 0
    %v2294 = vadd.f32 %v2289, %v2292
    %v2295 = vadd.f32 %v2290, %v2292
    %v2296 = vld [vmem:[#allocation5] sm:$0x3]
    %v2298 = vsel %vm275, %v2296, 0
    %2300 = vmatpush.msra.mxu0 0.0
    %2301 = vmatpush.msra.mxu0 0.0
    %2302 = vmatpush.msra.mxu0 0.0
    %2303 = vmatpush.msra.mxu0 0.0
    %2304 = vmatpush.msra.mxu0 0.0
    %2305 = vmatpush.msra.mxu0 0.0
    %2306 = vmatpush.msra.mxu0 0.0
    %2307 = vmatpush.msra.mxu0 0.0
    %2308 = vmatpush.msra.mxu0 0.0
    %2309 = vmatpush.msra.mxu0 0.0
    %2310 = vmatpush.msra.mxu0 0.0
    %2311 = vmatpush.msra.mxu0 0.0
    %2312 = vmatpush.msra.mxu0 0.0
    %2313 = vmatpush.msra.mxu0 0.0
    %2314 = vmatpush.msra.mxu0 %v2295
    %2315 = vmatpush.msra.mxu0 %v2294
    %2316 = vmatmul.f32.gmra.mxu0 %v2298
    %v2317 = vpop.f32.mrf.mxu0
    %v2318 = vadd.f32 0.0, %v2317
    %2319 = vdwg.mxu0
    %v2320 = vpack.c.bf16 %v2318, %v2318
    %v2321 = vld [vmem:[#allocation16] sm:$0xf]
    %v2322 = vld [vmem:[#allocation16 + $0x4] sm:$0xf]
    %v2323 = vld [vmem:[#allocation16 + $0x8] sm:$0xf]
    %v2324 = vld [vmem:[#allocation16 + $0xc] sm:$0xf]
    %v2325 = vld [vmem:[#allocation16 + $0x10] sm:$0xf]
    %v2326 = vld [vmem:[#allocation16 + $0x14] sm:$0xf]
    %v2327 = vld [vmem:[#allocation16 + $0x18] sm:$0xf]
    %v2328 = vld [vmem:[#allocation16 + $0x1c] sm:$0xf]
    %v2329 = vld [vmem:[%s61] sm:$0x1]
    %v2331 = vperm.slane %v2329, 0
    %v2341 = vunpack.c.l.b16 %v2321
    %v2342 = vunpack.c.l.b16 %v2322
    %v2343 = vunpack.c.l.b16 %v2323
    %v2344 = vunpack.c.l.b16 %v2324
    %v2345 = vunpack.c.l.b16 %v2325
    %v2346 = vunpack.c.l.b16 %v2326
    %v2347 = vunpack.c.l.b16 %v2327
    %v2348 = vunpack.c.l.b16 %v2328
    %v2349 = vpack.c.b16 %v2342, %v2341
    %v2350 = vpack.c.b16 %v2344, %v2343
    %v2351 = vpack.c.b16 %v2346, %v2345
    %v2352 = vpack.c.b16 %v2348, %v2347
    %v2358 = vsel %vm355, %v2320, 0
    %2360 = vmatpush.bf16.msra.mxu0 0
    %2361 = vmatpush.bf16.msra.mxu0 0
    %2362 = vmatpush.bf16.msra.mxu0 0
    %2363 = vmatpush.bf16.msra.mxu0 0
    %2364 = vmatpush.bf16.msra.mxu0 %v2352
    %2365 = vmatpush.bf16.msra.mxu0 %v2351
    %2366 = vmatpush.bf16.msra.mxu0 %v2350
    %2367 = vmatpush.bf16.msra.mxu0 %v2349
    %2368 = vmatmul.bf16.gmra.mxu0 %v2358
    %v2369 = vpop.f32.mrf.mxu0
    %v2370 = vadd.f32 %v2331, %v2369
    %v2371 = vpop.f32.mrf.mxu0
    %2372 = vdwg.mxu0
    %2373 = vst [vmem:[#allocation17] sm:$0x3] %v2370
    // Predicated region
    $region162: #{tpu_custom_call.1} parent=1 // pred_check
      _
    $region163: #{tpu_custom_call.1} parent=1 // pred_check_branch
      %2375 = sbr.rel (0) target = $region165
    $region164: #{tpu_custom_call.1} parent=1 // pred_region
      %2377 = vsyncadd [#allocation4], 0
      %s2379 = sshll.u32 [#allocation17], 4
      %s2380 = int_to_ptr.vmem [resolvable:$true] %s2379
      %s2381 = sshll.u32 %s63, 4
      %s2382 = int_to_ptr.hbm [resolvable:$true] %s2381
      %2384 = dma.vmem_to_hbm [thread:$0]  %s2380, 32, %s2382, [#allocation4]
    $region165: #{tpu_custom_call.1} parent=1 // pred_fallthru
      _
    // Predicated region
    $region166: #{tpu_custom_call.1} parent=1 // pred_check
      _
    $region167: #{tpu_custom_call.1} parent=1 // pred_check_branch
      %2386 = sbr.rel (0) target = $region169
    $region168: #{tpu_custom_call.1} parent=1 // pred_region
      %2388 = dma.done [#allocation4], 32
    $region169: #{tpu_custom_call.1} parent=1 // pred_fallthru
      _
    %2389 = vsyncpa [#allocation3], 1
    %2390 = vsyncpa [#allocation6], 1
    %2391 = vsyncpa [#allocation9], 1
    %2392 = vsyncpa [#allocation12], 1
    %2393 = vsyncpa [#allocation15], 1
    %2394 = vsyncpa [#allocation4], 1

</llo_original>
